<compile_context>
chip_gen: v7x
topology: tpu7x:2x2x1
jax: 0.10.0
libtpu: 0.0.40
codegen_flags: <defaults>
</compile_context>

<pallas_src>
import jax
import jax.numpy as jnp
from jax.experimental import pallas as pl
from jax.experimental.pallas import tpu as pltpu

# Model hyper-parameters implied by a tiny timm backbone.
IN_CHANNELS = 4
FEATURES = 32
NUM_CLASSES = 8
KH = KW = 3

LANES = 128          # pad all feature dims to a full lane width (lane-dense stores)
MAX_CHUNK = 2048     # spatial positions processed per in-kernel step (bounds VMEM)


# ----------------------------- Pallas kernel -------------------------------

def _make_fused_kernel(*, deltas, q0, chunk, n_chunks):
    """Fused conv3x3 -> bias -> ReLU -> global-avg-pool -> FC (one image per grid step)."""

    def kernel(x_ref, wc_ref, bc_ref, m_ref, wf_ref, bf_ref, o_ref):
        # x_ref : (flat_len, C)   bf16  zero-padded image, spatially flattened
        # wc_ref: (9, C, 128)     f32   conv weights, one (C, 128) slab per 3x3 tap
        # bc_ref: (1, 128)        f32   conv bias (zero-padded to 128 lanes)
        # m_ref : (1, R)          f32   pooling weights: 1/(H*W) at real pixels, else 0
        # wf_ref: (128, 128)      f32   classifier weight (zero-padded)
        # bf_ref: (1, 128)        f32   classifier bias (zero-padded)
        # o_ref : (1, 128)        f32   logits (padded; sliced to NUM_CLASSES outside)
        xv = x_ref[...].astype(jnp.float32)            # widen once, stays in VMEM
        pooled = jnp.zeros((1, LANES), jnp.float32)

        for ci in range(n_chunks):                     # static unrolled chunk loop
            base = ci * chunk
            acc = jnp.zeros((chunk, LANES), jnp.float32)
            # 3x3 conv as 9 statically-shifted accumulating MXU matmuls.
            for s, delta in enumerate(deltas):
                start = q0 + delta + base              # static Python int
                acc = acc + jnp.dot(xv[start:start + chunk, :], wc_ref[s],
                                    preferred_element_type=jnp.float32)
            acc = jnp.maximum(acc + bc_ref[...], 0.0)  # bias + ReLU (f32 epilogue)
            # Masked global-average-pool as a single (1, chunk) @ (chunk, 128) matvec;
            # the mask zeroes pad columns / overrun rows and carries the 1/(H*W) factor.
            pooled = pooled + jnp.dot(m_ref[:, base:base + chunk], acc,
                                      preferred_element_type=jnp.float32)

        # Classifier head, fused (all dims padded to 128 lanes -> lane-dense store).
        o_ref[...] = jnp.dot(pooled, wf_ref[...],
                             preferred_element_type=jnp.float32) + bf_ref[...]

    return kernel


# ------------------------------- JAX wrapper --------------------------------

def timm_base_forward(x_nchw, params):
    """Forward pass of the synthetic TIMMBase model. Input: NCHW float32."""
    conv_w, conv_b = params["conv_w"], params["conv_b"]
    fc_w, fc_b = params["fc_w"], params["fc_b"]

    N, C, H, W = x_nchw.shape
    F = conv_w.shape[0]
    NC = fc_w.shape[0]

    Hp, Wp = H + 2, W + 2            # SAME padding for the 3x3 conv
    P = Hp * Wp                      # flattened padded-image length
    q0 = Wp + 1                      # flat index of output pixel (h=0, w=0)
    Lv = (H - 1) * Wp + W            # contiguous flat span covering every output pixel
    chunk = min(Lv, MAX_CHUNK)
    n_chunks = pl.cdiv(Lv, chunk)
    R = n_chunks * chunk
    flat_len = P + (R - Lv)          # keeps every shifted tap slice in bounds

    # Input: NCHW -> NHWC, 1-pixel zero pad, flatten spatial, cast to bf16.
    # (Only ~1.1x the input is ever written to HBM; no 9x im2col copy.)
    xp = jnp.pad(jnp.transpose(x_nchw, (0, 2, 3, 1)),
                 ((0, 0), (1, 1), (1, 1), (0, 0)))
    xflat = xp.reshape(N, P, C)
    if flat_len > P:
        xflat = jnp.pad(xflat, ((0, 0), (0, flat_len - P), (0, 0)))
    xflat = xflat.astype(jnp.bfloat16)

    # Conv weights: (F, C, 3, 3) -> (9, C, 128); tap s = di*3 + dj.  Padding the
    # output-feature dim to 128 lanes once, outside the grid loop.
    wc = jnp.transpose(conv_w, (2, 3, 1, 0)).reshape(KH * KW, C, F)
    wc = jnp.pad(wc, ((0, 0), (0, 0), (0, LANES - F))).astype(jnp.float32)
    bc = jnp.pad(conv_b, (0, LANES - F)).reshape(1, LANES).astype(jnp.float32)

    # Classifier: (NC, F) -> (128, 128); bias -> (1, 128).
    wf = jnp.pad(fc_w.T, ((0, LANES - F), (0, LANES - NC))).astype(jnp.float32)
    bf = jnp.pad(fc_b, (0, LANES - NC)).reshape(1, LANES).astype(jnp.float32)

    # Pooling weights: flat position r = h*Wp + w is a real output pixel iff
    # (r % Wp) < W and r < Lv; fold 1/(H*W) in so the pool is one MXU matvec.
    r = jnp.arange(R)
    mask = (((r % Wp) < W) & (r < Lv)).astype(jnp.float32) / float(H * W)
    mask = mask.reshape(1, R)

    # Shift of tap (di, dj) in the flattened padded image.
    deltas = tuple((di - 1) * Wp + (dj - 1) for di in range(KH) for dj in range(KW))
    kernel = _make_fused_kernel(deltas=deltas, q0=q0, chunk=chunk, n_chunks=n_chunks)

    out = pl.pallas_call(
        kernel,
        grid=(N,),                                                    # pipelined over batch
        in_specs=[
            pl.BlockSpec((None, flat_len, C), lambda n: (n, 0, 0)),   # image n (double-buffered)
            pl.BlockSpec((KH * KW, C, LANES), lambda n: (0, 0, 0)),   # resident conv weights
            pl.BlockSpec((1, LANES), lambda n: (0, 0)),               # resident conv bias
            pl.BlockSpec((1, R), lambda n: (0, 0)),                   # resident pool mask
            pl.BlockSpec((LANES, LANES), lambda n: (0, 0)),           # resident fc weight
            pl.BlockSpec((1, LANES), lambda n: (0, 0)),               # resident fc bias
        ],
        out_specs=pl.BlockSpec((None, 1, LANES), lambda n: (n, 0, 0)),
        out_shape=jax.ShapeDtypeStruct((N, 1, LANES), jnp.float32),
        compiler_params=pltpu.CompilerParams(
            dimension_semantics=("parallel",),       # megacore sharding of the batch axis
            vmem_limit_bytes=32 * 1024 * 1024,
        ),
    )(xflat, wc, bc, mask, wf, bf)

    return out[:, 0, :NC]                            # strip the lane padding


def init_params(key):
    k1, k2, k3, k4 = jax.random.split(key, 4)
    # Shapes follow PyTorch conventions (conv: (F, C, kh, kw), fc: (out, in)).
    conv_w = jax.random.normal(k1, (FEATURES, IN_CHANNELS, KH, KW), jnp.float32) * 0.1
    conv_b = jax.random.normal(k2, (FEATURES,), jnp.float32) * 0.01
    fc_w = jax.random.normal(k3, (NUM_CLASSES, FEATURES), jnp.float32) * 0.1
    fc_b = jax.random.normal(k4, (NUM_CLASSES,), jnp.float32) * 0.01
    return {"conv_w": conv_w, "conv_b": conv_b, "fc_w": fc_w, "fc_b": fc_b}


def reference_forward(x_nchw, params):
    """Pure-JAX f32 reference (mirrors PyTorch semantics)."""
    conv_w, conv_b = params["conv_w"], params["conv_b"]
    fc_w, fc_b = params["fc_w"], params["fc_b"]
    y = jax.lax.conv_general_dilated(
        x_nchw, conv_w, window_strides=(1, 1), padding="SAME",
        dimension_numbers=("NCHW", "OIHW", "NCHW"),
        precision=jax.lax.Precision.HIGHEST,
    ) + conv_b[None, :, None, None]
    y = jnp.maximum(y, 0.0)
    pooled = jnp.mean(y, axis=(2, 3))
    return jnp.dot(pooled, fc_w.T, precision=jax.lax.Precision.HIGHEST) + fc_b


if __name__ == "__main__":
    key = jax.random.PRNGKey(0)
    k_x, k_p = jax.random.split(key)
    x = jax.random.normal(k_x, (2, IN_CHANNELS, 16, 16), jnp.float32)  # NCHW
    params = init_params(k_p)

    fwd = jax.jit(timm_base_forward)
    logits = fwd(x, params)
    jax.block_until_ready(logits)

    ref = reference_forward(x, params)
    assert logits.shape == (2, NUM_CLASSES)
    # The kernel reads x as bf16, so compare at mixed-precision tolerance.
    assert jnp.allclose(logits, ref, atol=2e-2, rtol=2e-2), "mismatch vs reference"
    print("KERNEL_OK")
</pallas_src>

<mosaic_0001>
module attributes {stable_mosaic.version = 11 : i64} {
  func.func @kernel(%arg0: i32, %arg1: memref<1x324x4xbf16, #tpu.memory_space<vmem>>, %arg2: memref<9x4x128xf32, #tpu.memory_space<vmem>>, %arg3: memref<1x128xf32, #tpu.memory_space<vmem>>, %arg4: memref<1x286xf32, #tpu.memory_space<vmem>>, %arg5: memref<128x128xf32, #tpu.memory_space<vmem>>, %arg6: memref<1x128xf32, #tpu.memory_space<vmem>>, %arg7: memref<1x1x128xf32, #tpu.memory_space<vmem>>) attributes {dimension_semantics = [#tpu.dimension_semantics<parallel>], iteration_bounds = array<i64: 2>, scalar_prefetch = 0 : i64, scratch_operands = 0 : i64, tpu.core_type = #tpu.core_type<tc>, window_params = [{transform_indices = @transform_0, window_bounds = array<i64: 1, 324, 4>}, {pipeline_mode = #tpu.pipeline_mode<synchronous>, transform_indices = @transform_1, window_bounds = array<i64: 9, 4, 128>}, {pipeline_mode = #tpu.pipeline_mode<synchronous>, transform_indices = @transform_2, window_bounds = array<i64: 1, 128>}, {pipeline_mode = #tpu.pipeline_mode<synchronous>, transform_indices = @transform_3, window_bounds = array<i64: 1, 286>}, {pipeline_mode = #tpu.pipeline_mode<synchronous>, transform_indices = @transform_4, window_bounds = array<i64: 128, 128>}, {pipeline_mode = #tpu.pipeline_mode<synchronous>, transform_indices = @transform_5, window_bounds = array<i64: 1, 128>}, {transform_indices = @transform_6, window_bounds = array<i64: 1, 1, 128>}]} {
    %c0 = arith.constant 0 : index
    %c0_0 = arith.constant 0 : index
    %c0_1 = arith.constant 0 : index
    %0 = vector.load %arg1[%c0, %c0_0, %c0_1] : memref<1x324x4xbf16, #tpu.memory_space<vmem>>, vector<1x324x4xbf16>
    %1 = vector.shape_cast %0 : vector<1x324x4xbf16> to vector<324x4xbf16>
    %2 = arith.extf %1 : vector<324x4xbf16> to vector<324x4xf32>
    %cst = arith.constant 0.000000e+00 : f32
    %3 = vector.broadcast %cst : f32 to vector<1x128xf32>
    %cst_2 = arith.constant 0.000000e+00 : f32
    %4 = vector.broadcast %cst_2 : f32 to vector<286x128xf32>
    %5 = vector.extract_strided_slice %2 {offsets = [0, 0], sizes = [286, 4], strides = [1, 1]} : vector<324x4xf32> to vector<286x4xf32>
    %c0_3 = arith.constant 0 : index
    %c0_4 = arith.constant 0 : index
    %c0_5 = arith.constant 0 : index
    %6 = vector.load %arg2[%c0_3, %c0_4, %c0_5] : memref<9x4x128xf32, #tpu.memory_space<vmem>>, vector<1x4x128xf32>
    %7 = vector.shape_cast %6 : vector<1x4x128xf32> to vector<4x128xf32>
    %cst_6 = arith.constant dense<0.000000e+00> : vector<286x128xf32>
    %8 = tpu.matmul %5, %7, %cst_6 {dimension_numbers = #tpu.dot_dimension_numbers<[1], [0], [0], [1], [0, 0, 1, 1], [], []>} : vector<286x4xf32>, vector<4x128xf32>, vector<286x128xf32> -> vector<286x128xf32>
    %9 = arith.addf %4, %8 : vector<286x128xf32>
    %10 = vector.extract_strided_slice %2 {offsets = [1, 0], sizes = [286, 4], strides = [1, 1]} : vector<324x4xf32> to vector<286x4xf32>
    %c1 = arith.constant 1 : index
    %c0_7 = arith.constant 0 : index
    %c0_8 = arith.constant 0 : index
    %11 = vector.load %arg2[%c1, %c0_7, %c0_8] : memref<9x4x128xf32, #tpu.memory_space<vmem>>, vector<1x4x128xf32>
    %12 = vector.shape_cast %11 : vector<1x4x128xf32> to vector<4x128xf32>
    %cst_9 = arith.constant dense<0.000000e+00> : vector<286x128xf32>
    %13 = tpu.matmul %10, %12, %cst_9 {dimension_numbers = #tpu.dot_dimension_numbers<[1], [0], [0], [1], [0, 0, 1, 1], [], []>} : vector<286x4xf32>, vector<4x128xf32>, vector<286x128xf32> -> vector<286x128xf32>
    %14 = arith.addf %9, %13 : vector<286x128xf32>
    %15 = vector.extract_strided_slice %2 {offsets = [2, 0], sizes = [286, 4], strides = [1, 1]} : vector<324x4xf32> to vector<286x4xf32>
    %c2 = arith.constant 2 : index
    %c0_10 = arith.constant 0 : index
    %c0_11 = arith.constant 0 : index
    %16 = vector.load %arg2[%c2, %c0_10, %c0_11] : memref<9x4x128xf32, #tpu.memory_space<vmem>>, vector<1x4x128xf32>
    %17 = vector.shape_cast %16 : vector<1x4x128xf32> to vector<4x128xf32>
    %cst_12 = arith.constant dense<0.000000e+00> : vector<286x128xf32>
    %18 = tpu.matmul %15, %17, %cst_12 {dimension_numbers = #tpu.dot_dimension_numbers<[1], [0], [0], [1], [0, 0, 1, 1], [], []>} : vector<286x4xf32>, vector<4x128xf32>, vector<286x128xf32> -> vector<286x128xf32>
    %19 = arith.addf %14, %18 : vector<286x128xf32>
    %20 = vector.extract_strided_slice %2 {offsets = [18, 0], sizes = [286, 4], strides = [1, 1]} : vector<324x4xf32> to vector<286x4xf32>
    %c3 = arith.constant 3 : index
    %c0_13 = arith.constant 0 : index
    %c0_14 = arith.constant 0 : index
    %21 = vector.load %arg2[%c3, %c0_13, %c0_14] : memref<9x4x128xf32, #tpu.memory_space<vmem>>, vector<1x4x128xf32>
    %22 = vector.shape_cast %21 : vector<1x4x128xf32> to vector<4x128xf32>
    %cst_15 = arith.constant dense<0.000000e+00> : vector<286x128xf32>
    %23 = tpu.matmul %20, %22, %cst_15 {dimension_numbers = #tpu.dot_dimension_numbers<[1], [0], [0], [1], [0, 0, 1, 1], [], []>} : vector<286x4xf32>, vector<4x128xf32>, vector<286x128xf32> -> vector<286x128xf32>
    %24 = arith.addf %19, %23 : vector<286x128xf32>
    %25 = vector.extract_strided_slice %2 {offsets = [19, 0], sizes = [286, 4], strides = [1, 1]} : vector<324x4xf32> to vector<286x4xf32>
    %c4 = arith.constant 4 : index
    %c0_16 = arith.constant 0 : index
    %c0_17 = arith.constant 0 : index
    %26 = vector.load %arg2[%c4, %c0_16, %c0_17] : memref<9x4x128xf32, #tpu.memory_space<vmem>>, vector<1x4x128xf32>
    %27 = vector.shape_cast %26 : vector<1x4x128xf32> to vector<4x128xf32>
    %cst_18 = arith.constant dense<0.000000e+00> : vector<286x128xf32>
    %28 = tpu.matmul %25, %27, %cst_18 {dimension_numbers = #tpu.dot_dimension_numbers<[1], [0], [0], [1], [0, 0, 1, 1], [], []>} : vector<286x4xf32>, vector<4x128xf32>, vector<286x128xf32> -> vector<286x128xf32>
    %29 = arith.addf %24, %28 : vector<286x128xf32>
    %30 = vector.extract_strided_slice %2 {offsets = [20, 0], sizes = [286, 4], strides = [1, 1]} : vector<324x4xf32> to vector<286x4xf32>
    %c5 = arith.constant 5 : index
    %c0_19 = arith.constant 0 : index
    %c0_20 = arith.constant 0 : index
    %31 = vector.load %arg2[%c5, %c0_19, %c0_20] : memref<9x4x128xf32, #tpu.memory_space<vmem>>, vector<1x4x128xf32>
    %32 = vector.shape_cast %31 : vector<1x4x128xf32> to vector<4x128xf32>
    %cst_21 = arith.constant dense<0.000000e+00> : vector<286x128xf32>
    %33 = tpu.matmul %30, %32, %cst_21 {dimension_numbers = #tpu.dot_dimension_numbers<[1], [0], [0], [1], [0, 0, 1, 1], [], []>} : vector<286x4xf32>, vector<4x128xf32>, vector<286x128xf32> -> vector<286x128xf32>
    %34 = arith.addf %29, %33 : vector<286x128xf32>
    %35 = vector.extract_strided_slice %2 {offsets = [36, 0], sizes = [286, 4], strides = [1, 1]} : vector<324x4xf32> to vector<286x4xf32>
    %c6 = arith.constant 6 : index
    %c0_22 = arith.constant 0 : index
    %c0_23 = arith.constant 0 : index
    %36 = vector.load %arg2[%c6, %c0_22, %c0_23] : memref<9x4x128xf32, #tpu.memory_space<vmem>>, vector<1x4x128xf32>
    %37 = vector.shape_cast %36 : vector<1x4x128xf32> to vector<4x128xf32>
    %cst_24 = arith.constant dense<0.000000e+00> : vector<286x128xf32>
    %38 = tpu.matmul %35, %37, %cst_24 {dimension_numbers = #tpu.dot_dimension_numbers<[1], [0], [0], [1], [0, 0, 1, 1], [], []>} : vector<286x4xf32>, vector<4x128xf32>, vector<286x128xf32> -> vector<286x128xf32>
    %39 = arith.addf %34, %38 : vector<286x128xf32>
    %40 = vector.extract_strided_slice %2 {offsets = [37, 0], sizes = [286, 4], strides = [1, 1]} : vector<324x4xf32> to vector<286x4xf32>
    %c7 = arith.constant 7 : index
    %c0_25 = arith.constant 0 : index
    %c0_26 = arith.constant 0 : index
    %41 = vector.load %arg2[%c7, %c0_25, %c0_26] : memref<9x4x128xf32, #tpu.memory_space<vmem>>, vector<1x4x128xf32>
    %42 = vector.shape_cast %41 : vector<1x4x128xf32> to vector<4x128xf32>
    %cst_27 = arith.constant dense<0.000000e+00> : vector<286x128xf32>
    %43 = tpu.matmul %40, %42, %cst_27 {dimension_numbers = #tpu.dot_dimension_numbers<[1], [0], [0], [1], [0, 0, 1, 1], [], []>} : vector<286x4xf32>, vector<4x128xf32>, vector<286x128xf32> -> vector<286x128xf32>
    %44 = arith.addf %39, %43 : vector<286x128xf32>
    %45 = vector.extract_strided_slice %2 {offsets = [38, 0], sizes = [286, 4], strides = [1, 1]} : vector<324x4xf32> to vector<286x4xf32>
    %c8 = arith.constant 8 : index
    %c0_28 = arith.constant 0 : index
    %c0_29 = arith.constant 0 : index
    %46 = vector.load %arg2[%c8, %c0_28, %c0_29] : memref<9x4x128xf32, #tpu.memory_space<vmem>>, vector<1x4x128xf32>
    %47 = vector.shape_cast %46 : vector<1x4x128xf32> to vector<4x128xf32>
    %cst_30 = arith.constant dense<0.000000e+00> : vector<286x128xf32>
    %48 = tpu.matmul %45, %47, %cst_30 {dimension_numbers = #tpu.dot_dimension_numbers<[1], [0], [0], [1], [0, 0, 1, 1], [], []>} : vector<286x4xf32>, vector<4x128xf32>, vector<286x128xf32> -> vector<286x128xf32>
    %49 = arith.addf %44, %48 : vector<286x128xf32>
    %c0_31 = arith.constant 0 : index
    %c0_32 = arith.constant 0 : index
    %50 = vector.load %arg3[%c0_31, %c0_32] : memref<1x128xf32, #tpu.memory_space<vmem>>, vector<1x128xf32>
    %51 = vector.broadcast %50 : vector<1x128xf32> to vector<286x128xf32>
    %52 = arith.addf %49, %51 : vector<286x128xf32>
    %cst_33 = arith.constant 0.000000e+00 : f32
    %53 = vector.broadcast %cst_33 : f32 to vector<286x128xf32>
    %54 = arith.maximumf %52, %53 : vector<286x128xf32>
    %c0_34 = arith.constant 0 : index
    %c0_35 = arith.constant 0 : index
    %55 = vector.load %arg4[%c0_34, %c0_35] : memref<1x286xf32, #tpu.memory_space<vmem>>, vector<1x286xf32>
    %cst_36 = arith.constant dense<0.000000e+00> : vector<1x128xf32>
    %56 = tpu.matmul %55, %54, %cst_36 {dimension_numbers = #tpu.dot_dimension_numbers<[1], [0], [0], [1], [0, 0, 1, 1], [], []>} : vector<1x286xf32>, vector<286x128xf32>, vector<1x128xf32> -> vector<1x128xf32>
    %57 = arith.addf %3, %56 : vector<1x128xf32>
    %c0_37 = arith.constant 0 : index
    %c0_38 = arith.constant 0 : index
    %58 = vector.load %arg5[%c0_37, %c0_38] : memref<128x128xf32, #tpu.memory_space<vmem>>, vector<128x128xf32>
    %cst_39 = arith.constant dense<0.000000e+00> : vector<1x128xf32>
    %59 = tpu.matmul %57, %58, %cst_39 {dimension_numbers = #tpu.dot_dimension_numbers<[1], [0], [0], [1], [0, 0, 1, 1], [], []>} : vector<1x128xf32>, vector<128x128xf32>, vector<1x128xf32> -> vector<1x128xf32>
    %c0_40 = arith.constant 0 : index
    %c0_41 = arith.constant 0 : index
    %60 = vector.load %arg6[%c0_40, %c0_41] : memref<1x128xf32, #tpu.memory_space<vmem>>, vector<1x128xf32>
    %61 = arith.addf %59, %60 : vector<1x128xf32>
    %c0_42 = arith.constant 0 : index
    %c0_43 = arith.constant 0 : index
    %c0_44 = arith.constant 0 : index
    %62 = vector.load %arg7[%c0_42, %c0_43, %c0_44] : memref<1x1x128xf32, #tpu.memory_space<vmem>>, vector<1x1x128xf32>
    %63 = vector.shape_cast %62 : vector<1x1x128xf32> to vector<1x128xf32>
    %64 = vector.shape_cast %61 : vector<1x128xf32> to vector<1x1x128xf32>
    tpu.vector_store %arg7[%c0_42, %c0_43, %c0_44], %64 {strides = array<i32>} : memref<1x1x128xf32, #tpu.memory_space<vmem>>, vector<1x1x128xf32>,
    return
  }
  func.func @transform_0(%arg0: i32) -> (i32, i32, i32) {
    %c0_i32 = arith.constant 0 : i32
    %c0_i32_0 = arith.constant 0 : i32
    %c0_i32_1 = arith.constant 0 : i32
    return %arg0, %c0_i32, %c0_i32_0 : i32, i32, i32
  }
  func.func @transform_1(%arg0: i32) -> (i32, i32, i32) {
    %c0_i32 = arith.constant 0 : i32
    %c0_i32_0 = arith.constant 0 : i32
    %c0_i32_1 = arith.constant 0 : i32
    %c0_i32_2 = arith.constant 0 : i32
    return %c0_i32, %c0_i32_0, %c0_i32_1 : i32, i32, i32
  }
  func.func @transform_2(%arg0: i32) -> (i32, i32) {
    %c0_i32 = arith.constant 0 : i32
    %c0_i32_0 = arith.constant 0 : i32
    %c0_i32_1 = arith.constant 0 : i32
    return %c0_i32, %c0_i32_0 : i32, i32
  }
  func.func @transform_3(%arg0: i32) -> (i32, i32) {
    %c0_i32 = arith.constant 0 : i32
    %c0_i32_0 = arith.constant 0 : i32
    %c0_i32_1 = arith.constant 0 : i32
    return %c0_i32, %c0_i32_0 : i32, i32
  }
  func.func @transform_4(%arg0: i32) -> (i32, i32) {
    %c0_i32 = arith.constant 0 : i32
    %c0_i32_0 = arith.constant 0 : i32
    %c0_i32_1 = arith.constant 0 : i32
    return %c0_i32, %c0_i32_0 : i32, i32
  }
  func.func @transform_5(%arg0: i32) -> (i32, i32) {
    %c0_i32 = arith.constant 0 : i32
    %c0_i32_0 = arith.constant 0 : i32
    %c0_i32_1 = arith.constant 0 : i32
    return %c0_i32, %c0_i32_0 : i32, i32
  }
  func.func @transform_6(%arg0: i32) -> (i32, i32, i32) {
    %c0_i32 = arith.constant 0 : i32
    %c0_i32_0 = arith.constant 0 : i32
    %c0_i32_1 = arith.constant 0 : i32
    return %arg0, %c0_i32, %c0_i32_0 : i32, i32, i32
  }
}

</mosaic_0001>

<llo_original>
// kernel: timm_base_forward.1
$region0: #{timm_base_forward.1}
  #allocation0 [shape = 'u32[]', space=smem, size = 0x4, offset = 0x4, fixed_abs, tag = 'smem constant byte address 0x4 - core index']
  #allocation1 [shape = 'u32[144,128]{1,0:T(1,128)}', space=vmem, size = 0x12000, scoped, tag = 'internal scratch']
  %s0 = inlined_call_operand.vmem [shape: bf16[2,324,4], index: 0, kind: input, shape index: {}]
  %s1 = inlined_call_operand.vmem [shape: f32[9,4,128], index: 1, kind: input, shape index: {}]
  %s2 = inlined_call_operand.vmem [shape: f32[1,128], index: 2, kind: input, shape index: {}]
  %s3 = inlined_call_operand.vmem [shape: f32[1,286], index: 3, kind: input, shape index: {}]
  %s4 = inlined_call_operand.vmem [shape: f32[128,128], index: 4, kind: input, shape index: {}]
  %s5 = inlined_call_operand.vmem [shape: f32[1,128], index: 5, kind: input, shape index: {}]
  %s6 = inlined_call_operand.hbm [shape: f32[2,1,128], index: 6, kind: output, shape index: {}]
  %s7 = sld [smem:[#allocation0]]
  $region57: #{timm_base_forward.1} parent=0
    _
  %s9 = ssub.s32 1, %s7
  %s10 = scalar_select 0, %s9, %s7
  $region1: #{timm_base_forward.1} parent=0
    #allocation2 [shape = 'u8[1024]{0}', space=vmem, size = 0x400, scoped, tag = 'output window, operand 0']
    #allocation3 [shape = 's32[2]{0}', space=sflag, size = 0x8, scoped, tag = 'scoped memory for timm_base_forward.1']
    %11 = vsyncpa [#allocation3], 0
    %s12 = scalar_lea.sflag [#allocation3], 1
    %13 = vsyncpa %s12, 0
    loop: start=0, step=1, limit=4
    $region2: #{timm_base_forward.1} parent=1 // loop_pre_header
      _
    $region3: #{timm_base_forward.1} parent=1 // loop_header
      %s15 = sphi 0, %s19
      %p16 = scmp.ge.s32.totalorder %s15, 4
      %s25 = sphi 0, %s27
      %s28 = sphi 0, %s25
      %s29 = sphi 0, %s28
      %s45 = sphi 0, %s29
      %s49 = sphi 0, %s49
      %s51 = sphi 0, %s49
      %s52 = sphi 0, %s51
      %s66 = sphi 0, %s52
      %s70 = sphi 0, %s70
      %s72 = sphi 0, %s70
      %s73 = sphi 0, %s72
      %s87 = sphi 0, %s73
      %s91 = sphi 0, %s91
      %s93 = sphi 0, %s91
      %s94 = sphi 0, %s93
      %s108 = sphi 0, %s94
      %s112 = sphi 0, %s112
      %s114 = sphi 0, %s112
      %s115 = sphi 0, %s114
      %s129 = sphi 0, %s115
      %s133 = sphi 0, %s133
      %s135 = sphi 0, %s133
      %s136 = sphi 0, %s135
      %s150 = sphi 0, %s136
      %s156 = sphi 0, %s158
      %s159 = sphi 0, %s156
      %s160 = sphi 0, %s159
      %s176 = sphi 0, %s160
    $region4: #{timm_base_forward.1} parent=1 // loop_header_branch
      %18 = sbr.rel (%p16) target = $region8
    $region5: #{timm_base_forward.1} parent=1 // loop_body
      %s20 = ssub.s32 %s15, 1
      %s21 = ssub.s32 %s15, 2
      %s22 = sadd.s32 %s15, 1
      %s23 = ssub.s32 %s15, %s22
      %p24 = scmp.eq.s32.totalorder %s23, 0
      %s26 = sadd.s32 %s25, 1
      %s27 = scalar_select %p24, %s25, %s26
      %p30 = pneg %p24
      %p31 = scmp.eq.s32.totalorder %s15, 1
      %p32 = por %p30, %p31
      %p33 = scmp.ne.s32.totalorder %s25, %s28
      %p34 = scmp.eq.s32.totalorder %s15, 0
      %p35 = por %p33, %p34
      %p36 = scmp.ne.s32.totalorder %s25, %s28
      %p37 = scmp.eq.s32.totalorder %s20, 1
      %p38 = por %p36, %p37
      %p39 = scmp.ne.s32.totalorder %s28, %s29
      %p40 = scmp.eq.s32.totalorder %s20, 0
      %p41 = por %p39, %p40
      %p42 = scmp.ne.s32.totalorder %s28, %s29
      %p43 = scmp.eq.s32.totalorder %s21, 1
      %p44 = por %p42, %p43
      %p46 = scmp.ne.s32.totalorder %s29, %s45
      %p47 = scmp.eq.s32.totalorder %s21, 0
      %p48 = por %p46, %p47
      %s50 = sadd.s32 %s49, 1
      %p53 = scmp.eq.s32.totalorder %s15, 1
      %p54 = scmp.ne.s32.totalorder %s49, %s51
      %p55 = scmp.eq.s32.totalorder %s15, 0
      %p56 = por %p54, %p55
      %p57 = scmp.ne.s32.totalorder %s49, %s51
      %p58 = scmp.eq.s32.totalorder %s20, 1
      %p59 = por %p57, %p58
      %p60 = scmp.ne.s32.totalorder %s51, %s52
      %p61 = scmp.eq.s32.totalorder %s20, 0
      %p62 = por %p60, %p61
      %p63 = scmp.ne.s32.totalorder %s51, %s52
      %p64 = scmp.eq.s32.totalorder %s21, 1
      %p65 = por %p63, %p64
      %p67 = scmp.ne.s32.totalorder %s52, %s66
      %p68 = scmp.eq.s32.totalorder %s21, 0
      %p69 = por %p67, %p68
      %s71 = sadd.s32 %s70, 1
      %p74 = scmp.eq.s32.totalorder %s15, 1
      %p75 = scmp.ne.s32.totalorder %s70, %s72
      %p76 = scmp.eq.s32.totalorder %s15, 0
      %p77 = por %p75, %p76
      %p78 = scmp.ne.s32.totalorder %s70, %s72
      %p79 = scmp.eq.s32.totalorder %s20, 1
      %p80 = por %p78, %p79
      %p81 = scmp.ne.s32.totalorder %s72, %s73
      %p82 = scmp.eq.s32.totalorder %s20, 0
      %p83 = por %p81, %p82
      %p84 = scmp.ne.s32.totalorder %s72, %s73
      %p85 = scmp.eq.s32.totalorder %s21, 1
      %p86 = por %p84, %p85
      %p88 = scmp.ne.s32.totalorder %s73, %s87
      %p89 = scmp.eq.s32.totalorder %s21, 0
      %p90 = por %p88, %p89
      %s92 = sadd.s32 %s91, 1
      %p95 = scmp.eq.s32.totalorder %s15, 1
      %p96 = scmp.ne.s32.totalorder %s91, %s93
      %p97 = scmp.eq.s32.totalorder %s15, 0
      %p98 = por %p96, %p97
      %p99 = scmp.ne.s32.totalorder %s91, %s93
      %p100 = scmp.eq.s32.totalorder %s20, 1
      %p101 = por %p99, %p100
      %p102 = scmp.ne.s32.totalorder %s93, %s94
      %p103 = scmp.eq.s32.totalorder %s20, 0
      %p104 = por %p102, %p103
      %p105 = scmp.ne.s32.totalorder %s93, %s94
      %p106 = scmp.eq.s32.totalorder %s21, 1
      %p107 = por %p105, %p106
      %p109 = scmp.ne.s32.totalorder %s94, %s108
      %p110 = scmp.eq.s32.totalorder %s21, 0
      %p111 = por %p109, %p110
      %s113 = sadd.s32 %s112, 1
      %p116 = scmp.eq.s32.totalorder %s15, 1
      %p117 = scmp.ne.s32.totalorder %s112, %s114
      %p118 = scmp.eq.s32.totalorder %s15, 0
      %p119 = por %p117, %p118
      %p120 = scmp.ne.s32.totalorder %s112, %s114
      %p121 = scmp.eq.s32.totalorder %s20, 1
      %p122 = por %p120, %p121
      %p123 = scmp.ne.s32.totalorder %s114, %s115
      %p124 = scmp.eq.s32.totalorder %s20, 0
      %p125 = por %p123, %p124
      %p126 = scmp.ne.s32.totalorder %s114, %s115
      %p127 = scmp.eq.s32.totalorder %s21, 1
      %p128 = por %p126, %p127
      %p130 = scmp.ne.s32.totalorder %s115, %s129
      %p131 = scmp.eq.s32.totalorder %s21, 0
      %p132 = por %p130, %p131
      %s134 = sadd.s32 %s133, 1
      %p137 = scmp.eq.s32.totalorder %s15, 1
      %p138 = scmp.ne.s32.totalorder %s133, %s135
      %p139 = scmp.eq.s32.totalorder %s15, 0
      %p140 = por %p138, %p139
      %p141 = scmp.ne.s32.totalorder %s133, %s135
      %p142 = scmp.eq.s32.totalorder %s20, 1
      %p143 = por %p141, %p142
      %p144 = scmp.ne.s32.totalorder %s135, %s136
      %p145 = scmp.eq.s32.totalorder %s20, 0
      %p146 = por %p144, %p145
      %p147 = scmp.ne.s32.totalorder %s135, %s136
      %p148 = scmp.eq.s32.totalorder %s21, 1
      %p149 = por %p147, %p148
      %p151 = scmp.ne.s32.totalorder %s136, %s150
      %p152 = scmp.eq.s32.totalorder %s21, 0
      %p153 = por %p151, %p152
      %s154 = ssub.s32 %s15, %s22
      %p155 = scmp.eq.s32.totalorder %s154, 0
      %s157 = sadd.s32 %s156, 1
      %s158 = scalar_select %p155, %s156, %s157
      %p161 = pneg %p155
      %p162 = scmp.eq.s32.totalorder %s15, 1
      %p163 = por %p161, %p162
      %p164 = scmp.ne.s32.totalorder %s156, %s159
      %p165 = scmp.eq.s32.totalorder %s15, 0
      %p166 = por %p164, %p165
      %p167 = scmp.ne.s32.totalorder %s156, %s159
      %p168 = scmp.eq.s32.totalorder %s20, 1
      %p169 = por %p167, %p168
      %p170 = scmp.ne.s32.totalorder %s159, %s160
      %p171 = scmp.eq.s32.totalorder %s20, 0
      %p172 = por %p170, %p171
      %p173 = scmp.ne.s32.totalorder %s159, %s160
      %p174 = scmp.eq.s32.totalorder %s21, 1
      %p175 = por %p173, %p174
      %p177 = scmp.ne.s32.totalorder %s160, %s176
      %p178 = scmp.eq.s32.totalorder %s21, 0
      %p179 = por %p177, %p178
      %p180 = scmp.le.s32.totalorder 1, %s15
      %p181 = scmp.lt.s32.totalorder %s15, 3
      %p182 = pnand %p180, %p181
      %p183 = pneg %p182
      // Predicated region
      $region9: #{timm_base_forward.1} parent=5 // pred_check
        _
      $region10: #{timm_base_forward.1} parent=5 // pred_check_branch
        %185 = sbr.rel (%p182) target = $region12
      $region11: #{timm_base_forward.1} parent=5 // pred_region
        %s186 = ssub.s32 %s15, 1
        // Predicated region
        $region13: #{timm_base_forward.1} parent=11 // pred_check
          %p187 = pneg %p62
        $region14: #{timm_base_forward.1} parent=11 // pred_check_branch
          %189 = sbr.rel (%p187) target = $region16
        $region15: #{timm_base_forward.1} parent=11 // pred_region
          _
        $region16: #{timm_base_forward.1} parent=11 // pred_fallthru
          _
        // Predicated region
        $region17: #{timm_base_forward.1} parent=11 // pred_check
          %p190 = pneg %p83
        $region18: #{timm_base_forward.1} parent=11 // pred_check_branch
          %192 = sbr.rel (%p190) target = $region20
        $region19: #{timm_base_forward.1} parent=11 // pred_region
          _
        $region20: #{timm_base_forward.1} parent=11 // pred_fallthru
          _
        // Predicated region
        $region21: #{timm_base_forward.1} parent=11 // pred_check
          %p193 = pneg %p104
        $region22: #{timm_base_forward.1} parent=11 // pred_check_branch
          %195 = sbr.rel (%p193) target = $region24
        $region23: #{timm_base_forward.1} parent=11 // pred_region
          _
        $region24: #{timm_base_forward.1} parent=11 // pred_fallthru
          _
        // Predicated region
        $region25: #{timm_base_forward.1} parent=11 // pred_check
          %p196 = pneg %p125
        $region26: #{timm_base_forward.1} parent=11 // pred_check_branch
          %198 = sbr.rel (%p196) target = $region28
        $region27: #{timm_base_forward.1} parent=11 // pred_region
          _
        $region28: #{timm_base_forward.1} parent=11 // pred_fallthru
          _
        // Predicated region
        $region29: #{timm_base_forward.1} parent=11 // pred_check
          %p199 = pneg %p146
        $region30: #{timm_base_forward.1} parent=11 // pred_check_branch
          %201 = sbr.rel (%p199) target = $region32
        $region31: #{timm_base_forward.1} parent=11 // pred_region
          _
        $region32: #{timm_base_forward.1} parent=11 // pred_fallthru
          _
      $region12: #{timm_base_forward.1} parent=5 // pred_fallthru
        _
      %p202 = scmp.lt.s32.totalorder %s15, 2
      // Predicated region
      $region33: #{timm_base_forward.1} parent=5 // pred_check
        %p203 = pneg %p202
      $region34: #{timm_base_forward.1} parent=5 // pred_check_branch
        %205 = sbr.rel (%p203) target = $region36
      $region35: #{timm_base_forward.1} parent=5 // pred_region
        // Predicated region
        $region37: #{timm_base_forward.1} parent=35 // pred_check
          %p206 = pneg %p35
        $region38: #{timm_base_forward.1} parent=35 // pred_check_branch
          %208 = sbr.rel (%p206) target = $region40
        $region39: #{timm_base_forward.1} parent=35 // pred_region
          %p209 = scmp.lt.s32.totalorder %s15, 1
          %s210 = scalar_select %p209, %s15, 1
          %s211 = smul.addr %s210, 41
          %s212 = smul.addr %s211, 4
          %s213 = scalar_lea.vmem %s0, %s212
        $region40: #{timm_base_forward.1} parent=35 // pred_fallthru
          _
      $region36: #{timm_base_forward.1} parent=5 // pred_fallthru
        _
      %p214 = scmp.le.s32.totalorder 1, %s15
      %p215 = scmp.lt.s32.totalorder %s15, 3
      %p216 = pnand %p214, %p215
      %p217 = pneg %p216
      // Predicated region
      $region41: #{timm_base_forward.1} parent=5 // pred_check
        _
      $region42: #{timm_base_forward.1} parent=5 // pred_check_branch
        %219 = sbr.rel (%p216) target = $region44
      $region43: #{timm_base_forward.1} parent=5 // pred_region
        %s220 = ssub.s32 %s15, 1
        %p221 = scmp.lt.s32.totalorder %s20, 1
        %s222 = scalar_select %p221, %s20, 1
        %s223 = smul.addr %s222, 41
        %s224 = smul.addr %s223, 4
        %s225 = scalar_lea.vmem %s0, %s224
        %p226 = pneg %p41
        %p227 = pneg %p38
        %p228 = pneg %p62
        %p229 = pneg %p59
        %p230 = pneg %p83
        %p231 = pneg %p80
        %p232 = pneg %p104
        %p233 = pneg %p101
        %p234 = pneg %p125
        %p235 = pneg %p122
        %p236 = pneg %p146
        %p237 = pneg %p143
        %p238 = pneg %p172
        %p239 = pneg %p169
        %s240 = sand.u32 %s159, 1
        %s241 = scalar_lea.sflag [#allocation3], %s240
        %s242 = sand.u32 %s159, 1
        %s243 = scalar_lea.vmem [#allocation2], %s242
        %p244 = scmp.lt.s32.totalorder %s20, 1
        %s245 = scalar_select %p244, %s20, 1
        %s246 = smul.addr %s245, 41
        %s247 = smul.addr %s246, 4
        %s248 = scalar_lea.vmem %s0, %s247
        %v249 = vld [vmem:[%s248] sm:$0xf]
        %v250 = vld [vmem:[%s248 + $0x4] sm:$0xf]
        %v251 = vld [vmem:[%s248 + $0x8] sm:$0xf]
        %v252 = vld [vmem:[%s248 + $0xc] sm:$0xf]
        %v253 = vld [vmem:[%s248 + $0x10] sm:$0xf]
        %v254 = vld [vmem:[%s248 + $0x14] sm:$0xf]
        %v255 = vld [vmem:[%s248 + $0x18] sm:$0xf]
        %v256 = vld [vmem:[%s248 + $0x1c] sm:$0xf]
        %v257 = vld [vmem:[%s248 + $0x20] sm:$0xf]
        %v258 = vld [vmem:[%s248 + $0x24] sm:$0xf]
        %v259 = vld [vmem:[%s248 + $0x28] sm:$0xf]
        %v260 = vld [vmem:[%s248 + $0x2c] sm:$0xf]
        %v261 = vld [vmem:[%s248 + $0x30] sm:$0xf]
        %v262 = vld [vmem:[%s248 + $0x34] sm:$0xf]
        %v263 = vld [vmem:[%s248 + $0x38] sm:$0xf]
        %v264 = vld [vmem:[%s248 + $0x3c] sm:$0xf]
        %v265 = vld [vmem:[%s248 + $0x40] sm:$0xf]
        %v266 = vld [vmem:[%s248 + $0x44] sm:$0xf]
        %v267 = vld [vmem:[%s248 + $0x48] sm:$0xf]
        %v268 = vld [vmem:[%s248 + $0x4c] sm:$0xf]
        %v269 = vld [vmem:[%s248 + $0x50] sm:$0xf]
        %v270 = vld [vmem:[%s248 + $0x54] sm:$0xf]
        %v271 = vld [vmem:[%s248 + $0x58] sm:$0xf]
        %v272 = vld [vmem:[%s248 + $0x5c] sm:$0xf]
        %v273 = vld [vmem:[%s248 + $0x60] sm:$0xf]
        %v274 = vld [vmem:[%s248 + $0x64] sm:$0xf]
        %v275 = vld [vmem:[%s248 + $0x68] sm:$0xf]
        %v276 = vld [vmem:[%s248 + $0x6c] sm:$0xf]
        %v277 = vld [vmem:[%s248 + $0x70] sm:$0xf]
        %v278 = vld [vmem:[%s248 + $0x74] sm:$0xf]
        %v279 = vld [vmem:[%s248 + $0x78] sm:$0xf]
        %v280 = vld [vmem:[%s248 + $0x7c] sm:$0xf]
        %v281 = vld [vmem:[%s248 + $0x80] sm:$0xf]
        %v282 = vld [vmem:[%s248 + $0x84] sm:$0xf]
        %v283 = vld [vmem:[%s248 + $0x88] sm:$0xf]
        %v284 = vld [vmem:[%s248 + $0x8c] sm:$0xf]
        %v285 = vld [vmem:[%s248 + $0x90] sm:$0xf]
        %v286 = vld [vmem:[%s248 + $0x94] sm:$0xf]
        %v287 = vld [vmem:[%s248 + $0x98] sm:$0xf]
        %v288 = vld [vmem:[%s248 + $0x9c] sm:$0xf]
        %v289 = vld [vmem:[%s248 + $0xa0] sm:$0x3]
        %v290 = vunpack.c.l.bf16 %v249
        %v291 = vunpack.c.l.bf16 %v250
        %v292 = vunpack.c.l.bf16 %v251
        %v293 = vunpack.c.l.bf16 %v252
        %v294 = vunpack.c.l.bf16 %v253
        %v295 = vunpack.c.l.bf16 %v254
        %v296 = vunpack.c.l.bf16 %v255
        %v297 = vunpack.c.l.bf16 %v256
        %v298 = vunpack.c.l.bf16 %v257
        %v299 = vunpack.c.l.bf16 %v258
        %v300 = vunpack.c.l.bf16 %v259
        %v301 = vunpack.c.l.bf16 %v260
        %v302 = vunpack.c.l.bf16 %v261
        %v303 = vunpack.c.l.bf16 %v262
        %v304 = vunpack.c.l.bf16 %v263
        %v305 = vunpack.c.l.bf16 %v264
        %v306 = vunpack.c.l.bf16 %v265
        %v307 = vunpack.c.l.bf16 %v266
        %v308 = vunpack.c.l.bf16 %v267
        %v309 = vunpack.c.l.bf16 %v268
        %v310 = vunpack.c.l.bf16 %v269
        %v311 = vunpack.c.l.bf16 %v270
        %v312 = vunpack.c.l.bf16 %v271
        %v313 = vunpack.c.l.bf16 %v272
        %v314 = vunpack.c.l.bf16 %v273
        %v315 = vunpack.c.l.bf16 %v274
        %v316 = vunpack.c.l.bf16 %v275
        %v317 = vunpack.c.l.bf16 %v276
        %v318 = vunpack.c.l.bf16 %v277
        %v319 = vunpack.c.l.bf16 %v278
        %v320 = vunpack.c.l.bf16 %v279
        %v321 = vunpack.c.l.bf16 %v280
        %v322 = vunpack.c.l.bf16 %v281
        %v323 = vunpack.c.l.bf16 %v282
        %v324 = vunpack.c.l.bf16 %v283
        %v325 = vunpack.c.l.bf16 %v284
        %v326 = vunpack.c.l.bf16 %v285
        %v327 = vunpack.c.l.bf16 %v286
        %v328 = vunpack.c.l.bf16 %v287
        %v329 = vunpack.c.l.bf16 %v288
        %v330 = vunpack.c.l.bf16 %v289
        %v331 = vld [vmem:[%s1] sm:$0xf]
        %s332 = scalar_lea.vmem %s1, 4
        %v333 = vld [vmem:[%s332] sm:$0xf]
        %vm370 = vcmask 1046528
        %v371 = vrot.slane %v290, 1
        %v372 = vrot.slane %v291, 1
        %v373 = vsel %vm370, %v371, %v372
        %v374 = vrot.slane %v292, 1
        %v375 = vsel %vm370, %v372, %v374
        %v376 = vrot.slane %v293, 1
        %v377 = vsel %vm370, %v374, %v376
        %v378 = vrot.slane %v294, 1
        %v379 = vsel %vm370, %v376, %v378
        %v380 = vrot.slane %v295, 1
        %v381 = vsel %vm370, %v378, %v380
        %v382 = vrot.slane %v296, 1
        %v383 = vsel %vm370, %v380, %v382
        %v384 = vrot.slane %v297, 1
        %v385 = vsel %vm370, %v382, %v384
        %v386 = vrot.slane %v298, 1
        %v387 = vsel %vm370, %v384, %v386
        %v388 = vrot.slane %v299, 1
        %v389 = vsel %vm370, %v386, %v388
        %v390 = vrot.slane %v300, 1
        %v391 = vsel %vm370, %v388, %v390
        %v392 = vrot.slane %v301, 1
        %v393 = vsel %vm370, %v390, %v392
        %v394 = vrot.slane %v302, 1
        %v395 = vsel %vm370, %v392, %v394
        %v396 = vrot.slane %v303, 1
        %v397 = vsel %vm370, %v394, %v396
        %v398 = vrot.slane %v304, 1
        %v399 = vsel %vm370, %v396, %v398
        %v400 = vrot.slane %v305, 1
        %v401 = vsel %vm370, %v398, %v400
        %v402 = vrot.slane %v306, 1
        %v403 = vsel %vm370, %v400, %v402
        %v404 = vrot.slane %v307, 1
        %v405 = vsel %vm370, %v402, %v404
        %v406 = vrot.slane %v308, 1
        %v407 = vsel %vm370, %v404, %v406
        %v408 = vrot.slane %v309, 1
        %v409 = vsel %vm370, %v406, %v408
        %v410 = vrot.slane %v310, 1
        %v411 = vsel %vm370, %v408, %v410
        %v412 = vrot.slane %v311, 1
        %v413 = vsel %vm370, %v410, %v412
        %v414 = vrot.slane %v312, 1
        %v415 = vsel %vm370, %v412, %v414
        %v416 = vrot.slane %v313, 1
        %v417 = vsel %vm370, %v414, %v416
        %v418 = vrot.slane %v314, 1
        %v419 = vsel %vm370, %v416, %v418
        %v420 = vrot.slane %v315, 1
        %v421 = vsel %vm370, %v418, %v420
        %v422 = vrot.slane %v316, 1
        %v423 = vsel %vm370, %v420, %v422
        %v424 = vrot.slane %v317, 1
        %v425 = vsel %vm370, %v422, %v424
        %v426 = vrot.slane %v318, 1
        %v427 = vsel %vm370, %v424, %v426
        %v428 = vrot.slane %v319, 1
        %v429 = vsel %vm370, %v426, %v428
        %v430 = vrot.slane %v320, 1
        %v431 = vsel %vm370, %v428, %v430
        %v432 = vrot.slane %v321, 1
        %v433 = vsel %vm370, %v430, %v432
        %v434 = vrot.slane %v322, 1
        %v435 = vsel %vm370, %v432, %v434
        %v436 = vrot.slane %v323, 1
        %v437 = vsel %vm370, %v434, %v436
        %v438 = vrot.slane %v324, 1
        %v439 = vsel %vm370, %v436, %v438
        %v440 = vrot.slane %v325, 1
        %v441 = vsel %vm370, %v438, %v440
        %vm442 = vcmask 31744
        %v443 = vsel %vm442, %v373, 0
        %v445 = vsel %vm442, %v375, 0
        %v447 = vsel %vm442, %v377, 0
        %v449 = vsel %vm442, %v379, 0
        %v451 = vsel %vm442, %v381, 0
        %v453 = vsel %vm442, %v383, 0
        %v455 = vsel %vm442, %v385, 0
        %v457 = vsel %vm442, %v387, 0
        %v459 = vsel %vm442, %v389, 0
        %v461 = vsel %vm442, %v391, 0
        %v463 = vsel %vm442, %v393, 0
        %v465 = vsel %vm442, %v395, 0
        %v467 = vsel %vm442, %v397, 0
        %v469 = vsel %vm442, %v399, 0
        %v471 = vsel %vm442, %v401, 0
        %v473 = vsel %vm442, %v403, 0
        %v475 = vsel %vm442, %v405, 0
        %v477 = vsel %vm442, %v407, 0
        %v479 = vsel %vm442, %v409, 0
        %v481 = vsel %vm442, %v411, 0
        %v483 = vsel %vm442, %v413, 0
        %v485 = vsel %vm442, %v415, 0
        %v487 = vsel %vm442, %v417, 0
        %v489 = vsel %vm442, %v419, 0
        %v491 = vsel %vm442, %v421, 0
        %v493 = vsel %vm442, %v423, 0
        %v495 = vsel %vm442, %v425, 0
        %v497 = vsel %vm442, %v427, 0
        %v499 = vsel %vm442, %v429, 0
        %v501 = vsel %vm442, %v431, 0
        %v503 = vsel %vm442, %v433, 0
        %v505 = vsel %vm442, %v435, 0
        %v507 = vsel %vm442, %v437, 0
        %v509 = vsel %vm442, %v439, 0
        %v511 = vsel %vm442, %v441, 0
        %v513 = vsel %vm442, %v440, 0
        %vm515 = vcmask 1043456
        %v517 = vsel %vm515, %v333, 0
        %519 = vmatprep.subr.mxu0 0.0
        %520 = vmatpush1.msra.mxu0 %v517
        %521 = vmatprep.subr.mxu0 0.0
        %522 = vmatpush1.msra.mxu0 0.0
        %523 = vmatprep.subr.mxu0 0.0
        %524 = vmatpush1.msra.mxu0 0.0
        %525 = vmatprep.subr.mxu0 0.0
        %526 = vmatpush1.msra.mxu0 0.0
        %527 = vmatprep.subr.mxu0 0.0
        %528 = vmatpush1.msra.mxu0 0.0
        %529 = vmatprep.subr.mxu0 0.0
        %530 = vmatpush1.msra.mxu0 0.0
        %531 = vmatprep.subr.mxu0 0.0
        %532 = vmatpush1.msra.mxu0 0.0
        %533 = vmatprep.subr.mxu0 0.0
        %534 = vmatpush1.msra.mxu0 0.0
        %535 = vmatprep.subr.mxu0 0.0
        %536 = vmatpush1.msra.mxu0 0.0
        %537 = vmatprep.subr.mxu0 0.0
        %538 = vmatpush1.msra.mxu0 0.0
        %539 = vmatprep.subr.mxu0 0.0
        %540 = vmatpush1.msra.mxu0 0.0
        %541 = vmatprep.subr.mxu0 0.0
        %542 = vmatpush1.msra.mxu0 0.0
        %543 = vmatprep.subr.mxu0 0.0
        %544 = vmatpush1.msra.mxu0 0.0
        %545 = vmatprep.subr.mxu0 0.0
        %546 = vmatpush1.msra.mxu0 0.0
        %547 = vmatprep.subr.mxu0 0.0
        %548 = vmatpush1.msra.mxu0 0.0
        %549 = vmatprep.subr.mxu0 0.0
        %550 = vmatpush1.msra.mxu0 0.0
        %551 = vmatprep.subr.mxu0 0.0
        %552 = vmatpush1.msra.mxu0 0.0
        %553 = vmatprep.subr.mxu0 0.0
        %554 = vmatpush1.msra.mxu0 0.0
        %555 = vmatprep.subr.mxu0 0.0
        %556 = vmatpush1.msra.mxu0 0.0
        %557 = vmatprep.subr.mxu0 0.0
        %558 = vmatpush1.msra.mxu0 0.0
        %559 = vmatprep.subr.mxu0 0.0
        %560 = vmatpush1.msra.mxu0 0.0
        %561 = vmatprep.subr.mxu0 0.0
        %562 = vmatpush1.msra.mxu0 0.0
        %563 = vmatprep.subr.mxu0 0.0
        %564 = vmatpush1.msra.mxu0 0.0
        %565 = vmatprep.subr.mxu0 0.0
        %566 = vmatpush1.msra.mxu0 0.0
        %567 = vmatprep.subr.mxu0 0.0
        %568 = vmatpush1.msra.mxu0 0.0
        %569 = vmatprep.subr.mxu0 0.0
        %570 = vmatpush1.msra.mxu0 0.0
        %571 = vmatprep.subr.mxu0 0.0
        %572 = vmatpush1.msra.mxu0 0.0
        %573 = vmatprep.subr.mxu0 0.0
        %574 = vmatpush1.msra.mxu0 0.0
        %575 = vmatprep.subr.mxu0 0.0
        %576 = vmatpush1.msra.mxu0 0.0
        %577 = vmatprep.subr.mxu0 0.0
        %578 = vmatpush1.msra.mxu0 0.0
        %579 = vmatprep.subr.mxu0 0.0
        %580 = vmatpush1.msra.mxu0 0.0
        %581 = vmatprep.subr.mxu0 0.0
        %582 = vmatpush1.msra.mxu0 0.0
        %583 = vmatprep.mubr.f32.mxu0 0.0
        %584 = vmatmul.mubr.f32.gmra.mrb[0].mxu0 %v443
        %v585 = vpop.f32.mrb[0].mxu0
        %v586 = vadd.f32 0.0, %v585
        %v587 = vpop.f32.mrb[0].mxu0
        %588 = vmatprep.mubr.f32.mxu0 0.0
        %589 = vmatmul.mubr.f32.gmra.mrb[0].mxu0 %v445
        %v590 = vpop.f32.mrb[0].mxu0
        %v591 = vadd.f32 0.0, %v590
        %v592 = vpop.f32.mrb[0].mxu0
        %593 = vmatprep.mubr.f32.mxu0 0.0
        %594 = vmatmul.mubr.f32.gmra.mrb[0].mxu0 %v447
        %v595 = vpop.f32.mrb[0].mxu0
        %v596 = vadd.f32 0.0, %v595
        %v597 = vpop.f32.mrb[0].mxu0
        %598 = vmatprep.mubr.f32.mxu0 0.0
        %599 = vmatmul.mubr.f32.gmra.mrb[0].mxu0 %v449
        %v600 = vpop.f32.mrb[0].mxu0
        %v601 = vadd.f32 0.0, %v600
        %v602 = vpop.f32.mrb[0].mxu0
        %603 = vmatprep.mubr.f32.mxu0 0.0
        %604 = vmatmul.mubr.f32.gmra.mrb[0].mxu0 %v451
        %v605 = vpop.f32.mrb[0].mxu0
        %v606 = vadd.f32 0.0, %v605
        %v607 = vpop.f32.mrb[0].mxu0
        %608 = vmatprep.mubr.f32.mxu0 0.0
        %609 = vmatmul.mubr.f32.gmra.mrb[0].mxu0 %v453
        %v610 = vpop.f32.mrb[0].mxu0
        %v611 = vadd.f32 0.0, %v610
        %v612 = vpop.f32.mrb[0].mxu0
        %613 = vmatprep.mubr.f32.mxu0 0.0
        %614 = vmatmul.mubr.f32.gmra.mrb[0].mxu0 %v455
        %v615 = vpop.f32.mrb[0].mxu0
        %v616 = vadd.f32 0.0, %v615
        %v617 = vpop.f32.mrb[0].mxu0
        %618 = vmatprep.mubr.f32.mxu0 0.0
        %619 = vmatmul.mubr.f32.gmra.mrb[0].mxu0 %v457
        %v620 = vpop.f32.mrb[0].mxu0
        %v621 = vadd.f32 0.0, %v620
        %v622 = vpop.f32.mrb[0].mxu0
        %623 = vmatprep.mubr.f32.mxu0 0.0
        %624 = vmatmul.mubr.f32.gmra.mrb[0].mxu0 %v459
        %v625 = vpop.f32.mrb[0].mxu0
        %v626 = vadd.f32 0.0, %v625
        %v627 = vpop.f32.mrb[0].mxu0
        %628 = vmatprep.mubr.f32.mxu0 0.0
        %629 = vmatmul.mubr.f32.gmra.mrb[0].mxu0 %v461
        %v630 = vpop.f32.mrb[0].mxu0
        %v631 = vadd.f32 0.0, %v630
        %v632 = vpop.f32.mrb[0].mxu0
        %633 = vmatprep.mubr.f32.mxu0 0.0
        %634 = vmatmul.mubr.f32.gmra.mrb[0].mxu0 %v463
        %v635 = vpop.f32.mrb[0].mxu0
        %v636 = vadd.f32 0.0, %v635
        %v637 = vpop.f32.mrb[0].mxu0
        %638 = vmatprep.mubr.f32.mxu0 0.0
        %639 = vmatmul.mubr.f32.gmra.mrb[0].mxu0 %v465
        %v640 = vpop.f32.mrb[0].mxu0
        %v641 = vadd.f32 0.0, %v640
        %v642 = vpop.f32.mrb[0].mxu0
        %643 = vmatprep.mubr.f32.mxu0 0.0
        %644 = vmatmul.mubr.f32.gmra.mrb[0].mxu0 %v467
        %v645 = vpop.f32.mrb[0].mxu0
        %v646 = vadd.f32 0.0, %v645
        %v647 = vpop.f32.mrb[0].mxu0
        %648 = vmatprep.mubr.f32.mxu0 0.0
        %649 = vmatmul.mubr.f32.gmra.mrb[0].mxu0 %v469
        %v650 = vpop.f32.mrb[0].mxu0
        %v651 = vadd.f32 0.0, %v650
        %v652 = vpop.f32.mrb[0].mxu0
        %653 = vmatprep.mubr.f32.mxu0 0.0
        %654 = vmatmul.mubr.f32.gmra.mrb[0].mxu0 %v471
        %v655 = vpop.f32.mrb[0].mxu0
        %v656 = vadd.f32 0.0, %v655
        %v657 = vpop.f32.mrb[0].mxu0
        %658 = vmatprep.mubr.f32.mxu0 0.0
        %659 = vmatmul.mubr.f32.gmra.mrb[0].mxu0 %v473
        %v660 = vpop.f32.mrb[0].mxu0
        %v661 = vadd.f32 0.0, %v660
        %v662 = vpop.f32.mrb[0].mxu0
        %663 = vmatprep.mubr.f32.mxu0 0.0
        %664 = vmatmul.mubr.f32.gmra.mrb[0].mxu0 %v475
        %v665 = vpop.f32.mrb[0].mxu0
        %v666 = vadd.f32 0.0, %v665
        %v667 = vpop.f32.mrb[0].mxu0
        %668 = vmatprep.mubr.f32.mxu0 0.0
        %669 = vmatmul.mubr.f32.gmra.mrb[0].mxu0 %v477
        %v670 = vpop.f32.mrb[0].mxu0
        %v671 = vadd.f32 0.0, %v670
        %v672 = vpop.f32.mrb[0].mxu0
        %673 = vmatprep.mubr.f32.mxu0 0.0
        %674 = vmatmul.mubr.f32.gmra.mrb[0].mxu0 %v479
        %v675 = vpop.f32.mrb[0].mxu0
        %v676 = vadd.f32 0.0, %v675
        %v677 = vpop.f32.mrb[0].mxu0
        %678 = vmatprep.mubr.f32.mxu0 0.0
        %679 = vmatmul.mubr.f32.gmra.mrb[0].mxu0 %v481
        %v680 = vpop.f32.mrb[0].mxu0
        %v681 = vadd.f32 0.0, %v680
        %v682 = vpop.f32.mrb[0].mxu0
        %683 = vmatprep.mubr.f32.mxu0 0.0
        %684 = vmatmul.mubr.f32.gmra.mrb[0].mxu0 %v483
        %v685 = vpop.f32.mrb[0].mxu0
        %v686 = vadd.f32 0.0, %v685
        %v687 = vpop.f32.mrb[0].mxu0
        %688 = vmatprep.mubr.f32.mxu0 0.0
        %689 = vmatmul.mubr.f32.gmra.mrb[0].mxu0 %v485
        %v690 = vpop.f32.mrb[0].mxu0
        %v691 = vadd.f32 0.0, %v690
        %v692 = vpop.f32.mrb[0].mxu0
        %693 = vmatprep.mubr.f32.mxu0 0.0
        %694 = vmatmul.mubr.f32.gmra.mrb[0].mxu0 %v487
        %v695 = vpop.f32.mrb[0].mxu0
        %v696 = vadd.f32 0.0, %v695
        %v697 = vpop.f32.mrb[0].mxu0
        %698 = vmatprep.mubr.f32.mxu0 0.0
        %699 = vmatmul.mubr.f32.gmra.mrb[0].mxu0 %v489
        %v700 = vpop.f32.mrb[0].mxu0
        %v701 = vadd.f32 0.0, %v700
        %v702 = vpop.f32.mrb[0].mxu0
        %703 = vmatprep.mubr.f32.mxu0 0.0
        %704 = vmatmul.mubr.f32.gmra.mrb[0].mxu0 %v491
        %v705 = vpop.f32.mrb[0].mxu0
        %v706 = vadd.f32 0.0, %v705
        %v707 = vpop.f32.mrb[0].mxu0
        %708 = vmatprep.mubr.f32.mxu0 0.0
        %709 = vmatmul.mubr.f32.gmra.mrb[0].mxu0 %v493
        %v710 = vpop.f32.mrb[0].mxu0
        %v711 = vadd.f32 0.0, %v710
        %v712 = vpop.f32.mrb[0].mxu0
        %713 = vmatprep.mubr.f32.mxu0 0.0
        %714 = vmatmul.mubr.f32.gmra.mrb[0].mxu0 %v495
        %v715 = vpop.f32.mrb[0].mxu0
        %v716 = vadd.f32 0.0, %v715
        %v717 = vpop.f32.mrb[0].mxu0
        %718 = vmatprep.mubr.f32.mxu0 0.0
        %719 = vmatmul.mubr.f32.gmra.mrb[0].mxu0 %v497
        %v720 = vpop.f32.mrb[0].mxu0
        %v721 = vadd.f32 0.0, %v720
        %v722 = vpop.f32.mrb[0].mxu0
        %723 = vmatprep.mubr.f32.mxu0 0.0
        %724 = vmatmul.mubr.f32.gmra.mrb[0].mxu0 %v499
        %v725 = vpop.f32.mrb[0].mxu0
        %v726 = vadd.f32 0.0, %v725
        %v727 = vpop.f32.mrb[0].mxu0
        %728 = vmatprep.mubr.f32.mxu0 0.0
        %729 = vmatmul.mubr.f32.gmra.mrb[0].mxu0 %v501
        %v730 = vpop.f32.mrb[0].mxu0
        %v731 = vadd.f32 0.0, %v730
        %v732 = vpop.f32.mrb[0].mxu0
        %733 = vmatprep.mubr.f32.mxu0 0.0
        %734 = vmatmul.mubr.f32.gmra.mrb[0].mxu0 %v503
        %v735 = vpop.f32.mrb[0].mxu0
        %v736 = vadd.f32 0.0, %v735
        %v737 = vpop.f32.mrb[0].mxu0
        %738 = vmatprep.mubr.f32.mxu0 0.0
        %739 = vmatmul.mubr.f32.gmra.mrb[0].mxu0 %v505
        %v740 = vpop.f32.mrb[0].mxu0
        %v741 = vadd.f32 0.0, %v740
        %v742 = vpop.f32.mrb[0].mxu0
        %743 = vmatprep.mubr.f32.mxu0 0.0
        %744 = vmatmul.mubr.f32.gmra.mrb[0].mxu0 %v507
        %v745 = vpop.f32.mrb[0].mxu0
        %v746 = vadd.f32 0.0, %v745
        %v747 = vpop.f32.mrb[0].mxu0
        %748 = vmatprep.mubr.f32.mxu0 0.0
        %749 = vmatmul.mubr.f32.gmra.mrb[0].mxu0 %v509
        %v750 = vpop.f32.mrb[0].mxu0
        %v751 = vadd.f32 0.0, %v750
        %v752 = vpop.f32.mrb[0].mxu0
        %753 = vmatprep.mubr.f32.mxu0 0.0
        %754 = vmatmul.mubr.f32.gmra.mrb[0].mxu0 %v511
        %v755 = vpop.f32.mrb[0].mxu0
        %v756 = vadd.f32 0.0, %v755
        %v757 = vpop.f32.mrb[0].mxu0
        %758 = vmatprep.mubr.f32.mxu0 0.0
        %759 = vmatmul.mubr.f32.gmra.mrb[0].mxu0 %v513
        %v760 = vpop.f32.mrb[0].mxu0
        %v761 = vadd.f32 0.0, %v760
        %v762 = vpop.f32.mrb[0].mxu0
        %763 = vdwg.mxu0
        %v764 = vsel %vm442, %v290, 0
        %v766 = vsel %vm442, %v291, 0
        %v768 = vsel %vm442, %v292, 0
        %v770 = vsel %vm442, %v293, 0
        %v772 = vsel %vm442, %v294, 0
        %v774 = vsel %vm442, %v295, 0
        %v776 = vsel %vm442, %v296, 0
        %v778 = vsel %vm442, %v297, 0
        %v780 = vsel %vm442, %v298, 0
        %v782 = vsel %vm442, %v299, 0
        %v784 = vsel %vm442, %v300, 0
        %v786 = vsel %vm442, %v301, 0
        %v788 = vsel %vm442, %v302, 0
        %v790 = vsel %vm442, %v303, 0
        %v792 = vsel %vm442, %v304, 0
        %v794 = vsel %vm442, %v305, 0
        %v796 = vsel %vm442, %v306, 0
        %v798 = vsel %vm442, %v307, 0
        %v800 = vsel %vm442, %v308, 0
        %v802 = vsel %vm442, %v309, 0
        %v804 = vsel %vm442, %v310, 0
        %v806 = vsel %vm442, %v311, 0
        %v808 = vsel %vm442, %v312, 0
        %v810 = vsel %vm442, %v313, 0
        %v812 = vsel %vm442, %v314, 0
        %v814 = vsel %vm442, %v315, 0
        %v816 = vsel %vm442, %v316, 0
        %v818 = vsel %vm442, %v317, 0
        %v820 = vsel %vm442, %v318, 0
        %v822 = vsel %vm442, %v319, 0
        %v824 = vsel %vm442, %v320, 0
        %v826 = vsel %vm442, %v321, 0
        %v828 = vsel %vm442, %v322, 0
        %v830 = vsel %vm442, %v323, 0
        %v832 = vsel %vm442, %v324, 0
        %v834 = vsel %vm442, %v325, 0
        %v837 = vsel %vm515, %v331, 0
        %839 = vmatprep.subr.mxu0 0.0
        %840 = vmatpush1.msra.mxu0 %v837
        %841 = vmatprep.subr.mxu0 0.0
        %842 = vmatpush1.msra.mxu0 0.0
        %843 = vmatprep.subr.mxu0 0.0
        %844 = vmatpush1.msra.mxu0 0.0
        %845 = vmatprep.subr.mxu0 0.0
        %846 = vmatpush1.msra.mxu0 0.0
        %847 = vmatprep.subr.mxu0 0.0
        %848 = vmatpush1.msra.mxu0 0.0
        %849 = vmatprep.subr.mxu0 0.0
        %850 = vmatpush1.msra.mxu0 0.0
        %851 = vmatprep.subr.mxu0 0.0
        %852 = vmatpush1.msra.mxu0 0.0
        %853 = vmatprep.subr.mxu0 0.0
        %854 = vmatpush1.msra.mxu0 0.0
        %855 = vmatprep.subr.mxu0 0.0
        %856 = vmatpush1.msra.mxu0 0.0
        %857 = vmatprep.subr.mxu0 0.0
        %858 = vmatpush1.msra.mxu0 0.0
        %859 = vmatprep.subr.mxu0 0.0
        %860 = vmatpush1.msra.mxu0 0.0
        %861 = vmatprep.subr.mxu0 0.0
        %862 = vmatpush1.msra.mxu0 0.0
        %863 = vmatprep.subr.mxu0 0.0
        %864 = vmatpush1.msra.mxu0 0.0
        %865 = vmatprep.subr.mxu0 0.0
        %866 = vmatpush1.msra.mxu0 0.0
        %867 = vmatprep.subr.mxu0 0.0
        %868 = vmatpush1.msra.mxu0 0.0
        %869 = vmatprep.subr.mxu0 0.0
        %870 = vmatpush1.msra.mxu0 0.0
        %871 = vmatprep.subr.mxu0 0.0
        %872 = vmatpush1.msra.mxu0 0.0
        %873 = vmatprep.subr.mxu0 0.0
        %874 = vmatpush1.msra.mxu0 0.0
        %875 = vmatprep.subr.mxu0 0.0
        %876 = vmatpush1.msra.mxu0 0.0
        %877 = vmatprep.subr.mxu0 0.0
        %878 = vmatpush1.msra.mxu0 0.0
        %879 = vmatprep.subr.mxu0 0.0
        %880 = vmatpush1.msra.mxu0 0.0
        %881 = vmatprep.subr.mxu0 0.0
        %882 = vmatpush1.msra.mxu0 0.0
        %883 = vmatprep.subr.mxu0 0.0
        %884 = vmatpush1.msra.mxu0 0.0
        %885 = vmatprep.subr.mxu0 0.0
        %886 = vmatpush1.msra.mxu0 0.0
        %887 = vmatprep.subr.mxu0 0.0
        %888 = vmatpush1.msra.mxu0 0.0
        %889 = vmatprep.subr.mxu0 0.0
        %890 = vmatpush1.msra.mxu0 0.0
        %891 = vmatprep.subr.mxu0 0.0
        %892 = vmatpush1.msra.mxu0 0.0
        %893 = vmatprep.subr.mxu0 0.0
        %894 = vmatpush1.msra.mxu0 0.0
        %895 = vmatprep.subr.mxu0 0.0
        %896 = vmatpush1.msra.mxu0 0.0
        %897 = vmatprep.subr.mxu0 0.0
        %898 = vmatpush1.msra.mxu0 0.0
        %899 = vmatprep.subr.mxu0 0.0
        %900 = vmatpush1.msra.mxu0 0.0
        %901 = vmatprep.subr.mxu0 0.0
        %902 = vmatpush1.msra.mxu0 0.0
        %903 = vmatprep.mubr.f32.mxu0 0.0
        %904 = vmatmul.mubr.f32.gmra.mrb[0].mxu0 %v764
        %v905 = vpop.f32.mrb[0].mxu0
        %v906 = vadd.f32 %v586, %v905
        %v907 = vpop.f32.mrb[0].mxu0
        %908 = vmatprep.mubr.f32.mxu0 0.0
        %909 = vmatmul.mubr.f32.gmra.mrb[0].mxu0 %v766
        %v910 = vpop.f32.mrb[0].mxu0
        %v911 = vadd.f32 %v591, %v910
        %v912 = vpop.f32.mrb[0].mxu0
        %913 = vmatprep.mubr.f32.mxu0 0.0
        %914 = vmatmul.mubr.f32.gmra.mrb[0].mxu0 %v768
        %v915 = vpop.f32.mrb[0].mxu0
        %v916 = vadd.f32 %v596, %v915
        %v917 = vpop.f32.mrb[0].mxu0
        %918 = vmatprep.mubr.f32.mxu0 0.0
        %919 = vmatmul.mubr.f32.gmra.mrb[0].mxu0 %v770
        %v920 = vpop.f32.mrb[0].mxu0
        %v921 = vadd.f32 %v601, %v920
        %v922 = vpop.f32.mrb[0].mxu0
        %923 = vmatprep.mubr.f32.mxu0 0.0
        %924 = vmatmul.mubr.f32.gmra.mrb[0].mxu0 %v772
        %v925 = vpop.f32.mrb[0].mxu0
        %v926 = vadd.f32 %v606, %v925
        %v927 = vpop.f32.mrb[0].mxu0
        %928 = vmatprep.mubr.f32.mxu0 0.0
        %929 = vmatmul.mubr.f32.gmra.mrb[0].mxu0 %v774
        %v930 = vpop.f32.mrb[0].mxu0
        %v931 = vadd.f32 %v611, %v930
        %v932 = vpop.f32.mrb[0].mxu0
        %933 = vmatprep.mubr.f32.mxu0 0.0
        %934 = vmatmul.mubr.f32.gmra.mrb[0].mxu0 %v776
        %v935 = vpop.f32.mrb[0].mxu0
        %v936 = vadd.f32 %v616, %v935
        %v937 = vpop.f32.mrb[0].mxu0
        %938 = vmatprep.mubr.f32.mxu0 0.0
        %939 = vmatmul.mubr.f32.gmra.mrb[0].mxu0 %v778
        %v940 = vpop.f32.mrb[0].mxu0
        %v941 = vadd.f32 %v621, %v940
        %v942 = vpop.f32.mrb[0].mxu0
        %943 = vmatprep.mubr.f32.mxu0 0.0
        %944 = vmatmul.mubr.f32.gmra.mrb[0].mxu0 %v780
        %v945 = vpop.f32.mrb[0].mxu0
        %v946 = vadd.f32 %v626, %v945
        %v947 = vpop.f32.mrb[0].mxu0
        %948 = vmatprep.mubr.f32.mxu0 0.0
        %949 = vmatmul.mubr.f32.gmra.mrb[0].mxu0 %v782
        %v950 = vpop.f32.mrb[0].mxu0
        %v951 = vadd.f32 %v631, %v950
        %v952 = vpop.f32.mrb[0].mxu0
        %953 = vmatprep.mubr.f32.mxu0 0.0
        %954 = vmatmul.mubr.f32.gmra.mrb[0].mxu0 %v784
        %v955 = vpop.f32.mrb[0].mxu0
        %v956 = vadd.f32 %v636, %v955
        %v957 = vpop.f32.mrb[0].mxu0
        %958 = vmatprep.mubr.f32.mxu0 0.0
        %959 = vmatmul.mubr.f32.gmra.mrb[0].mxu0 %v786
        %v960 = vpop.f32.mrb[0].mxu0
        %v961 = vadd.f32 %v641, %v960
        %v962 = vpop.f32.mrb[0].mxu0
        %963 = vmatprep.mubr.f32.mxu0 0.0
        %964 = vmatmul.mubr.f32.gmra.mrb[0].mxu0 %v788
        %v965 = vpop.f32.mrb[0].mxu0
        %v966 = vadd.f32 %v646, %v965
        %v967 = vpop.f32.mrb[0].mxu0
        %968 = vmatprep.mubr.f32.mxu0 0.0
        %969 = vmatmul.mubr.f32.gmra.mrb[0].mxu0 %v790
        %v970 = vpop.f32.mrb[0].mxu0
        %v971 = vadd.f32 %v651, %v970
        %v972 = vpop.f32.mrb[0].mxu0
        %973 = vmatprep.mubr.f32.mxu0 0.0
        %974 = vmatmul.mubr.f32.gmra.mrb[0].mxu0 %v792
        %v975 = vpop.f32.mrb[0].mxu0
        %v976 = vadd.f32 %v656, %v975
        %v977 = vpop.f32.mrb[0].mxu0
        %978 = vmatprep.mubr.f32.mxu0 0.0
        %979 = vmatmul.mubr.f32.gmra.mrb[0].mxu0 %v794
        %v980 = vpop.f32.mrb[0].mxu0
        %v981 = vadd.f32 %v661, %v980
        %v982 = vpop.f32.mrb[0].mxu0
        %983 = vmatprep.mubr.f32.mxu0 0.0
        %984 = vmatmul.mubr.f32.gmra.mrb[0].mxu0 %v796
        %v985 = vpop.f32.mrb[0].mxu0
        %v986 = vadd.f32 %v666, %v985
        %v987 = vpop.f32.mrb[0].mxu0
        %988 = vmatprep.mubr.f32.mxu0 0.0
        %989 = vmatmul.mubr.f32.gmra.mrb[0].mxu0 %v798
        %v990 = vpop.f32.mrb[0].mxu0
        %v991 = vadd.f32 %v671, %v990
        %v992 = vpop.f32.mrb[0].mxu0
        %993 = vmatprep.mubr.f32.mxu0 0.0
        %994 = vmatmul.mubr.f32.gmra.mrb[0].mxu0 %v800
        %v995 = vpop.f32.mrb[0].mxu0
        %v996 = vadd.f32 %v676, %v995
        %v997 = vpop.f32.mrb[0].mxu0
        %998 = vmatprep.mubr.f32.mxu0 0.0
        %999 = vmatmul.mubr.f32.gmra.mrb[0].mxu0 %v802
        %v1000 = vpop.f32.mrb[0].mxu0
        %v1001 = vadd.f32 %v681, %v1000
        %v1002 = vpop.f32.mrb[0].mxu0
        %1003 = vmatprep.mubr.f32.mxu0 0.0
        %1004 = vmatmul.mubr.f32.gmra.mrb[0].mxu0 %v804
        %v1005 = vpop.f32.mrb[0].mxu0
        %v1006 = vadd.f32 %v686, %v1005
        %v1007 = vpop.f32.mrb[0].mxu0
        %1008 = vmatprep.mubr.f32.mxu0 0.0
        %1009 = vmatmul.mubr.f32.gmra.mrb[0].mxu0 %v806
        %v1010 = vpop.f32.mrb[0].mxu0
        %v1011 = vadd.f32 %v691, %v1010
        %v1012 = vpop.f32.mrb[0].mxu0
        %1013 = vmatprep.mubr.f32.mxu0 0.0
        %1014 = vmatmul.mubr.f32.gmra.mrb[0].mxu0 %v808
        %v1015 = vpop.f32.mrb[0].mxu0
        %v1016 = vadd.f32 %v696, %v1015
        %v1017 = vpop.f32.mrb[0].mxu0
        %1018 = vmatprep.mubr.f32.mxu0 0.0
        %1019 = vmatmul.mubr.f32.gmra.mrb[0].mxu0 %v810
        %v1020 = vpop.f32.mrb[0].mxu0
        %v1021 = vadd.f32 %v701, %v1020
        %v1022 = vpop.f32.mrb[0].mxu0
        %1023 = vmatprep.mubr.f32.mxu0 0.0
        %1024 = vmatmul.mubr.f32.gmra.mrb[0].mxu0 %v812
        %v1025 = vpop.f32.mrb[0].mxu0
        %v1026 = vadd.f32 %v706, %v1025
        %v1027 = vpop.f32.mrb[0].mxu0
        %1028 = vmatprep.mubr.f32.mxu0 0.0
        %1029 = vmatmul.mubr.f32.gmra.mrb[0].mxu0 %v814
        %v1030 = vpop.f32.mrb[0].mxu0
        %v1031 = vadd.f32 %v711, %v1030
        %v1032 = vpop.f32.mrb[0].mxu0
        %1033 = vmatprep.mubr.f32.mxu0 0.0
        %1034 = vmatmul.mubr.f32.gmra.mrb[0].mxu0 %v816
        %v1035 = vpop.f32.mrb[0].mxu0
        %v1036 = vadd.f32 %v716, %v1035
        %v1037 = vpop.f32.mrb[0].mxu0
        %1038 = vmatprep.mubr.f32.mxu0 0.0
        %1039 = vmatmul.mubr.f32.gmra.mrb[0].mxu0 %v818
        %v1040 = vpop.f32.mrb[0].mxu0
        %v1041 = vadd.f32 %v721, %v1040
        %v1042 = vpop.f32.mrb[0].mxu0
        %1043 = vmatprep.mubr.f32.mxu0 0.0
        %1044 = vmatmul.mubr.f32.gmra.mrb[0].mxu0 %v820
        %v1045 = vpop.f32.mrb[0].mxu0
        %v1046 = vadd.f32 %v726, %v1045
        %v1047 = vpop.f32.mrb[0].mxu0
        %1048 = vmatprep.mubr.f32.mxu0 0.0
        %1049 = vmatmul.mubr.f32.gmra.mrb[0].mxu0 %v822
        %v1050 = vpop.f32.mrb[0].mxu0
        %v1051 = vadd.f32 %v731, %v1050
        %v1052 = vpop.f32.mrb[0].mxu0
        %1053 = vmatprep.mubr.f32.mxu0 0.0
        %1054 = vmatmul.mubr.f32.gmra.mrb[0].mxu0 %v824
        %v1055 = vpop.f32.mrb[0].mxu0
        %v1056 = vadd.f32 %v736, %v1055
        %v1057 = vpop.f32.mrb[0].mxu0
        %1058 = vmatprep.mubr.f32.mxu0 0.0
        %1059 = vmatmul.mubr.f32.gmra.mrb[0].mxu0 %v826
        %v1060 = vpop.f32.mrb[0].mxu0
        %v1061 = vadd.f32 %v741, %v1060
        %v1062 = vpop.f32.mrb[0].mxu0
        %1063 = vmatprep.mubr.f32.mxu0 0.0
        %1064 = vmatmul.mubr.f32.gmra.mrb[0].mxu0 %v828
        %v1065 = vpop.f32.mrb[0].mxu0
        %v1066 = vadd.f32 %v746, %v1065
        %v1067 = vpop.f32.mrb[0].mxu0
        %1068 = vmatprep.mubr.f32.mxu0 0.0
        %1069 = vmatmul.mubr.f32.gmra.mrb[0].mxu0 %v830
        %v1070 = vpop.f32.mrb[0].mxu0
        %v1071 = vadd.f32 %v751, %v1070
        %v1072 = vpop.f32.mrb[0].mxu0
        %1073 = vmatprep.mubr.f32.mxu0 0.0
        %1074 = vmatmul.mubr.f32.gmra.mrb[0].mxu0 %v832
        %v1075 = vpop.f32.mrb[0].mxu0
        %v1076 = vadd.f32 %v756, %v1075
        %v1077 = vpop.f32.mrb[0].mxu0
        %1078 = vmatprep.mubr.f32.mxu0 0.0
        %1079 = vmatmul.mubr.f32.gmra.mrb[0].mxu0 %v834
        %v1080 = vpop.f32.mrb[0].mxu0
        %v1081 = vadd.f32 %v761, %v1080
        %v1082 = vpop.f32.mrb[0].mxu0
        %1083 = vdwg.mxu0
        %s1084 = scalar_lea.vmem %s1, 8
        %v1085 = vld [vmem:[%s1084] sm:$0xf]
        %vm1086 = vcmask 1045504
        %v1087 = vrot.slane %v290, 2
        %v1088 = vrot.slane %v291, 2
        %v1089 = vsel %vm1086, %v1087, %v1088
        %v1090 = vrot.slane %v292, 2
        %v1091 = vsel %vm1086, %v1088, %v1090
        %v1092 = vrot.slane %v293, 2
        %v1093 = vsel %vm1086, %v1090, %v1092
        %v1094 = vrot.slane %v294, 2
        %v1095 = vsel %vm1086, %v1092, %v1094
        %v1096 = vrot.slane %v295, 2
        %v1097 = vsel %vm1086, %v1094, %v1096
        %v1098 = vrot.slane %v296, 2
        %v1099 = vsel %vm1086, %v1096, %v1098
        %v1100 = vrot.slane %v297, 2
        %v1101 = vsel %vm1086, %v1098, %v1100
        %v1102 = vrot.slane %v298, 2
        %v1103 = vsel %vm1086, %v1100, %v1102
        %v1104 = vrot.slane %v299, 2
        %v1105 = vsel %vm1086, %v1102, %v1104
        %v1106 = vrot.slane %v300, 2
        %v1107 = vsel %vm1086, %v1104, %v1106
        %v1108 = vrot.slane %v301, 2
        %v1109 = vsel %vm1086, %v1106, %v1108
        %v1110 = vrot.slane %v302, 2
        %v1111 = vsel %vm1086, %v1108, %v1110
        %v1112 = vrot.slane %v303, 2
        %v1113 = vsel %vm1086, %v1110, %v1112
        %v1114 = vrot.slane %v304, 2
        %v1115 = vsel %vm1086, %v1112, %v1114
        %v1116 = vrot.slane %v305, 2
        %v1117 = vsel %vm1086, %v1114, %v1116
        %v1118 = vrot.slane %v306, 2
        %v1119 = vsel %vm1086, %v1116, %v1118
        %v1120 = vrot.slane %v307, 2
        %v1121 = vsel %vm1086, %v1118, %v1120
        %v1122 = vrot.slane %v308, 2
        %v1123 = vsel %vm1086, %v1120, %v1122
        %v1124 = vrot.slane %v309, 2
        %v1125 = vsel %vm1086, %v1122, %v1124
        %v1126 = vrot.slane %v310, 2
        %v1127 = vsel %vm1086, %v1124, %v1126
        %v1128 = vrot.slane %v311, 2
        %v1129 = vsel %vm1086, %v1126, %v1128
        %v1130 = vrot.slane %v312, 2
        %v1131 = vsel %vm1086, %v1128, %v1130
        %v1132 = vrot.slane %v313, 2
        %v1133 = vsel %vm1086, %v1130, %v1132
        %v1134 = vrot.slane %v314, 2
        %v1135 = vsel %vm1086, %v1132, %v1134
        %v1136 = vrot.slane %v315, 2
        %v1137 = vsel %vm1086, %v1134, %v1136
        %v1138 = vrot.slane %v316, 2
        %v1139 = vsel %vm1086, %v1136, %v1138
        %v1140 = vrot.slane %v317, 2
        %v1141 = vsel %vm1086, %v1138, %v1140
        %v1142 = vrot.slane %v318, 2
        %v1143 = vsel %vm1086, %v1140, %v1142
        %v1144 = vrot.slane %v319, 2
        %v1145 = vsel %vm1086, %v1142, %v1144
        %v1146 = vrot.slane %v320, 2
        %v1147 = vsel %vm1086, %v1144, %v1146
        %v1148 = vrot.slane %v321, 2
        %v1149 = vsel %vm1086, %v1146, %v1148
        %v1150 = vrot.slane %v322, 2
        %v1151 = vsel %vm1086, %v1148, %v1150
        %v1152 = vrot.slane %v323, 2
        %v1153 = vsel %vm1086, %v1150, %v1152
        %v1154 = vrot.slane %v324, 2
        %v1155 = vsel %vm1086, %v1152, %v1154
        %v1156 = vrot.slane %v325, 2
        %v1157 = vsel %vm1086, %v1154, %v1156
        %v1158 = vsel %vm442, %v1089, 0
        %v1160 = vsel %vm442, %v1091, 0
        %v1162 = vsel %vm442, %v1093, 0
        %v1164 = vsel %vm442, %v1095, 0
        %v1166 = vsel %vm442, %v1097, 0
        %v1168 = vsel %vm442, %v1099, 0
        %v1170 = vsel %vm442, %v1101, 0
        %v1172 = vsel %vm442, %v1103, 0
        %v1174 = vsel %vm442, %v1105, 0
        %v1176 = vsel %vm442, %v1107, 0
        %v1178 = vsel %vm442, %v1109, 0
        %v1180 = vsel %vm442, %v1111, 0
        %v1182 = vsel %vm442, %v1113, 0
        %v1184 = vsel %vm442, %v1115, 0
        %v1186 = vsel %vm442, %v1117, 0
        %v1188 = vsel %vm442, %v1119, 0
        %v1190 = vsel %vm442, %v1121, 0
        %v1192 = vsel %vm442, %v1123, 0
        %v1194 = vsel %vm442, %v1125, 0
        %v1196 = vsel %vm442, %v1127, 0
        %v1198 = vsel %vm442, %v1129, 0
        %v1200 = vsel %vm442, %v1131, 0
        %v1202 = vsel %vm442, %v1133, 0
        %v1204 = vsel %vm442, %v1135, 0
        %v1206 = vsel %vm442, %v1137, 0
        %v1208 = vsel %vm442, %v1139, 0
        %v1210 = vsel %vm442, %v1141, 0
        %v1212 = vsel %vm442, %v1143, 0
        %v1214 = vsel %vm442, %v1145, 0
        %v1216 = vsel %vm442, %v1147, 0
        %v1218 = vsel %vm442, %v1149, 0
        %v1220 = vsel %vm442, %v1151, 0
        %v1222 = vsel %vm442, %v1153, 0
        %v1224 = vsel %vm442, %v1155, 0
        %v1226 = vsel %vm442, %v1157, 0
        %v1228 = vsel %vm442, %v1156, 0
        %v1231 = vsel %vm515, %v1085, 0
        %1233 = vmatprep.subr.mxu0 0.0
        %1234 = vmatpush1.msra.mxu0 %v1231
        %1235 = vmatprep.subr.mxu0 0.0
        %1236 = vmatpush1.msra.mxu0 0.0
        %1237 = vmatprep.subr.mxu0 0.0
        %1238 = vmatpush1.msra.mxu0 0.0
        %1239 = vmatprep.subr.mxu0 0.0
        %1240 = vmatpush1.msra.mxu0 0.0
        %1241 = vmatprep.subr.mxu0 0.0
        %1242 = vmatpush1.msra.mxu0 0.0
        %1243 = vmatprep.subr.mxu0 0.0
        %1244 = vmatpush1.msra.mxu0 0.0
        %1245 = vmatprep.subr.mxu0 0.0
        %1246 = vmatpush1.msra.mxu0 0.0
        %1247 = vmatprep.subr.mxu0 0.0
        %1248 = vmatpush1.msra.mxu0 0.0
        %1249 = vmatprep.subr.mxu0 0.0
        %1250 = vmatpush1.msra.mxu0 0.0
        %1251 = vmatprep.subr.mxu0 0.0
        %1252 = vmatpush1.msra.mxu0 0.0
        %1253 = vmatprep.subr.mxu0 0.0
        %1254 = vmatpush1.msra.mxu0 0.0
        %1255 = vmatprep.subr.mxu0 0.0
        %1256 = vmatpush1.msra.mxu0 0.0
        %1257 = vmatprep.subr.mxu0 0.0
        %1258 = vmatpush1.msra.mxu0 0.0
        %1259 = vmatprep.subr.mxu0 0.0
        %1260 = vmatpush1.msra.mxu0 0.0
        %1261 = vmatprep.subr.mxu0 0.0
        %1262 = vmatpush1.msra.mxu0 0.0
        %1263 = vmatprep.subr.mxu0 0.0
        %1264 = vmatpush1.msra.mxu0 0.0
        %1265 = vmatprep.subr.mxu0 0.0
        %1266 = vmatpush1.msra.mxu0 0.0
        %1267 = vmatprep.subr.mxu0 0.0
        %1268 = vmatpush1.msra.mxu0 0.0
        %1269 = vmatprep.subr.mxu0 0.0
        %1270 = vmatpush1.msra.mxu0 0.0
        %1271 = vmatprep.subr.mxu0 0.0
        %1272 = vmatpush1.msra.mxu0 0.0
        %1273 = vmatprep.subr.mxu0 0.0
        %1274 = vmatpush1.msra.mxu0 0.0
        %1275 = vmatprep.subr.mxu0 0.0
        %1276 = vmatpush1.msra.mxu0 0.0
        %1277 = vmatprep.subr.mxu0 0.0
        %1278 = vmatpush1.msra.mxu0 0.0
        %1279 = vmatprep.subr.mxu0 0.0
        %1280 = vmatpush1.msra.mxu0 0.0
        %1281 = vmatprep.subr.mxu0 0.0
        %1282 = vmatpush1.msra.mxu0 0.0
        %1283 = vmatprep.subr.mxu0 0.0
        %1284 = vmatpush1.msra.mxu0 0.0
        %1285 = vmatprep.subr.mxu0 0.0
        %1286 = vmatpush1.msra.mxu0 0.0
        %1287 = vmatprep.subr.mxu0 0.0
        %1288 = vmatpush1.msra.mxu0 0.0
        %1289 = vmatprep.subr.mxu0 0.0
        %1290 = vmatpush1.msra.mxu0 0.0
        %1291 = vmatprep.subr.mxu0 0.0
        %1292 = vmatpush1.msra.mxu0 0.0
        %1293 = vmatprep.subr.mxu0 0.0
        %1294 = vmatpush1.msra.mxu0 0.0
        %1295 = vmatprep.subr.mxu0 0.0
        %1296 = vmatpush1.msra.mxu0 0.0
        %1297 = vmatprep.mubr.f32.mxu0 0.0
        %1298 = vmatmul.mubr.f32.gmra.mrb[0].mxu0 %v1158
        %v1299 = vpop.f32.mrb[0].mxu0
        %v1300 = vadd.f32 0.0, %v1299
        %v1301 = vpop.f32.mrb[0].mxu0
        %1302 = vmatprep.mubr.f32.mxu0 0.0
        %1303 = vmatmul.mubr.f32.gmra.mrb[0].mxu0 %v1160
        %v1304 = vpop.f32.mrb[0].mxu0
        %v1305 = vadd.f32 0.0, %v1304
        %v1306 = vpop.f32.mrb[0].mxu0
        %1307 = vmatprep.mubr.f32.mxu0 0.0
        %1308 = vmatmul.mubr.f32.gmra.mrb[0].mxu0 %v1162
        %v1309 = vpop.f32.mrb[0].mxu0
        %v1310 = vadd.f32 0.0, %v1309
        %v1311 = vpop.f32.mrb[0].mxu0
        %1312 = vmatprep.mubr.f32.mxu0 0.0
        %1313 = vmatmul.mubr.f32.gmra.mrb[0].mxu0 %v1164
        %v1314 = vpop.f32.mrb[0].mxu0
        %v1315 = vadd.f32 0.0, %v1314
        %v1316 = vpop.f32.mrb[0].mxu0
        %1317 = vmatprep.mubr.f32.mxu0 0.0
        %1318 = vmatmul.mubr.f32.gmra.mrb[0].mxu0 %v1166
        %v1319 = vpop.f32.mrb[0].mxu0
        %v1320 = vadd.f32 0.0, %v1319
        %v1321 = vpop.f32.mrb[0].mxu0
        %1322 = vmatprep.mubr.f32.mxu0 0.0
        %1323 = vmatmul.mubr.f32.gmra.mrb[0].mxu0 %v1168
        %v1324 = vpop.f32.mrb[0].mxu0
        %v1325 = vadd.f32 0.0, %v1324
        %v1326 = vpop.f32.mrb[0].mxu0
        %1327 = vmatprep.mubr.f32.mxu0 0.0
        %1328 = vmatmul.mubr.f32.gmra.mrb[0].mxu0 %v1170
        %v1329 = vpop.f32.mrb[0].mxu0
        %v1330 = vadd.f32 0.0, %v1329
        %v1331 = vpop.f32.mrb[0].mxu0
        %1332 = vmatprep.mubr.f32.mxu0 0.0
        %1333 = vmatmul.mubr.f32.gmra.mrb[0].mxu0 %v1172
        %v1334 = vpop.f32.mrb[0].mxu0
        %v1335 = vadd.f32 0.0, %v1334
        %v1336 = vpop.f32.mrb[0].mxu0
        %1337 = vmatprep.mubr.f32.mxu0 0.0
        %1338 = vmatmul.mubr.f32.gmra.mrb[0].mxu0 %v1174
        %v1339 = vpop.f32.mrb[0].mxu0
        %v1340 = vadd.f32 0.0, %v1339
        %v1341 = vpop.f32.mrb[0].mxu0
        %1342 = vmatprep.mubr.f32.mxu0 0.0
        %1343 = vmatmul.mubr.f32.gmra.mrb[0].mxu0 %v1176
        %v1344 = vpop.f32.mrb[0].mxu0
        %v1345 = vadd.f32 0.0, %v1344
        %v1346 = vpop.f32.mrb[0].mxu0
        %1347 = vmatprep.mubr.f32.mxu0 0.0
        %1348 = vmatmul.mubr.f32.gmra.mrb[0].mxu0 %v1178
        %v1349 = vpop.f32.mrb[0].mxu0
        %v1350 = vadd.f32 0.0, %v1349
        %v1351 = vpop.f32.mrb[0].mxu0
        %1352 = vmatprep.mubr.f32.mxu0 0.0
        %1353 = vmatmul.mubr.f32.gmra.mrb[0].mxu0 %v1180
        %v1354 = vpop.f32.mrb[0].mxu0
        %v1355 = vadd.f32 0.0, %v1354
        %v1356 = vpop.f32.mrb[0].mxu0
        %1357 = vmatprep.mubr.f32.mxu0 0.0
        %1358 = vmatmul.mubr.f32.gmra.mrb[0].mxu0 %v1182
        %v1359 = vpop.f32.mrb[0].mxu0
        %v1360 = vadd.f32 0.0, %v1359
        %v1361 = vpop.f32.mrb[0].mxu0
        %1362 = vmatprep.mubr.f32.mxu0 0.0
        %1363 = vmatmul.mubr.f32.gmra.mrb[0].mxu0 %v1184
        %v1364 = vpop.f32.mrb[0].mxu0
        %v1365 = vadd.f32 0.0, %v1364
        %v1366 = vpop.f32.mrb[0].mxu0
        %1367 = vmatprep.mubr.f32.mxu0 0.0
        %1368 = vmatmul.mubr.f32.gmra.mrb[0].mxu0 %v1186
        %v1369 = vpop.f32.mrb[0].mxu0
        %v1370 = vadd.f32 0.0, %v1369
        %v1371 = vpop.f32.mrb[0].mxu0
        %1372 = vmatprep.mubr.f32.mxu0 0.0
        %1373 = vmatmul.mubr.f32.gmra.mrb[0].mxu0 %v1188
        %v1374 = vpop.f32.mrb[0].mxu0
        %v1375 = vadd.f32 0.0, %v1374
        %v1376 = vpop.f32.mrb[0].mxu0
        %1377 = vmatprep.mubr.f32.mxu0 0.0
        %1378 = vmatmul.mubr.f32.gmra.mrb[0].mxu0 %v1190
        %v1379 = vpop.f32.mrb[0].mxu0
        %v1380 = vadd.f32 0.0, %v1379
        %v1381 = vpop.f32.mrb[0].mxu0
        %1382 = vmatprep.mubr.f32.mxu0 0.0
        %1383 = vmatmul.mubr.f32.gmra.mrb[0].mxu0 %v1192
        %v1384 = vpop.f32.mrb[0].mxu0
        %v1385 = vadd.f32 0.0, %v1384
        %v1386 = vpop.f32.mrb[0].mxu0
        %1387 = vmatprep.mubr.f32.mxu0 0.0
        %1388 = vmatmul.mubr.f32.gmra.mrb[0].mxu0 %v1194
        %v1389 = vpop.f32.mrb[0].mxu0
        %v1390 = vadd.f32 0.0, %v1389
        %v1391 = vpop.f32.mrb[0].mxu0
        %1392 = vmatprep.mubr.f32.mxu0 0.0
        %1393 = vmatmul.mubr.f32.gmra.mrb[0].mxu0 %v1196
        %v1394 = vpop.f32.mrb[0].mxu0
        %v1395 = vadd.f32 0.0, %v1394
        %v1396 = vpop.f32.mrb[0].mxu0
        %1397 = vmatprep.mubr.f32.mxu0 0.0
        %1398 = vmatmul.mubr.f32.gmra.mrb[0].mxu0 %v1198
        %v1399 = vpop.f32.mrb[0].mxu0
        %v1400 = vadd.f32 0.0, %v1399
        %v1401 = vpop.f32.mrb[0].mxu0
        %1402 = vmatprep.mubr.f32.mxu0 0.0
        %1403 = vmatmul.mubr.f32.gmra.mrb[0].mxu0 %v1200
        %v1404 = vpop.f32.mrb[0].mxu0
        %v1405 = vadd.f32 0.0, %v1404
        %v1406 = vpop.f32.mrb[0].mxu0
        %1407 = vmatprep.mubr.f32.mxu0 0.0
        %1408 = vmatmul.mubr.f32.gmra.mrb[0].mxu0 %v1202
        %v1409 = vpop.f32.mrb[0].mxu0
        %v1410 = vadd.f32 0.0, %v1409
        %v1411 = vpop.f32.mrb[0].mxu0
        %1412 = vmatprep.mubr.f32.mxu0 0.0
        %1413 = vmatmul.mubr.f32.gmra.mrb[0].mxu0 %v1204
        %v1414 = vpop.f32.mrb[0].mxu0
        %v1415 = vadd.f32 0.0, %v1414
        %v1416 = vpop.f32.mrb[0].mxu0
        %1417 = vmatprep.mubr.f32.mxu0 0.0
        %1418 = vmatmul.mubr.f32.gmra.mrb[0].mxu0 %v1206
        %v1419 = vpop.f32.mrb[0].mxu0
        %v1420 = vadd.f32 0.0, %v1419
        %v1421 = vpop.f32.mrb[0].mxu0
        %1422 = vmatprep.mubr.f32.mxu0 0.0
        %1423 = vmatmul.mubr.f32.gmra.mrb[0].mxu0 %v1208
        %v1424 = vpop.f32.mrb[0].mxu0
        %v1425 = vadd.f32 0.0, %v1424
        %v1426 = vpop.f32.mrb[0].mxu0
        %1427 = vmatprep.mubr.f32.mxu0 0.0
        %1428 = vmatmul.mubr.f32.gmra.mrb[0].mxu0 %v1210
        %v1429 = vpop.f32.mrb[0].mxu0
        %v1430 = vadd.f32 0.0, %v1429
        %v1431 = vpop.f32.mrb[0].mxu0
        %1432 = vmatprep.mubr.f32.mxu0 0.0
        %1433 = vmatmul.mubr.f32.gmra.mrb[0].mxu0 %v1212
        %v1434 = vpop.f32.mrb[0].mxu0
        %v1435 = vadd.f32 0.0, %v1434
        %v1436 = vpop.f32.mrb[0].mxu0
        %1437 = vmatprep.mubr.f32.mxu0 0.0
        %1438 = vmatmul.mubr.f32.gmra.mrb[0].mxu0 %v1214
        %v1439 = vpop.f32.mrb[0].mxu0
        %v1440 = vadd.f32 0.0, %v1439
        %v1441 = vpop.f32.mrb[0].mxu0
        %1442 = vmatprep.mubr.f32.mxu0 0.0
        %1443 = vmatmul.mubr.f32.gmra.mrb[0].mxu0 %v1216
        %v1444 = vpop.f32.mrb[0].mxu0
        %v1445 = vadd.f32 0.0, %v1444
        %v1446 = vpop.f32.mrb[0].mxu0
        %1447 = vmatprep.mubr.f32.mxu0 0.0
        %1448 = vmatmul.mubr.f32.gmra.mrb[0].mxu0 %v1218
        %v1449 = vpop.f32.mrb[0].mxu0
        %v1450 = vadd.f32 0.0, %v1449
        %v1451 = vpop.f32.mrb[0].mxu0
        %1452 = vmatprep.mubr.f32.mxu0 0.0
        %1453 = vmatmul.mubr.f32.gmra.mrb[0].mxu0 %v1220
        %v1454 = vpop.f32.mrb[0].mxu0
        %v1455 = vadd.f32 0.0, %v1454
        %v1456 = vpop.f32.mrb[0].mxu0
        %1457 = vmatprep.mubr.f32.mxu0 0.0
        %1458 = vmatmul.mubr.f32.gmra.mrb[0].mxu0 %v1222
        %v1459 = vpop.f32.mrb[0].mxu0
        %v1460 = vadd.f32 0.0, %v1459
        %v1461 = vpop.f32.mrb[0].mxu0
        %1462 = vmatprep.mubr.f32.mxu0 0.0
        %1463 = vmatmul.mubr.f32.gmra.mrb[0].mxu0 %v1224
        %v1464 = vpop.f32.mrb[0].mxu0
        %v1465 = vadd.f32 0.0, %v1464
        %v1466 = vpop.f32.mrb[0].mxu0
        %1467 = vmatprep.mubr.f32.mxu0 0.0
        %1468 = vmatmul.mubr.f32.gmra.mrb[0].mxu0 %v1226
        %v1469 = vpop.f32.mrb[0].mxu0
        %v1470 = vadd.f32 0.0, %v1469
        %v1471 = vpop.f32.mrb[0].mxu0
        %1472 = vmatprep.mubr.f32.mxu0 0.0
        %1473 = vmatmul.mubr.f32.gmra.mrb[0].mxu0 %v1228
        %v1474 = vpop.f32.mrb[0].mxu0
        %v1475 = vadd.f32 0.0, %v1474
        %v1476 = vpop.f32.mrb[0].mxu0
        %1477 = vdwg.mxu0
        %v1478 = vadd.f32 %v906, %v1300
        %v1479 = vadd.f32 %v911, %v1305
        %v1480 = vadd.f32 %v916, %v1310
        %v1481 = vadd.f32 %v921, %v1315
        %v1482 = vadd.f32 %v926, %v1320
        %v1483 = vadd.f32 %v931, %v1325
        %v1484 = vadd.f32 %v936, %v1330
        %v1485 = vadd.f32 %v941, %v1335
        %v1486 = vadd.f32 %v946, %v1340
        %v1487 = vadd.f32 %v951, %v1345
        %v1488 = vadd.f32 %v956, %v1350
        %v1489 = vadd.f32 %v961, %v1355
        %v1490 = vadd.f32 %v966, %v1360
        %v1491 = vadd.f32 %v971, %v1365
        %v1492 = vadd.f32 %v976, %v1370
        %v1493 = vadd.f32 %v981, %v1375
        %v1494 = vadd.f32 %v986, %v1380
        %v1495 = vadd.f32 %v991, %v1385
        %v1496 = vadd.f32 %v996, %v1390
        %v1497 = vadd.f32 %v1001, %v1395
        %v1498 = vadd.f32 %v1006, %v1400
        %v1499 = vadd.f32 %v1011, %v1405
        %v1500 = vadd.f32 %v1016, %v1410
        %v1501 = vadd.f32 %v1021, %v1415
        %v1502 = vadd.f32 %v1026, %v1420
        %v1503 = vadd.f32 %v1031, %v1425
        %v1504 = vadd.f32 %v1036, %v1430
        %v1505 = vadd.f32 %v1041, %v1435
        %v1506 = vadd.f32 %v1046, %v1440
        %v1507 = vadd.f32 %v1051, %v1445
        %v1508 = vadd.f32 %v1056, %v1450
        %v1509 = vadd.f32 %v1061, %v1455
        %v1510 = vadd.f32 %v1066, %v1460
        %v1511 = vadd.f32 %v1071, %v1465
        %v1512 = vadd.f32 %v1076, %v1470
        %v1513 = vadd.f32 %v1081, %v1475
        %s1514 = scalar_lea.vmem %s1, 12
        %v1515 = vld [vmem:[%s1514] sm:$0xf]
        %v1518 = vrot.slane %v326, 2
        %v1519 = vsel %vm1086, %v1156, %v1518
        %v1520 = vrot.slane %v327, 2
        %v1521 = vsel %vm1086, %v1518, %v1520
        %v1522 = vsel %vm442, %v1519, 0
        %v1524 = vsel %vm442, %v1521, 0
        %v1526 = vsel %vm442, %v1520, 0
        %v1529 = vsel %vm515, %v1515, 0
        %1531 = vmatprep.subr.mxu0 0.0
        %1532 = vmatpush1.msra.mxu0 %v1529
        %1533 = vmatprep.subr.mxu0 0.0
        %1534 = vmatpush1.msra.mxu0 0.0
        %1535 = vmatprep.subr.mxu0 0.0
        %1536 = vmatpush1.msra.mxu0 0.0
        %1537 = vmatprep.subr.mxu0 0.0
        %1538 = vmatpush1.msra.mxu0 0.0
        %1539 = vmatprep.subr.mxu0 0.0
        %1540 = vmatpush1.msra.mxu0 0.0
        %1541 = vmatprep.subr.mxu0 0.0
        %1542 = vmatpush1.msra.mxu0 0.0
        %1543 = vmatprep.subr.mxu0 0.0
        %1544 = vmatpush1.msra.mxu0 0.0
        %1545 = vmatprep.subr.mxu0 0.0
        %1546 = vmatpush1.msra.mxu0 0.0
        %1547 = vmatprep.subr.mxu0 0.0
        %1548 = vmatpush1.msra.mxu0 0.0
        %1549 = vmatprep.subr.mxu0 0.0
        %1550 = vmatpush1.msra.mxu0 0.0
        %1551 = vmatprep.subr.mxu0 0.0
        %1552 = vmatpush1.msra.mxu0 0.0
        %1553 = vmatprep.subr.mxu0 0.0
        %1554 = vmatpush1.msra.mxu0 0.0
        %1555 = vmatprep.subr.mxu0 0.0
        %1556 = vmatpush1.msra.mxu0 0.0
        %1557 = vmatprep.subr.mxu0 0.0
        %1558 = vmatpush1.msra.mxu0 0.0
        %1559 = vmatprep.subr.mxu0 0.0
        %1560 = vmatpush1.msra.mxu0 0.0
        %1561 = vmatprep.subr.mxu0 0.0
        %1562 = vmatpush1.msra.mxu0 0.0
        %1563 = vmatprep.subr.mxu0 0.0
        %1564 = vmatpush1.msra.mxu0 0.0
        %1565 = vmatprep.subr.mxu0 0.0
        %1566 = vmatpush1.msra.mxu0 0.0
        %1567 = vmatprep.subr.mxu0 0.0
        %1568 = vmatpush1.msra.mxu0 0.0
        %1569 = vmatprep.subr.mxu0 0.0
        %1570 = vmatpush1.msra.mxu0 0.0
        %1571 = vmatprep.subr.mxu0 0.0
        %1572 = vmatpush1.msra.mxu0 0.0
        %1573 = vmatprep.subr.mxu0 0.0
        %1574 = vmatpush1.msra.mxu0 0.0
        %1575 = vmatprep.subr.mxu0 0.0
        %1576 = vmatpush1.msra.mxu0 0.0
        %1577 = vmatprep.subr.mxu0 0.0
        %1578 = vmatpush1.msra.mxu0 0.0
        %1579 = vmatprep.subr.mxu0 0.0
        %1580 = vmatpush1.msra.mxu0 0.0
        %1581 = vmatprep.subr.mxu0 0.0
        %1582 = vmatpush1.msra.mxu0 0.0
        %1583 = vmatprep.subr.mxu0 0.0
        %1584 = vmatpush1.msra.mxu0 0.0
        %1585 = vmatprep.subr.mxu0 0.0
        %1586 = vmatpush1.msra.mxu0 0.0
        %1587 = vmatprep.subr.mxu0 0.0
        %1588 = vmatpush1.msra.mxu0 0.0
        %1589 = vmatprep.subr.mxu0 0.0
        %1590 = vmatpush1.msra.mxu0 0.0
        %1591 = vmatprep.subr.mxu0 0.0
        %1592 = vmatpush1.msra.mxu0 0.0
        %1593 = vmatprep.subr.mxu0 0.0
        %1594 = vmatpush1.msra.mxu0 0.0
        %1595 = vmatprep.mubr.f32.mxu0 0.0
        %1596 = vmatmul.mubr.f32.gmra.mrb[0].mxu0 %v1162
        %v1597 = vpop.f32.mrb[0].mxu0
        %v1598 = vadd.f32 0.0, %v1597
        %v1599 = vpop.f32.mrb[0].mxu0
        %1600 = vmatprep.mubr.f32.mxu0 0.0
        %1601 = vmatmul.mubr.f32.gmra.mrb[0].mxu0 %v1164
        %v1602 = vpop.f32.mrb[0].mxu0
        %v1603 = vadd.f32 0.0, %v1602
        %v1604 = vpop.f32.mrb[0].mxu0
        %1605 = vmatprep.mubr.f32.mxu0 0.0
        %1606 = vmatmul.mubr.f32.gmra.mrb[0].mxu0 %v1166
        %v1607 = vpop.f32.mrb[0].mxu0
        %v1608 = vadd.f32 0.0, %v1607
        %v1609 = vpop.f32.mrb[0].mxu0
        %1610 = vmatprep.mubr.f32.mxu0 0.0
        %1611 = vmatmul.mubr.f32.gmra.mrb[0].mxu0 %v1168
        %v1612 = vpop.f32.mrb[0].mxu0
        %v1613 = vadd.f32 0.0, %v1612
        %v1614 = vpop.f32.mrb[0].mxu0
        %1615 = vmatprep.mubr.f32.mxu0 0.0
        %1616 = vmatmul.mubr.f32.gmra.mrb[0].mxu0 %v1170
        %v1617 = vpop.f32.mrb[0].mxu0
        %v1618 = vadd.f32 0.0, %v1617
        %v1619 = vpop.f32.mrb[0].mxu0
        %1620 = vmatprep.mubr.f32.mxu0 0.0
        %1621 = vmatmul.mubr.f32.gmra.mrb[0].mxu0 %v1172
        %v1622 = vpop.f32.mrb[0].mxu0
        %v1623 = vadd.f32 0.0, %v1622
        %v1624 = vpop.f32.mrb[0].mxu0
        %1625 = vmatprep.mubr.f32.mxu0 0.0
        %1626 = vmatmul.mubr.f32.gmra.mrb[0].mxu0 %v1174
        %v1627 = vpop.f32.mrb[0].mxu0
        %v1628 = vadd.f32 0.0, %v1627
        %v1629 = vpop.f32.mrb[0].mxu0
        %1630 = vmatprep.mubr.f32.mxu0 0.0
        %1631 = vmatmul.mubr.f32.gmra.mrb[0].mxu0 %v1176
        %v1632 = vpop.f32.mrb[0].mxu0
        %v1633 = vadd.f32 0.0, %v1632
        %v1634 = vpop.f32.mrb[0].mxu0
        %1635 = vmatprep.mubr.f32.mxu0 0.0
        %1636 = vmatmul.mubr.f32.gmra.mrb[0].mxu0 %v1178
        %v1637 = vpop.f32.mrb[0].mxu0
        %v1638 = vadd.f32 0.0, %v1637
        %v1639 = vpop.f32.mrb[0].mxu0
        %1640 = vmatprep.mubr.f32.mxu0 0.0
        %1641 = vmatmul.mubr.f32.gmra.mrb[0].mxu0 %v1180
        %v1642 = vpop.f32.mrb[0].mxu0
        %v1643 = vadd.f32 0.0, %v1642
        %v1644 = vpop.f32.mrb[0].mxu0
        %1645 = vmatprep.mubr.f32.mxu0 0.0
        %1646 = vmatmul.mubr.f32.gmra.mrb[0].mxu0 %v1182
        %v1647 = vpop.f32.mrb[0].mxu0
        %v1648 = vadd.f32 0.0, %v1647
        %v1649 = vpop.f32.mrb[0].mxu0
        %1650 = vmatprep.mubr.f32.mxu0 0.0
        %1651 = vmatmul.mubr.f32.gmra.mrb[0].mxu0 %v1184
        %v1652 = vpop.f32.mrb[0].mxu0
        %v1653 = vadd.f32 0.0, %v1652
        %v1654 = vpop.f32.mrb[0].mxu0
        %1655 = vmatprep.mubr.f32.mxu0 0.0
        %1656 = vmatmul.mubr.f32.gmra.mrb[0].mxu0 %v1186
        %v1657 = vpop.f32.mrb[0].mxu0
        %v1658 = vadd.f32 0.0, %v1657
        %v1659 = vpop.f32.mrb[0].mxu0
        %1660 = vmatprep.mubr.f32.mxu0 0.0
        %1661 = vmatmul.mubr.f32.gmra.mrb[0].mxu0 %v1188
        %v1662 = vpop.f32.mrb[0].mxu0
        %v1663 = vadd.f32 0.0, %v1662
        %v1664 = vpop.f32.mrb[0].mxu0
        %1665 = vmatprep.mubr.f32.mxu0 0.0
        %1666 = vmatmul.mubr.f32.gmra.mrb[0].mxu0 %v1190
        %v1667 = vpop.f32.mrb[0].mxu0
        %v1668 = vadd.f32 0.0, %v1667
        %v1669 = vpop.f32.mrb[0].mxu0
        %1670 = vmatprep.mubr.f32.mxu0 0.0
        %1671 = vmatmul.mubr.f32.gmra.mrb[0].mxu0 %v1192
        %v1672 = vpop.f32.mrb[0].mxu0
        %v1673 = vadd.f32 0.0, %v1672
        %v1674 = vpop.f32.mrb[0].mxu0
        %1675 = vmatprep.mubr.f32.mxu0 0.0
        %1676 = vmatmul.mubr.f32.gmra.mrb[0].mxu0 %v1194
        %v1677 = vpop.f32.mrb[0].mxu0
        %v1678 = vadd.f32 0.0, %v1677
        %v1679 = vpop.f32.mrb[0].mxu0
        %1680 = vmatprep.mubr.f32.mxu0 0.0
        %1681 = vmatmul.mubr.f32.gmra.mrb[0].mxu0 %v1196
        %v1682 = vpop.f32.mrb[0].mxu0
        %v1683 = vadd.f32 0.0, %v1682
        %v1684 = vpop.f32.mrb[0].mxu0
        %1685 = vmatprep.mubr.f32.mxu0 0.0
        %1686 = vmatmul.mubr.f32.gmra.mrb[0].mxu0 %v1198
        %v1687 = vpop.f32.mrb[0].mxu0
        %v1688 = vadd.f32 0.0, %v1687
        %v1689 = vpop.f32.mrb[0].mxu0
        %1690 = vmatprep.mubr.f32.mxu0 0.0
        %1691 = vmatmul.mubr.f32.gmra.mrb[0].mxu0 %v1200
        %v1692 = vpop.f32.mrb[0].mxu0
        %v1693 = vadd.f32 0.0, %v1692
        %v1694 = vpop.f32.mrb[0].mxu0
        %1695 = vmatprep.mubr.f32.mxu0 0.0
        %1696 = vmatmul.mubr.f32.gmra.mrb[0].mxu0 %v1202
        %v1697 = vpop.f32.mrb[0].mxu0
        %v1698 = vadd.f32 0.0, %v1697
        %v1699 = vpop.f32.mrb[0].mxu0
        %1700 = vmatprep.mubr.f32.mxu0 0.0
        %1701 = vmatmul.mubr.f32.gmra.mrb[0].mxu0 %v1204
        %v1702 = vpop.f32.mrb[0].mxu0
        %v1703 = vadd.f32 0.0, %v1702
        %v1704 = vpop.f32.mrb[0].mxu0
        %1705 = vmatprep.mubr.f32.mxu0 0.0
        %1706 = vmatmul.mubr.f32.gmra.mrb[0].mxu0 %v1206
        %v1707 = vpop.f32.mrb[0].mxu0
        %v1708 = vadd.f32 0.0, %v1707
        %v1709 = vpop.f32.mrb[0].mxu0
        %1710 = vmatprep.mubr.f32.mxu0 0.0
        %1711 = vmatmul.mubr.f32.gmra.mrb[0].mxu0 %v1208
        %v1712 = vpop.f32.mrb[0].mxu0
        %v1713 = vadd.f32 0.0, %v1712
        %v1714 = vpop.f32.mrb[0].mxu0
        %1715 = vmatprep.mubr.f32.mxu0 0.0
        %1716 = vmatmul.mubr.f32.gmra.mrb[0].mxu0 %v1210
        %v1717 = vpop.f32.mrb[0].mxu0
        %v1718 = vadd.f32 0.0, %v1717
        %v1719 = vpop.f32.mrb[0].mxu0
        %1720 = vmatprep.mubr.f32.mxu0 0.0
        %1721 = vmatmul.mubr.f32.gmra.mrb[0].mxu0 %v1212
        %v1722 = vpop.f32.mrb[0].mxu0
        %v1723 = vadd.f32 0.0, %v1722
        %v1724 = vpop.f32.mrb[0].mxu0
        %1725 = vmatprep.mubr.f32.mxu0 0.0
        %1726 = vmatmul.mubr.f32.gmra.mrb[0].mxu0 %v1214
        %v1727 = vpop.f32.mrb[0].mxu0
        %v1728 = vadd.f32 0.0, %v1727
        %v1729 = vpop.f32.mrb[0].mxu0
        %1730 = vmatprep.mubr.f32.mxu0 0.0
        %1731 = vmatmul.mubr.f32.gmra.mrb[0].mxu0 %v1216
        %v1732 = vpop.f32.mrb[0].mxu0
        %v1733 = vadd.f32 0.0, %v1732
        %v1734 = vpop.f32.mrb[0].mxu0
        %1735 = vmatprep.mubr.f32.mxu0 0.0
        %1736 = vmatmul.mubr.f32.gmra.mrb[0].mxu0 %v1218
        %v1737 = vpop.f32.mrb[0].mxu0
        %v1738 = vadd.f32 0.0, %v1737
        %v1739 = vpop.f32.mrb[0].mxu0
        %1740 = vmatprep.mubr.f32.mxu0 0.0
        %1741 = vmatmul.mubr.f32.gmra.mrb[0].mxu0 %v1220
        %v1742 = vpop.f32.mrb[0].mxu0
        %v1743 = vadd.f32 0.0, %v1742
        %v1744 = vpop.f32.mrb[0].mxu0
        %1745 = vmatprep.mubr.f32.mxu0 0.0
        %1746 = vmatmul.mubr.f32.gmra.mrb[0].mxu0 %v1222
        %v1747 = vpop.f32.mrb[0].mxu0
        %v1748 = vadd.f32 0.0, %v1747
        %v1749 = vpop.f32.mrb[0].mxu0
        %1750 = vmatprep.mubr.f32.mxu0 0.0
        %1751 = vmatmul.mubr.f32.gmra.mrb[0].mxu0 %v1224
        %v1752 = vpop.f32.mrb[0].mxu0
        %v1753 = vadd.f32 0.0, %v1752
        %v1754 = vpop.f32.mrb[0].mxu0
        %1755 = vmatprep.mubr.f32.mxu0 0.0
        %1756 = vmatmul.mubr.f32.gmra.mrb[0].mxu0 %v1226
        %v1757 = vpop.f32.mrb[0].mxu0
        %v1758 = vadd.f32 0.0, %v1757
        %v1759 = vpop.f32.mrb[0].mxu0
        %1760 = vmatprep.mubr.f32.mxu0 0.0
        %1761 = vmatmul.mubr.f32.gmra.mrb[0].mxu0 %v1522
        %v1762 = vpop.f32.mrb[0].mxu0
        %v1763 = vadd.f32 0.0, %v1762
        %v1764 = vpop.f32.mrb[0].mxu0
        %1765 = vmatprep.mubr.f32.mxu0 0.0
        %1766 = vmatmul.mubr.f32.gmra.mrb[0].mxu0 %v1524
        %v1767 = vpop.f32.mrb[0].mxu0
        %v1768 = vadd.f32 0.0, %v1767
        %v1769 = vpop.f32.mrb[0].mxu0
        %1770 = vmatprep.mubr.f32.mxu0 0.0
        %1771 = vmatmul.mubr.f32.gmra.mrb[0].mxu0 %v1526
        %v1772 = vpop.f32.mrb[0].mxu0
        %v1773 = vadd.f32 0.0, %v1772
        %v1774 = vpop.f32.mrb[0].mxu0
        %1775 = vdwg.mxu0
        %v1776 = vadd.f32 %v1478, %v1598
        %v1777 = vadd.f32 %v1479, %v1603
        %v1778 = vadd.f32 %v1480, %v1608
        %v1779 = vadd.f32 %v1481, %v1613
        %v1780 = vadd.f32 %v1482, %v1618
        %v1781 = vadd.f32 %v1483, %v1623
        %v1782 = vadd.f32 %v1484, %v1628
        %v1783 = vadd.f32 %v1485, %v1633
        %v1784 = vadd.f32 %v1486, %v1638
        %v1785 = vadd.f32 %v1487, %v1643
        %v1786 = vadd.f32 %v1488, %v1648
        %v1787 = vadd.f32 %v1489, %v1653
        %v1788 = vadd.f32 %v1490, %v1658
        %v1789 = vadd.f32 %v1491, %v1663
        %v1790 = vadd.f32 %v1492, %v1668
        %v1791 = vadd.f32 %v1493, %v1673
        %v1792 = vadd.f32 %v1494, %v1678
        %v1793 = vadd.f32 %v1495, %v1683
        %v1794 = vadd.f32 %v1496, %v1688
        %v1795 = vadd.f32 %v1497, %v1693
        %v1796 = vadd.f32 %v1498, %v1698
        %v1797 = vadd.f32 %v1499, %v1703
        %v1798 = vadd.f32 %v1500, %v1708
        %v1799 = vadd.f32 %v1501, %v1713
        %v1800 = vadd.f32 %v1502, %v1718
        %v1801 = vadd.f32 %v1503, %v1723
        %v1802 = vadd.f32 %v1504, %v1728
        %v1803 = vadd.f32 %v1505, %v1733
        %v1804 = vadd.f32 %v1506, %v1738
        %v1805 = vadd.f32 %v1507, %v1743
        %v1806 = vadd.f32 %v1508, %v1748
        %v1807 = vadd.f32 %v1509, %v1753
        %v1808 = vadd.f32 %v1510, %v1758
        %v1809 = vadd.f32 %v1511, %v1763
        %v1810 = vadd.f32 %v1512, %v1768
        %v1811 = vadd.f32 %v1513, %v1773
        %s1812 = scalar_lea.vmem %s1, 16
        %v1813 = vld [vmem:[%s1812] sm:$0xf]
        %vm1815 = vcmask 1044480
        %v1816 = vrot.slane %v292, 3
        %v1817 = vrot.slane %v293, 3
        %v1818 = vsel %vm1815, %v1816, %v1817
        %v1819 = vrot.slane %v294, 3
        %v1820 = vsel %vm1815, %v1817, %v1819
        %v1821 = vrot.slane %v295, 3
        %v1822 = vsel %vm1815, %v1819, %v1821
        %v1823 = vrot.slane %v296, 3
        %v1824 = vsel %vm1815, %v1821, %v1823
        %v1825 = vrot.slane %v297, 3
        %v1826 = vsel %vm1815, %v1823, %v1825
        %v1827 = vrot.slane %v298, 3
        %v1828 = vsel %vm1815, %v1825, %v1827
        %v1829 = vrot.slane %v299, 3
        %v1830 = vsel %vm1815, %v1827, %v1829
        %v1831 = vrot.slane %v300, 3
        %v1832 = vsel %vm1815, %v1829, %v1831
        %v1833 = vrot.slane %v301, 3
        %v1834 = vsel %vm1815, %v1831, %v1833
        %v1835 = vrot.slane %v302, 3
        %v1836 = vsel %vm1815, %v1833, %v1835
        %v1837 = vrot.slane %v303, 3
        %v1838 = vsel %vm1815, %v1835, %v1837
        %v1839 = vrot.slane %v304, 3
        %v1840 = vsel %vm1815, %v1837, %v1839
        %v1841 = vrot.slane %v305, 3
        %v1842 = vsel %vm1815, %v1839, %v1841
        %v1843 = vrot.slane %v306, 3
        %v1844 = vsel %vm1815, %v1841, %v1843
        %v1845 = vrot.slane %v307, 3
        %v1846 = vsel %vm1815, %v1843, %v1845
        %v1847 = vrot.slane %v308, 3
        %v1848 = vsel %vm1815, %v1845, %v1847
        %v1849 = vrot.slane %v309, 3
        %v1850 = vsel %vm1815, %v1847, %v1849
        %v1851 = vrot.slane %v310, 3
        %v1852 = vsel %vm1815, %v1849, %v1851
        %v1853 = vrot.slane %v311, 3
        %v1854 = vsel %vm1815, %v1851, %v1853
        %v1855 = vrot.slane %v312, 3
        %v1856 = vsel %vm1815, %v1853, %v1855
        %v1857 = vrot.slane %v313, 3
        %v1858 = vsel %vm1815, %v1855, %v1857
        %v1859 = vrot.slane %v314, 3
        %v1860 = vsel %vm1815, %v1857, %v1859
        %v1861 = vrot.slane %v315, 3
        %v1862 = vsel %vm1815, %v1859, %v1861
        %v1863 = vrot.slane %v316, 3
        %v1864 = vsel %vm1815, %v1861, %v1863
        %v1865 = vrot.slane %v317, 3
        %v1866 = vsel %vm1815, %v1863, %v1865
        %v1867 = vrot.slane %v318, 3
        %v1868 = vsel %vm1815, %v1865, %v1867
        %v1869 = vrot.slane %v319, 3
        %v1870 = vsel %vm1815, %v1867, %v1869
        %v1871 = vrot.slane %v320, 3
        %v1872 = vsel %vm1815, %v1869, %v1871
        %v1873 = vrot.slane %v321, 3
        %v1874 = vsel %vm1815, %v1871, %v1873
        %v1875 = vrot.slane %v322, 3
        %v1876 = vsel %vm1815, %v1873, %v1875
        %v1877 = vrot.slane %v323, 3
        %v1878 = vsel %vm1815, %v1875, %v1877
        %v1879 = vrot.slane %v324, 3
        %v1880 = vsel %vm1815, %v1877, %v1879
        %v1881 = vrot.slane %v325, 3
        %v1882 = vsel %vm1815, %v1879, %v1881
        %v1883 = vrot.slane %v326, 3
        %v1884 = vsel %vm1815, %v1881, %v1883
        %v1885 = vrot.slane %v327, 3
        %v1886 = vsel %vm1815, %v1883, %v1885
        %v1887 = vrot.slane %v328, 3
        %v1888 = vsel %vm1815, %v1885, %v1887
        %v1889 = vsel %vm442, %v1818, 0
        %v1891 = vsel %vm442, %v1820, 0
        %v1893 = vsel %vm442, %v1822, 0
        %v1895 = vsel %vm442, %v1824, 0
        %v1897 = vsel %vm442, %v1826, 0
        %v1899 = vsel %vm442, %v1828, 0
        %v1901 = vsel %vm442, %v1830, 0
        %v1903 = vsel %vm442, %v1832, 0
        %v1905 = vsel %vm442, %v1834, 0
        %v1907 = vsel %vm442, %v1836, 0
        %v1909 = vsel %vm442, %v1838, 0
        %v1911 = vsel %vm442, %v1840, 0
        %v1913 = vsel %vm442, %v1842, 0
        %v1915 = vsel %vm442, %v1844, 0
        %v1917 = vsel %vm442, %v1846, 0
        %v1919 = vsel %vm442, %v1848, 0
        %v1921 = vsel %vm442, %v1850, 0
        %v1923 = vsel %vm442, %v1852, 0
        %v1925 = vsel %vm442, %v1854, 0
        %v1927 = vsel %vm442, %v1856, 0
        %v1929 = vsel %vm442, %v1858, 0
        %v1931 = vsel %vm442, %v1860, 0
        %v1933 = vsel %vm442, %v1862, 0
        %v1935 = vsel %vm442, %v1864, 0
        %v1937 = vsel %vm442, %v1866, 0
        %v1939 = vsel %vm442, %v1868, 0
        %v1941 = vsel %vm442, %v1870, 0
        %v1943 = vsel %vm442, %v1872, 0
        %v1945 = vsel %vm442, %v1874, 0
        %v1947 = vsel %vm442, %v1876, 0
        %v1949 = vsel %vm442, %v1878, 0
        %v1951 = vsel %vm442, %v1880, 0
        %v1953 = vsel %vm442, %v1882, 0
        %v1955 = vsel %vm442, %v1884, 0
        %v1957 = vsel %vm442, %v1886, 0
        %v1959 = vsel %vm442, %v1888, 0
        %v1962 = vsel %vm515, %v1813, 0
        %1964 = vmatprep.subr.mxu0 0.0
        %1965 = vmatpush1.msra.mxu0 %v1962
        %1966 = vmatprep.subr.mxu0 0.0
        %1967 = vmatpush1.msra.mxu0 0.0
        %1968 = vmatprep.subr.mxu0 0.0
        %1969 = vmatpush1.msra.mxu0 0.0
        %1970 = vmatprep.subr.mxu0 0.0
        %1971 = vmatpush1.msra.mxu0 0.0
        %1972 = vmatprep.subr.mxu0 0.0
        %1973 = vmatpush1.msra.mxu0 0.0
        %1974 = vmatprep.subr.mxu0 0.0
        %1975 = vmatpush1.msra.mxu0 0.0
        %1976 = vmatprep.subr.mxu0 0.0
        %1977 = vmatpush1.msra.mxu0 0.0
        %1978 = vmatprep.subr.mxu0 0.0
        %1979 = vmatpush1.msra.mxu0 0.0
        %1980 = vmatprep.subr.mxu0 0.0
        %1981 = vmatpush1.msra.mxu0 0.0
        %1982 = vmatprep.subr.mxu0 0.0
        %1983 = vmatpush1.msra.mxu0 0.0
        %1984 = vmatprep.subr.mxu0 0.0
        %1985 = vmatpush1.msra.mxu0 0.0
        %1986 = vmatprep.subr.mxu0 0.0
        %1987 = vmatpush1.msra.mxu0 0.0
        %1988 = vmatprep.subr.mxu0 0.0
        %1989 = vmatpush1.msra.mxu0 0.0
        %1990 = vmatprep.subr.mxu0 0.0
        %1991 = vmatpush1.msra.mxu0 0.0
        %1992 = vmatprep.subr.mxu0 0.0
        %1993 = vmatpush1.msra.mxu0 0.0
        %1994 = vmatprep.subr.mxu0 0.0
        %1995 = vmatpush1.msra.mxu0 0.0
        %1996 = vmatprep.subr.mxu0 0.0
        %1997 = vmatpush1.msra.mxu0 0.0
        %1998 = vmatprep.subr.mxu0 0.0
        %1999 = vmatpush1.msra.mxu0 0.0
        %2000 = vmatprep.subr.mxu0 0.0
        %2001 = vmatpush1.msra.mxu0 0.0
        %2002 = vmatprep.subr.mxu0 0.0
        %2003 = vmatpush1.msra.mxu0 0.0
        %2004 = vmatprep.subr.mxu0 0.0
        %2005 = vmatpush1.msra.mxu0 0.0
        %2006 = vmatprep.subr.mxu0 0.0
        %2007 = vmatpush1.msra.mxu0 0.0
        %2008 = vmatprep.subr.mxu0 0.0
        %2009 = vmatpush1.msra.mxu0 0.0
        %2010 = vmatprep.subr.mxu0 0.0
        %2011 = vmatpush1.msra.mxu0 0.0
        %2012 = vmatprep.subr.mxu0 0.0
        %2013 = vmatpush1.msra.mxu0 0.0
        %2014 = vmatprep.subr.mxu0 0.0
        %2015 = vmatpush1.msra.mxu0 0.0
        %2016 = vmatprep.subr.mxu0 0.0
        %2017 = vmatpush1.msra.mxu0 0.0
        %2018 = vmatprep.subr.mxu0 0.0
        %2019 = vmatpush1.msra.mxu0 0.0
        %2020 = vmatprep.subr.mxu0 0.0
        %2021 = vmatpush1.msra.mxu0 0.0
        %2022 = vmatprep.subr.mxu0 0.0
        %2023 = vmatpush1.msra.mxu0 0.0
        %2024 = vmatprep.subr.mxu0 0.0
        %2025 = vmatpush1.msra.mxu0 0.0
        %2026 = vmatprep.subr.mxu0 0.0
        %2027 = vmatpush1.msra.mxu0 0.0
        %2028 = vmatprep.mubr.f32.mxu0 0.0
        %2029 = vmatmul.mubr.f32.gmra.mrb[0].mxu0 %v1889
        %v2030 = vpop.f32.mrb[0].mxu0
        %v2031 = vadd.f32 0.0, %v2030
        %v2032 = vpop.f32.mrb[0].mxu0
        %2033 = vmatprep.mubr.f32.mxu0 0.0
        %2034 = vmatmul.mubr.f32.gmra.mrb[0].mxu0 %v1891
        %v2035 = vpop.f32.mrb[0].mxu0
        %v2036 = vadd.f32 0.0, %v2035
        %v2037 = vpop.f32.mrb[0].mxu0
        %2038 = vmatprep.mubr.f32.mxu0 0.0
        %2039 = vmatmul.mubr.f32.gmra.mrb[0].mxu0 %v1893
        %v2040 = vpop.f32.mrb[0].mxu0
        %v2041 = vadd.f32 0.0, %v2040
        %v2042 = vpop.f32.mrb[0].mxu0
        %2043 = vmatprep.mubr.f32.mxu0 0.0
        %2044 = vmatmul.mubr.f32.gmra.mrb[0].mxu0 %v1895
        %v2045 = vpop.f32.mrb[0].mxu0
        %v2046 = vadd.f32 0.0, %v2045
        %v2047 = vpop.f32.mrb[0].mxu0
        %2048 = vmatprep.mubr.f32.mxu0 0.0
        %2049 = vmatmul.mubr.f32.gmra.mrb[0].mxu0 %v1897
        %v2050 = vpop.f32.mrb[0].mxu0
        %v2051 = vadd.f32 0.0, %v2050
        %v2052 = vpop.f32.mrb[0].mxu0
        %2053 = vmatprep.mubr.f32.mxu0 0.0
        %2054 = vmatmul.mubr.f32.gmra.mrb[0].mxu0 %v1899
        %v2055 = vpop.f32.mrb[0].mxu0
        %v2056 = vadd.f32 0.0, %v2055
        %v2057 = vpop.f32.mrb[0].mxu0
        %2058 = vmatprep.mubr.f32.mxu0 0.0
        %2059 = vmatmul.mubr.f32.gmra.mrb[0].mxu0 %v1901
        %v2060 = vpop.f32.mrb[0].mxu0
        %v2061 = vadd.f32 0.0, %v2060
        %v2062 = vpop.f32.mrb[0].mxu0
        %2063 = vmatprep.mubr.f32.mxu0 0.0
        %2064 = vmatmul.mubr.f32.gmra.mrb[0].mxu0 %v1903
        %v2065 = vpop.f32.mrb[0].mxu0
        %v2066 = vadd.f32 0.0, %v2065
        %v2067 = vpop.f32.mrb[0].mxu0
        %2068 = vmatprep.mubr.f32.mxu0 0.0
        %2069 = vmatmul.mubr.f32.gmra.mrb[0].mxu0 %v1905
        %v2070 = vpop.f32.mrb[0].mxu0
        %v2071 = vadd.f32 0.0, %v2070
        %v2072 = vpop.f32.mrb[0].mxu0
        %2073 = vmatprep.mubr.f32.mxu0 0.0
        %2074 = vmatmul.mubr.f32.gmra.mrb[0].mxu0 %v1907
        %v2075 = vpop.f32.mrb[0].mxu0
        %v2076 = vadd.f32 0.0, %v2075
        %v2077 = vpop.f32.mrb[0].mxu0
        %2078 = vmatprep.mubr.f32.mxu0 0.0
        %2079 = vmatmul.mubr.f32.gmra.mrb[0].mxu0 %v1909
        %v2080 = vpop.f32.mrb[0].mxu0
        %v2081 = vadd.f32 0.0, %v2080
        %v2082 = vpop.f32.mrb[0].mxu0
        %2083 = vmatprep.mubr.f32.mxu0 0.0
        %2084 = vmatmul.mubr.f32.gmra.mrb[0].mxu0 %v1911
        %v2085 = vpop.f32.mrb[0].mxu0
        %v2086 = vadd.f32 0.0, %v2085
        %v2087 = vpop.f32.mrb[0].mxu0
        %2088 = vmatprep.mubr.f32.mxu0 0.0
        %2089 = vmatmul.mubr.f32.gmra.mrb[0].mxu0 %v1913
        %v2090 = vpop.f32.mrb[0].mxu0
        %v2091 = vadd.f32 0.0, %v2090
        %v2092 = vpop.f32.mrb[0].mxu0
        %2093 = vmatprep.mubr.f32.mxu0 0.0
        %2094 = vmatmul.mubr.f32.gmra.mrb[0].mxu0 %v1915
        %v2095 = vpop.f32.mrb[0].mxu0
        %v2096 = vadd.f32 0.0, %v2095
        %v2097 = vpop.f32.mrb[0].mxu0
        %2098 = vmatprep.mubr.f32.mxu0 0.0
        %2099 = vmatmul.mubr.f32.gmra.mrb[0].mxu0 %v1917
        %v2100 = vpop.f32.mrb[0].mxu0
        %v2101 = vadd.f32 0.0, %v2100
        %v2102 = vpop.f32.mrb[0].mxu0
        %2103 = vmatprep.mubr.f32.mxu0 0.0
        %2104 = vmatmul.mubr.f32.gmra.mrb[0].mxu0 %v1919
        %v2105 = vpop.f32.mrb[0].mxu0
        %v2106 = vadd.f32 0.0, %v2105
        %v2107 = vpop.f32.mrb[0].mxu0
        %2108 = vmatprep.mubr.f32.mxu0 0.0
        %2109 = vmatmul.mubr.f32.gmra.mrb[0].mxu0 %v1921
        %v2110 = vpop.f32.mrb[0].mxu0
        %v2111 = vadd.f32 0.0, %v2110
        %v2112 = vpop.f32.mrb[0].mxu0
        %2113 = vmatprep.mubr.f32.mxu0 0.0
        %2114 = vmatmul.mubr.f32.gmra.mrb[0].mxu0 %v1923
        %v2115 = vpop.f32.mrb[0].mxu0
        %v2116 = vadd.f32 0.0, %v2115
        %v2117 = vpop.f32.mrb[0].mxu0
        %2118 = vmatprep.mubr.f32.mxu0 0.0
        %2119 = vmatmul.mubr.f32.gmra.mrb[0].mxu0 %v1925
        %v2120 = vpop.f32.mrb[0].mxu0
        %v2121 = vadd.f32 0.0, %v2120
        %v2122 = vpop.f32.mrb[0].mxu0
        %2123 = vmatprep.mubr.f32.mxu0 0.0
        %2124 = vmatmul.mubr.f32.gmra.mrb[0].mxu0 %v1927
        %v2125 = vpop.f32.mrb[0].mxu0
        %v2126 = vadd.f32 0.0, %v2125
        %v2127 = vpop.f32.mrb[0].mxu0
        %2128 = vmatprep.mubr.f32.mxu0 0.0
        %2129 = vmatmul.mubr.f32.gmra.mrb[0].mxu0 %v1929
        %v2130 = vpop.f32.mrb[0].mxu0
        %v2131 = vadd.f32 0.0, %v2130
        %v2132 = vpop.f32.mrb[0].mxu0
        %2133 = vmatprep.mubr.f32.mxu0 0.0
        %2134 = vmatmul.mubr.f32.gmra.mrb[0].mxu0 %v1931
        %v2135 = vpop.f32.mrb[0].mxu0
        %v2136 = vadd.f32 0.0, %v2135
        %v2137 = vpop.f32.mrb[0].mxu0
        %2138 = vmatprep.mubr.f32.mxu0 0.0
        %2139 = vmatmul.mubr.f32.gmra.mrb[0].mxu0 %v1933
        %v2140 = vpop.f32.mrb[0].mxu0
        %v2141 = vadd.f32 0.0, %v2140
        %v2142 = vpop.f32.mrb[0].mxu0
        %2143 = vmatprep.mubr.f32.mxu0 0.0
        %2144 = vmatmul.mubr.f32.gmra.mrb[0].mxu0 %v1935
        %v2145 = vpop.f32.mrb[0].mxu0
        %v2146 = vadd.f32 0.0, %v2145
        %v2147 = vpop.f32.mrb[0].mxu0
        %2148 = vmatprep.mubr.f32.mxu0 0.0
        %2149 = vmatmul.mubr.f32.gmra.mrb[0].mxu0 %v1937
        %v2150 = vpop.f32.mrb[0].mxu0
        %v2151 = vadd.f32 0.0, %v2150
        %v2152 = vpop.f32.mrb[0].mxu0
        %2153 = vmatprep.mubr.f32.mxu0 0.0
        %2154 = vmatmul.mubr.f32.gmra.mrb[0].mxu0 %v1939
        %v2155 = vpop.f32.mrb[0].mxu0
        %v2156 = vadd.f32 0.0, %v2155
        %v2157 = vpop.f32.mrb[0].mxu0
        %2158 = vmatprep.mubr.f32.mxu0 0.0
        %2159 = vmatmul.mubr.f32.gmra.mrb[0].mxu0 %v1941
        %v2160 = vpop.f32.mrb[0].mxu0
        %v2161 = vadd.f32 0.0, %v2160
        %v2162 = vpop.f32.mrb[0].mxu0
        %2163 = vmatprep.mubr.f32.mxu0 0.0
        %2164 = vmatmul.mubr.f32.gmra.mrb[0].mxu0 %v1943
        %v2165 = vpop.f32.mrb[0].mxu0
        %v2166 = vadd.f32 0.0, %v2165
        %v2167 = vpop.f32.mrb[0].mxu0
        %2168 = vmatprep.mubr.f32.mxu0 0.0
        %2169 = vmatmul.mubr.f32.gmra.mrb[0].mxu0 %v1945
        %v2170 = vpop.f32.mrb[0].mxu0
        %v2171 = vadd.f32 0.0, %v2170
        %v2172 = vpop.f32.mrb[0].mxu0
        %2173 = vmatprep.mubr.f32.mxu0 0.0
        %2174 = vmatmul.mubr.f32.gmra.mrb[0].mxu0 %v1947
        %v2175 = vpop.f32.mrb[0].mxu0
        %v2176 = vadd.f32 0.0, %v2175
        %v2177 = vpop.f32.mrb[0].mxu0
        %2178 = vmatprep.mubr.f32.mxu0 0.0
        %2179 = vmatmul.mubr.f32.gmra.mrb[0].mxu0 %v1949
        %v2180 = vpop.f32.mrb[0].mxu0
        %v2181 = vadd.f32 0.0, %v2180
        %v2182 = vpop.f32.mrb[0].mxu0
        %2183 = vmatprep.mubr.f32.mxu0 0.0
        %2184 = vmatmul.mubr.f32.gmra.mrb[0].mxu0 %v1951
        %v2185 = vpop.f32.mrb[0].mxu0
        %v2186 = vadd.f32 0.0, %v2185
        %v2187 = vpop.f32.mrb[0].mxu0
        %2188 = vmatprep.mubr.f32.mxu0 0.0
        %2189 = vmatmul.mubr.f32.gmra.mrb[0].mxu0 %v1953
        %v2190 = vpop.f32.mrb[0].mxu0
        %v2191 = vadd.f32 0.0, %v2190
        %v2192 = vpop.f32.mrb[0].mxu0
        %2193 = vmatprep.mubr.f32.mxu0 0.0
        %2194 = vmatmul.mubr.f32.gmra.mrb[0].mxu0 %v1955
        %v2195 = vpop.f32.mrb[0].mxu0
        %v2196 = vadd.f32 0.0, %v2195
        %v2197 = vpop.f32.mrb[0].mxu0
        %2198 = vmatprep.mubr.f32.mxu0 0.0
        %2199 = vmatmul.mubr.f32.gmra.mrb[0].mxu0 %v1957
        %v2200 = vpop.f32.mrb[0].mxu0
        %v2201 = vadd.f32 0.0, %v2200
        %v2202 = vpop.f32.mrb[0].mxu0
        %2203 = vmatprep.mubr.f32.mxu0 0.0
        %2204 = vmatmul.mubr.f32.gmra.mrb[0].mxu0 %v1959
        %v2205 = vpop.f32.mrb[0].mxu0
        %v2206 = vadd.f32 0.0, %v2205
        %v2207 = vpop.f32.mrb[0].mxu0
        %2208 = vdwg.mxu0
        %v2209 = vadd.f32 %v1776, %v2031
        %v2210 = vadd.f32 %v1777, %v2036
        %v2211 = vadd.f32 %v1778, %v2041
        %v2212 = vadd.f32 %v1779, %v2046
        %v2213 = vadd.f32 %v1780, %v2051
        %v2214 = vadd.f32 %v1781, %v2056
        %v2215 = vadd.f32 %v1782, %v2061
        %v2216 = vadd.f32 %v1783, %v2066
        %v2217 = vadd.f32 %v1784, %v2071
        %v2218 = vadd.f32 %v1785, %v2076
        %v2219 = vadd.f32 %v1786, %v2081
        %v2220 = vadd.f32 %v1787, %v2086
        %v2221 = vadd.f32 %v1788, %v2091
        %v2222 = vadd.f32 %v1789, %v2096
        %v2223 = vadd.f32 %v1790, %v2101
        %v2224 = vadd.f32 %v1791, %v2106
        %v2225 = vadd.f32 %v1792, %v2111
        %v2226 = vadd.f32 %v1793, %v2116
        %v2227 = vadd.f32 %v1794, %v2121
        %v2228 = vadd.f32 %v1795, %v2126
        %v2229 = vadd.f32 %v1796, %v2131
        %v2230 = vadd.f32 %v1797, %v2136
        %v2231 = vadd.f32 %v1798, %v2141
        %v2232 = vadd.f32 %v1799, %v2146
        %v2233 = vadd.f32 %v1800, %v2151
        %v2234 = vadd.f32 %v1801, %v2156
        %v2235 = vadd.f32 %v1802, %v2161
        %v2236 = vadd.f32 %v1803, %v2166
        %v2237 = vadd.f32 %v1804, %v2171
        %v2238 = vadd.f32 %v1805, %v2176
        %v2239 = vadd.f32 %v1806, %v2181
        %v2240 = vadd.f32 %v1807, %v2186
        %v2241 = vadd.f32 %v1808, %v2191
        %v2242 = vadd.f32 %v1809, %v2196
        %v2243 = vadd.f32 %v1810, %v2201
        %v2244 = vadd.f32 %v1811, %v2206
        %s2245 = scalar_lea.vmem %s1, 20
        %v2246 = vld [vmem:[%s2245] sm:$0xf]
        %v2247 = vrot.slane %v292, 4
        %v2248 = vrot.slane %v293, 4
        %v2249 = vsel %vm515, %v2247, %v2248
        %v2250 = vrot.slane %v294, 4
        %v2251 = vsel %vm515, %v2248, %v2250
        %v2252 = vrot.slane %v295, 4
        %v2253 = vsel %vm515, %v2250, %v2252
        %v2254 = vrot.slane %v296, 4
        %v2255 = vsel %vm515, %v2252, %v2254
        %v2256 = vrot.slane %v297, 4
        %v2257 = vsel %vm515, %v2254, %v2256
        %v2258 = vrot.slane %v298, 4
        %v2259 = vsel %vm515, %v2256, %v2258
        %v2260 = vrot.slane %v299, 4
        %v2261 = vsel %vm515, %v2258, %v2260
        %v2262 = vrot.slane %v300, 4
        %v2263 = vsel %vm515, %v2260, %v2262
        %v2264 = vrot.slane %v301, 4
        %v2265 = vsel %vm515, %v2262, %v2264
        %v2266 = vrot.slane %v302, 4
        %v2267 = vsel %vm515, %v2264, %v2266
        %v2268 = vrot.slane %v303, 4
        %v2269 = vsel %vm515, %v2266, %v2268
        %v2270 = vrot.slane %v304, 4
        %v2271 = vsel %vm515, %v2268, %v2270
        %v2272 = vrot.slane %v305, 4
        %v2273 = vsel %vm515, %v2270, %v2272
        %v2274 = vrot.slane %v306, 4
        %v2275 = vsel %vm515, %v2272, %v2274
        %v2276 = vrot.slane %v307, 4
        %v2277 = vsel %vm515, %v2274, %v2276
        %v2278 = vrot.slane %v308, 4
        %v2279 = vsel %vm515, %v2276, %v2278
        %v2280 = vrot.slane %v309, 4
        %v2281 = vsel %vm515, %v2278, %v2280
        %v2282 = vrot.slane %v310, 4
        %v2283 = vsel %vm515, %v2280, %v2282
        %v2284 = vrot.slane %v311, 4
        %v2285 = vsel %vm515, %v2282, %v2284
        %v2286 = vrot.slane %v312, 4
        %v2287 = vsel %vm515, %v2284, %v2286
        %v2288 = vrot.slane %v313, 4
        %v2289 = vsel %vm515, %v2286, %v2288
        %v2290 = vrot.slane %v314, 4
        %v2291 = vsel %vm515, %v2288, %v2290
        %v2292 = vrot.slane %v315, 4
        %v2293 = vsel %vm515, %v2290, %v2292
        %v2294 = vrot.slane %v316, 4
        %v2295 = vsel %vm515, %v2292, %v2294
        %v2296 = vrot.slane %v317, 4
        %v2297 = vsel %vm515, %v2294, %v2296
        %v2298 = vrot.slane %v318, 4
        %v2299 = vsel %vm515, %v2296, %v2298
        %v2300 = vrot.slane %v319, 4
        %v2301 = vsel %vm515, %v2298, %v2300
        %v2302 = vrot.slane %v320, 4
        %v2303 = vsel %vm515, %v2300, %v2302
        %v2304 = vrot.slane %v321, 4
        %v2305 = vsel %vm515, %v2302, %v2304
        %v2306 = vrot.slane %v322, 4
        %v2307 = vsel %vm515, %v2304, %v2306
        %v2308 = vrot.slane %v323, 4
        %v2309 = vsel %vm515, %v2306, %v2308
        %v2310 = vrot.slane %v324, 4
        %v2311 = vsel %vm515, %v2308, %v2310
        %v2312 = vrot.slane %v325, 4
        %v2313 = vsel %vm515, %v2310, %v2312
        %v2314 = vrot.slane %v326, 4
        %v2315 = vsel %vm515, %v2312, %v2314
        %v2316 = vrot.slane %v327, 4
        %v2317 = vsel %vm515, %v2314, %v2316
        %v2318 = vrot.slane %v328, 4
        %v2319 = vsel %vm515, %v2316, %v2318
        %v2320 = vsel %vm442, %v2249, 0
        %v2322 = vsel %vm442, %v2251, 0
        %v2324 = vsel %vm442, %v2253, 0
        %v2326 = vsel %vm442, %v2255, 0
        %v2328 = vsel %vm442, %v2257, 0
        %v2330 = vsel %vm442, %v2259, 0
        %v2332 = vsel %vm442, %v2261, 0
        %v2334 = vsel %vm442, %v2263, 0
        %v2336 = vsel %vm442, %v2265, 0
        %v2338 = vsel %vm442, %v2267, 0
        %v2340 = vsel %vm442, %v2269, 0
        %v2342 = vsel %vm442, %v2271, 0
        %v2344 = vsel %vm442, %v2273, 0
        %v2346 = vsel %vm442, %v2275, 0
        %v2348 = vsel %vm442, %v2277, 0
        %v2350 = vsel %vm442, %v2279, 0
        %v2352 = vsel %vm442, %v2281, 0
        %v2354 = vsel %vm442, %v2283, 0
        %v2356 = vsel %vm442, %v2285, 0
        %v2358 = vsel %vm442, %v2287, 0
        %v2360 = vsel %vm442, %v2289, 0
        %v2362 = vsel %vm442, %v2291, 0
        %v2364 = vsel %vm442, %v2293, 0
        %v2366 = vsel %vm442, %v2295, 0
        %v2368 = vsel %vm442, %v2297, 0
        %v2370 = vsel %vm442, %v2299, 0
        %v2372 = vsel %vm442, %v2301, 0
        %v2374 = vsel %vm442, %v2303, 0
        %v2376 = vsel %vm442, %v2305, 0
        %v2378 = vsel %vm442, %v2307, 0
        %v2380 = vsel %vm442, %v2309, 0
        %v2382 = vsel %vm442, %v2311, 0
        %v2384 = vsel %vm442, %v2313, 0
        %v2386 = vsel %vm442, %v2315, 0
        %v2388 = vsel %vm442, %v2317, 0
        %v2390 = vsel %vm442, %v2319, 0
        %v2393 = vsel %vm515, %v2246, 0
        %2395 = vmatprep.subr.mxu0 0.0
        %2396 = vmatpush1.msra.mxu0 %v2393
        %2397 = vmatprep.subr.mxu0 0.0
        %2398 = vmatpush1.msra.mxu0 0.0
        %2399 = vmatprep.subr.mxu0 0.0
        %2400 = vmatpush1.msra.mxu0 0.0
        %2401 = vmatprep.subr.mxu0 0.0
        %2402 = vmatpush1.msra.mxu0 0.0
        %2403 = vmatprep.subr.mxu0 0.0
        %2404 = vmatpush1.msra.mxu0 0.0
        %2405 = vmatprep.subr.mxu0 0.0
        %2406 = vmatpush1.msra.mxu0 0.0
        %2407 = vmatprep.subr.mxu0 0.0
        %2408 = vmatpush1.msra.mxu0 0.0
        %2409 = vmatprep.subr.mxu0 0.0
        %2410 = vmatpush1.msra.mxu0 0.0
        %2411 = vmatprep.subr.mxu0 0.0
        %2412 = vmatpush1.msra.mxu0 0.0
        %2413 = vmatprep.subr.mxu0 0.0
        %2414 = vmatpush1.msra.mxu0 0.0
        %2415 = vmatprep.subr.mxu0 0.0
        %2416 = vmatpush1.msra.mxu0 0.0
        %2417 = vmatprep.subr.mxu0 0.0
        %2418 = vmatpush1.msra.mxu0 0.0
        %2419 = vmatprep.subr.mxu0 0.0
        %2420 = vmatpush1.msra.mxu0 0.0
        %2421 = vmatprep.subr.mxu0 0.0
        %2422 = vmatpush1.msra.mxu0 0.0
        %2423 = vmatprep.subr.mxu0 0.0
        %2424 = vmatpush1.msra.mxu0 0.0
        %2425 = vmatprep.subr.mxu0 0.0
        %2426 = vmatpush1.msra.mxu0 0.0
        %2427 = vmatprep.subr.mxu0 0.0
        %2428 = vmatpush1.msra.mxu0 0.0
        %2429 = vmatprep.subr.mxu0 0.0
        %2430 = vmatpush1.msra.mxu0 0.0
        %2431 = vmatprep.subr.mxu0 0.0
        %2432 = vmatpush1.msra.mxu0 0.0
        %2433 = vmatprep.subr.mxu0 0.0
        %2434 = vmatpush1.msra.mxu0 0.0
        %2435 = vmatprep.subr.mxu0 0.0
        %2436 = vmatpush1.msra.mxu0 0.0
        %2437 = vmatprep.subr.mxu0 0.0
        %2438 = vmatpush1.msra.mxu0 0.0
        %2439 = vmatprep.subr.mxu0 0.0
        %2440 = vmatpush1.msra.mxu0 0.0
        %2441 = vmatprep.subr.mxu0 0.0
        %2442 = vmatpush1.msra.mxu0 0.0
        %2443 = vmatprep.subr.mxu0 0.0
        %2444 = vmatpush1.msra.mxu0 0.0
        %2445 = vmatprep.subr.mxu0 0.0
        %2446 = vmatpush1.msra.mxu0 0.0
        %2447 = vmatprep.subr.mxu0 0.0
        %2448 = vmatpush1.msra.mxu0 0.0
        %2449 = vmatprep.subr.mxu0 0.0
        %2450 = vmatpush1.msra.mxu0 0.0
        %2451 = vmatprep.subr.mxu0 0.0
        %2452 = vmatpush1.msra.mxu0 0.0
        %2453 = vmatprep.subr.mxu0 0.0
        %2454 = vmatpush1.msra.mxu0 0.0
        %2455 = vmatprep.subr.mxu0 0.0
        %2456 = vmatpush1.msra.mxu0 0.0
        %2457 = vmatprep.subr.mxu0 0.0
        %2458 = vmatpush1.msra.mxu0 0.0
        %2459 = vmatprep.mubr.f32.mxu0 0.0
        %2460 = vmatmul.mubr.f32.gmra.mrb[0].mxu0 %v2320
        %v2461 = vpop.f32.mrb[0].mxu0
        %v2462 = vadd.f32 0.0, %v2461
        %v2463 = vpop.f32.mrb[0].mxu0
        %2464 = vmatprep.mubr.f32.mxu0 0.0
        %2465 = vmatmul.mubr.f32.gmra.mrb[0].mxu0 %v2322
        %v2466 = vpop.f32.mrb[0].mxu0
        %v2467 = vadd.f32 0.0, %v2466
        %v2468 = vpop.f32.mrb[0].mxu0
        %2469 = vmatprep.mubr.f32.mxu0 0.0
        %2470 = vmatmul.mubr.f32.gmra.mrb[0].mxu0 %v2324
        %v2471 = vpop.f32.mrb[0].mxu0
        %v2472 = vadd.f32 0.0, %v2471
        %v2473 = vpop.f32.mrb[0].mxu0
        %2474 = vmatprep.mubr.f32.mxu0 0.0
        %2475 = vmatmul.mubr.f32.gmra.mrb[0].mxu0 %v2326
        %v2476 = vpop.f32.mrb[0].mxu0
        %v2477 = vadd.f32 0.0, %v2476
        %v2478 = vpop.f32.mrb[0].mxu0
        %2479 = vmatprep.mubr.f32.mxu0 0.0
        %2480 = vmatmul.mubr.f32.gmra.mrb[0].mxu0 %v2328
        %v2481 = vpop.f32.mrb[0].mxu0
        %v2482 = vadd.f32 0.0, %v2481
        %v2483 = vpop.f32.mrb[0].mxu0
        %2484 = vmatprep.mubr.f32.mxu0 0.0
        %2485 = vmatmul.mubr.f32.gmra.mrb[0].mxu0 %v2330
        %v2486 = vpop.f32.mrb[0].mxu0
        %v2487 = vadd.f32 0.0, %v2486
        %v2488 = vpop.f32.mrb[0].mxu0
        %2489 = vmatprep.mubr.f32.mxu0 0.0
        %2490 = vmatmul.mubr.f32.gmra.mrb[0].mxu0 %v2332
        %v2491 = vpop.f32.mrb[0].mxu0
        %v2492 = vadd.f32 0.0, %v2491
        %v2493 = vpop.f32.mrb[0].mxu0
        %2494 = vmatprep.mubr.f32.mxu0 0.0
        %2495 = vmatmul.mubr.f32.gmra.mrb[0].mxu0 %v2334
        %v2496 = vpop.f32.mrb[0].mxu0
        %v2497 = vadd.f32 0.0, %v2496
        %v2498 = vpop.f32.mrb[0].mxu0
        %2499 = vmatprep.mubr.f32.mxu0 0.0
        %2500 = vmatmul.mubr.f32.gmra.mrb[0].mxu0 %v2336
        %v2501 = vpop.f32.mrb[0].mxu0
        %v2502 = vadd.f32 0.0, %v2501
        %v2503 = vpop.f32.mrb[0].mxu0
        %2504 = vmatprep.mubr.f32.mxu0 0.0
        %2505 = vmatmul.mubr.f32.gmra.mrb[0].mxu0 %v2338
        %v2506 = vpop.f32.mrb[0].mxu0
        %v2507 = vadd.f32 0.0, %v2506
        %v2508 = vpop.f32.mrb[0].mxu0
        %2509 = vmatprep.mubr.f32.mxu0 0.0
        %2510 = vmatmul.mubr.f32.gmra.mrb[0].mxu0 %v2340
        %v2511 = vpop.f32.mrb[0].mxu0
        %v2512 = vadd.f32 0.0, %v2511
        %v2513 = vpop.f32.mrb[0].mxu0
        %2514 = vmatprep.mubr.f32.mxu0 0.0
        %2515 = vmatmul.mubr.f32.gmra.mrb[0].mxu0 %v2342
        %v2516 = vpop.f32.mrb[0].mxu0
        %v2517 = vadd.f32 0.0, %v2516
        %v2518 = vpop.f32.mrb[0].mxu0
        %2519 = vmatprep.mubr.f32.mxu0 0.0
        %2520 = vmatmul.mubr.f32.gmra.mrb[0].mxu0 %v2344
        %v2521 = vpop.f32.mrb[0].mxu0
        %v2522 = vadd.f32 0.0, %v2521
        %v2523 = vpop.f32.mrb[0].mxu0
        %2524 = vmatprep.mubr.f32.mxu0 0.0
        %2525 = vmatmul.mubr.f32.gmra.mrb[0].mxu0 %v2346
        %v2526 = vpop.f32.mrb[0].mxu0
        %v2527 = vadd.f32 0.0, %v2526
        %v2528 = vpop.f32.mrb[0].mxu0
        %2529 = vmatprep.mubr.f32.mxu0 0.0
        %2530 = vmatmul.mubr.f32.gmra.mrb[0].mxu0 %v2348
        %v2531 = vpop.f32.mrb[0].mxu0
        %v2532 = vadd.f32 0.0, %v2531
        %v2533 = vpop.f32.mrb[0].mxu0
        %2534 = vmatprep.mubr.f32.mxu0 0.0
        %2535 = vmatmul.mubr.f32.gmra.mrb[0].mxu0 %v2350
        %v2536 = vpop.f32.mrb[0].mxu0
        %v2537 = vadd.f32 0.0, %v2536
        %v2538 = vpop.f32.mrb[0].mxu0
        %2539 = vmatprep.mubr.f32.mxu0 0.0
        %2540 = vmatmul.mubr.f32.gmra.mrb[0].mxu0 %v2352
        %v2541 = vpop.f32.mrb[0].mxu0
        %v2542 = vadd.f32 0.0, %v2541
        %v2543 = vpop.f32.mrb[0].mxu0
        %2544 = vmatprep.mubr.f32.mxu0 0.0
        %2545 = vmatmul.mubr.f32.gmra.mrb[0].mxu0 %v2354
        %v2546 = vpop.f32.mrb[0].mxu0
        %v2547 = vadd.f32 0.0, %v2546
        %v2548 = vpop.f32.mrb[0].mxu0
        %2549 = vmatprep.mubr.f32.mxu0 0.0
        %2550 = vmatmul.mubr.f32.gmra.mrb[0].mxu0 %v2356
        %v2551 = vpop.f32.mrb[0].mxu0
        %v2552 = vadd.f32 0.0, %v2551
        %v2553 = vpop.f32.mrb[0].mxu0
        %2554 = vmatprep.mubr.f32.mxu0 0.0
        %2555 = vmatmul.mubr.f32.gmra.mrb[0].mxu0 %v2358
        %v2556 = vpop.f32.mrb[0].mxu0
        %v2557 = vadd.f32 0.0, %v2556
        %v2558 = vpop.f32.mrb[0].mxu0
        %2559 = vmatprep.mubr.f32.mxu0 0.0
        %2560 = vmatmul.mubr.f32.gmra.mrb[0].mxu0 %v2360
        %v2561 = vpop.f32.mrb[0].mxu0
        %v2562 = vadd.f32 0.0, %v2561
        %v2563 = vpop.f32.mrb[0].mxu0
        %2564 = vmatprep.mubr.f32.mxu0 0.0
        %2565 = vmatmul.mubr.f32.gmra.mrb[0].mxu0 %v2362
        %v2566 = vpop.f32.mrb[0].mxu0
        %v2567 = vadd.f32 0.0, %v2566
        %v2568 = vpop.f32.mrb[0].mxu0
        %2569 = vmatprep.mubr.f32.mxu0 0.0
        %2570 = vmatmul.mubr.f32.gmra.mrb[0].mxu0 %v2364
        %v2571 = vpop.f32.mrb[0].mxu0
        %v2572 = vadd.f32 0.0, %v2571
        %v2573 = vpop.f32.mrb[0].mxu0
        %2574 = vmatprep.mubr.f32.mxu0 0.0
        %2575 = vmatmul.mubr.f32.gmra.mrb[0].mxu0 %v2366
        %v2576 = vpop.f32.mrb[0].mxu0
        %v2577 = vadd.f32 0.0, %v2576
        %v2578 = vpop.f32.mrb[0].mxu0
        %2579 = vmatprep.mubr.f32.mxu0 0.0
        %2580 = vmatmul.mubr.f32.gmra.mrb[0].mxu0 %v2368
        %v2581 = vpop.f32.mrb[0].mxu0
        %v2582 = vadd.f32 0.0, %v2581
        %v2583 = vpop.f32.mrb[0].mxu0
        %2584 = vmatprep.mubr.f32.mxu0 0.0
        %2585 = vmatmul.mubr.f32.gmra.mrb[0].mxu0 %v2370
        %v2586 = vpop.f32.mrb[0].mxu0
        %v2587 = vadd.f32 0.0, %v2586
        %v2588 = vpop.f32.mrb[0].mxu0
        %2589 = vmatprep.mubr.f32.mxu0 0.0
        %2590 = vmatmul.mubr.f32.gmra.mrb[0].mxu0 %v2372
        %v2591 = vpop.f32.mrb[0].mxu0
        %v2592 = vadd.f32 0.0, %v2591
        %v2593 = vpop.f32.mrb[0].mxu0
        %2594 = vmatprep.mubr.f32.mxu0 0.0
        %2595 = vmatmul.mubr.f32.gmra.mrb[0].mxu0 %v2374
        %v2596 = vpop.f32.mrb[0].mxu0
        %v2597 = vadd.f32 0.0, %v2596
        %v2598 = vpop.f32.mrb[0].mxu0
        %2599 = vmatprep.mubr.f32.mxu0 0.0
        %2600 = vmatmul.mubr.f32.gmra.mrb[0].mxu0 %v2376
        %v2601 = vpop.f32.mrb[0].mxu0
        %v2602 = vadd.f32 0.0, %v2601
        %v2603 = vpop.f32.mrb[0].mxu0
        %2604 = vmatprep.mubr.f32.mxu0 0.0
        %2605 = vmatmul.mubr.f32.gmra.mrb[0].mxu0 %v2378
        %v2606 = vpop.f32.mrb[0].mxu0
        %v2607 = vadd.f32 0.0, %v2606
        %v2608 = vpop.f32.mrb[0].mxu0
        %2609 = vmatprep.mubr.f32.mxu0 0.0
        %2610 = vmatmul.mubr.f32.gmra.mrb[0].mxu0 %v2380
        %v2611 = vpop.f32.mrb[0].mxu0
        %v2612 = vadd.f32 0.0, %v2611
        %v2613 = vpop.f32.mrb[0].mxu0
        %2614 = vmatprep.mubr.f32.mxu0 0.0
        %2615 = vmatmul.mubr.f32.gmra.mrb[0].mxu0 %v2382
        %v2616 = vpop.f32.mrb[0].mxu0
        %v2617 = vadd.f32 0.0, %v2616
        %v2618 = vpop.f32.mrb[0].mxu0
        %2619 = vmatprep.mubr.f32.mxu0 0.0
        %2620 = vmatmul.mubr.f32.gmra.mrb[0].mxu0 %v2384
        %v2621 = vpop.f32.mrb[0].mxu0
        %v2622 = vadd.f32 0.0, %v2621
        %v2623 = vpop.f32.mrb[0].mxu0
        %2624 = vmatprep.mubr.f32.mxu0 0.0
        %2625 = vmatmul.mubr.f32.gmra.mrb[0].mxu0 %v2386
        %v2626 = vpop.f32.mrb[0].mxu0
        %v2627 = vadd.f32 0.0, %v2626
        %v2628 = vpop.f32.mrb[0].mxu0
        %2629 = vmatprep.mubr.f32.mxu0 0.0
        %2630 = vmatmul.mubr.f32.gmra.mrb[0].mxu0 %v2388
        %v2631 = vpop.f32.mrb[0].mxu0
        %v2632 = vadd.f32 0.0, %v2631
        %v2633 = vpop.f32.mrb[0].mxu0
        %2634 = vmatprep.mubr.f32.mxu0 0.0
        %2635 = vmatmul.mubr.f32.gmra.mrb[0].mxu0 %v2390
        %v2636 = vpop.f32.mrb[0].mxu0
        %v2637 = vadd.f32 0.0, %v2636
        %v2638 = vpop.f32.mrb[0].mxu0
        %2639 = vdwg.mxu0
        %v2640 = vadd.f32 %v2209, %v2462
        %v2641 = vadd.f32 %v2210, %v2467
        %v2642 = vadd.f32 %v2211, %v2472
        %v2643 = vadd.f32 %v2212, %v2477
        %v2644 = vadd.f32 %v2213, %v2482
        %v2645 = vadd.f32 %v2214, %v2487
        %v2646 = vadd.f32 %v2215, %v2492
        %v2647 = vadd.f32 %v2216, %v2497
        %v2648 = vadd.f32 %v2217, %v2502
        %v2649 = vadd.f32 %v2218, %v2507
        %v2650 = vadd.f32 %v2219, %v2512
        %v2651 = vadd.f32 %v2220, %v2517
        %v2652 = vadd.f32 %v2221, %v2522
        %v2653 = vadd.f32 %v2222, %v2527
        %v2654 = vadd.f32 %v2223, %v2532
        %v2655 = vadd.f32 %v2224, %v2537
        %v2656 = vadd.f32 %v2225, %v2542
        %v2657 = vadd.f32 %v2226, %v2547
        %v2658 = vadd.f32 %v2227, %v2552
        %v2659 = vadd.f32 %v2228, %v2557
        %v2660 = vadd.f32 %v2229, %v2562
        %v2661 = vadd.f32 %v2230, %v2567
        %v2662 = vadd.f32 %v2231, %v2572
        %v2663 = vadd.f32 %v2232, %v2577
        %v2664 = vadd.f32 %v2233, %v2582
        %v2665 = vadd.f32 %v2234, %v2587
        %v2666 = vadd.f32 %v2235, %v2592
        %v2667 = vadd.f32 %v2236, %v2597
        %v2668 = vadd.f32 %v2237, %v2602
        %v2669 = vadd.f32 %v2238, %v2607
        %v2670 = vadd.f32 %v2239, %v2612
        %v2671 = vadd.f32 %v2240, %v2617
        %v2672 = vadd.f32 %v2241, %v2622
        %v2673 = vadd.f32 %v2242, %v2627
        %v2674 = vadd.f32 %v2243, %v2632
        %v2675 = vadd.f32 %v2244, %v2637
        %s2676 = scalar_lea.vmem %s1, 24
        %v2677 = vld [vmem:[%s2676] sm:$0xf]
        %v2680 = vrot.slane %v329, 4
        %v2681 = vsel %vm515, %v2318, %v2680
        %v2682 = vrot.slane %v330, 4
        %v2683 = vsel %vm515, %v2680, %v2682
        %v2684 = vsel %vm442, %v2681, 0
        %v2686 = vsel %vm442, %v2683, 0
        %v2689 = vsel %vm515, %v2677, 0
        %2691 = vmatprep.subr.mxu0 0.0
        %2692 = vmatpush1.msra.mxu0 %v2689
        %2693 = vmatprep.subr.mxu0 0.0
        %2694 = vmatpush1.msra.mxu0 0.0
        %2695 = vmatprep.subr.mxu0 0.0
        %2696 = vmatpush1.msra.mxu0 0.0
        %2697 = vmatprep.subr.mxu0 0.0
        %2698 = vmatpush1.msra.mxu0 0.0
        %2699 = vmatprep.subr.mxu0 0.0
        %2700 = vmatpush1.msra.mxu0 0.0
        %2701 = vmatprep.subr.mxu0 0.0
        %2702 = vmatpush1.msra.mxu0 0.0
        %2703 = vmatprep.subr.mxu0 0.0
        %2704 = vmatpush1.msra.mxu0 0.0
        %2705 = vmatprep.subr.mxu0 0.0
        %2706 = vmatpush1.msra.mxu0 0.0
        %2707 = vmatprep.subr.mxu0 0.0
        %2708 = vmatpush1.msra.mxu0 0.0
        %2709 = vmatprep.subr.mxu0 0.0
        %2710 = vmatpush1.msra.mxu0 0.0
        %2711 = vmatprep.subr.mxu0 0.0
        %2712 = vmatpush1.msra.mxu0 0.0
        %2713 = vmatprep.subr.mxu0 0.0
        %2714 = vmatpush1.msra.mxu0 0.0
        %2715 = vmatprep.subr.mxu0 0.0
        %2716 = vmatpush1.msra.mxu0 0.0
        %2717 = vmatprep.subr.mxu0 0.0
        %2718 = vmatpush1.msra.mxu0 0.0
        %2719 = vmatprep.subr.mxu0 0.0
        %2720 = vmatpush1.msra.mxu0 0.0
        %2721 = vmatprep.subr.mxu0 0.0
        %2722 = vmatpush1.msra.mxu0 0.0
        %2723 = vmatprep.subr.mxu0 0.0
        %2724 = vmatpush1.msra.mxu0 0.0
        %2725 = vmatprep.subr.mxu0 0.0
        %2726 = vmatpush1.msra.mxu0 0.0
        %2727 = vmatprep.subr.mxu0 0.0
        %2728 = vmatpush1.msra.mxu0 0.0
        %2729 = vmatprep.subr.mxu0 0.0
        %2730 = vmatpush1.msra.mxu0 0.0
        %2731 = vmatprep.subr.mxu0 0.0
        %2732 = vmatpush1.msra.mxu0 0.0
        %2733 = vmatprep.subr.mxu0 0.0
        %2734 = vmatpush1.msra.mxu0 0.0
        %2735 = vmatprep.subr.mxu0 0.0
        %2736 = vmatpush1.msra.mxu0 0.0
        %2737 = vmatprep.subr.mxu0 0.0
        %2738 = vmatpush1.msra.mxu0 0.0
        %2739 = vmatprep.subr.mxu0 0.0
        %2740 = vmatpush1.msra.mxu0 0.0
        %2741 = vmatprep.subr.mxu0 0.0
        %2742 = vmatpush1.msra.mxu0 0.0
        %2743 = vmatprep.subr.mxu0 0.0
        %2744 = vmatpush1.msra.mxu0 0.0
        %2745 = vmatprep.subr.mxu0 0.0
        %2746 = vmatpush1.msra.mxu0 0.0
        %2747 = vmatprep.subr.mxu0 0.0
        %2748 = vmatpush1.msra.mxu0 0.0
        %2749 = vmatprep.subr.mxu0 0.0
        %2750 = vmatpush1.msra.mxu0 0.0
        %2751 = vmatprep.subr.mxu0 0.0
        %2752 = vmatpush1.msra.mxu0 0.0
        %2753 = vmatprep.subr.mxu0 0.0
        %2754 = vmatpush1.msra.mxu0 0.0
        %2755 = vmatprep.mubr.f32.mxu0 0.0
        %2756 = vmatmul.mubr.f32.gmra.mrb[0].mxu0 %v2324
        %v2757 = vpop.f32.mrb[0].mxu0
        %v2758 = vadd.f32 0.0, %v2757
        %v2759 = vpop.f32.mrb[0].mxu0
        %2760 = vmatprep.mubr.f32.mxu0 0.0
        %2761 = vmatmul.mubr.f32.gmra.mrb[0].mxu0 %v2326
        %v2762 = vpop.f32.mrb[0].mxu0
        %v2763 = vadd.f32 0.0, %v2762
        %v2764 = vpop.f32.mrb[0].mxu0
        %2765 = vmatprep.mubr.f32.mxu0 0.0
        %2766 = vmatmul.mubr.f32.gmra.mrb[0].mxu0 %v2328
        %v2767 = vpop.f32.mrb[0].mxu0
        %v2768 = vadd.f32 0.0, %v2767
        %v2769 = vpop.f32.mrb[0].mxu0
        %2770 = vmatprep.mubr.f32.mxu0 0.0
        %2771 = vmatmul.mubr.f32.gmra.mrb[0].mxu0 %v2330
        %v2772 = vpop.f32.mrb[0].mxu0
        %v2773 = vadd.f32 0.0, %v2772
        %v2774 = vpop.f32.mrb[0].mxu0
        %2775 = vmatprep.mubr.f32.mxu0 0.0
        %2776 = vmatmul.mubr.f32.gmra.mrb[0].mxu0 %v2332
        %v2777 = vpop.f32.mrb[0].mxu0
        %v2778 = vadd.f32 0.0, %v2777
        %v2779 = vpop.f32.mrb[0].mxu0
        %2780 = vmatprep.mubr.f32.mxu0 0.0
        %2781 = vmatmul.mubr.f32.gmra.mrb[0].mxu0 %v2334
        %v2782 = vpop.f32.mrb[0].mxu0
        %v2783 = vadd.f32 0.0, %v2782
        %v2784 = vpop.f32.mrb[0].mxu0
        %2785 = vmatprep.mubr.f32.mxu0 0.0
        %2786 = vmatmul.mubr.f32.gmra.mrb[0].mxu0 %v2336
        %v2787 = vpop.f32.mrb[0].mxu0
        %v2788 = vadd.f32 0.0, %v2787
        %v2789 = vpop.f32.mrb[0].mxu0
        %2790 = vmatprep.mubr.f32.mxu0 0.0
        %2791 = vmatmul.mubr.f32.gmra.mrb[0].mxu0 %v2338
        %v2792 = vpop.f32.mrb[0].mxu0
        %v2793 = vadd.f32 0.0, %v2792
        %v2794 = vpop.f32.mrb[0].mxu0
        %2795 = vmatprep.mubr.f32.mxu0 0.0
        %2796 = vmatmul.mubr.f32.gmra.mrb[0].mxu0 %v2340
        %v2797 = vpop.f32.mrb[0].mxu0
        %v2798 = vadd.f32 0.0, %v2797
        %v2799 = vpop.f32.mrb[0].mxu0
        %2800 = vmatprep.mubr.f32.mxu0 0.0
        %2801 = vmatmul.mubr.f32.gmra.mrb[0].mxu0 %v2342
        %v2802 = vpop.f32.mrb[0].mxu0
        %v2803 = vadd.f32 0.0, %v2802
        %v2804 = vpop.f32.mrb[0].mxu0
        %2805 = vmatprep.mubr.f32.mxu0 0.0
        %2806 = vmatmul.mubr.f32.gmra.mrb[0].mxu0 %v2344
        %v2807 = vpop.f32.mrb[0].mxu0
        %v2808 = vadd.f32 0.0, %v2807
        %v2809 = vpop.f32.mrb[0].mxu0
        %2810 = vmatprep.mubr.f32.mxu0 0.0
        %2811 = vmatmul.mubr.f32.gmra.mrb[0].mxu0 %v2346
        %v2812 = vpop.f32.mrb[0].mxu0
        %v2813 = vadd.f32 0.0, %v2812
        %v2814 = vpop.f32.mrb[0].mxu0
        %2815 = vmatprep.mubr.f32.mxu0 0.0
        %2816 = vmatmul.mubr.f32.gmra.mrb[0].mxu0 %v2348
        %v2817 = vpop.f32.mrb[0].mxu0
        %v2818 = vadd.f32 0.0, %v2817
        %v2819 = vpop.f32.mrb[0].mxu0
        %2820 = vmatprep.mubr.f32.mxu0 0.0
        %2821 = vmatmul.mubr.f32.gmra.mrb[0].mxu0 %v2350
        %v2822 = vpop.f32.mrb[0].mxu0
        %v2823 = vadd.f32 0.0, %v2822
        %v2824 = vpop.f32.mrb[0].mxu0
        %2825 = vmatprep.mubr.f32.mxu0 0.0
        %2826 = vmatmul.mubr.f32.gmra.mrb[0].mxu0 %v2352
        %v2827 = vpop.f32.mrb[0].mxu0
        %v2828 = vadd.f32 0.0, %v2827
        %v2829 = vpop.f32.mrb[0].mxu0
        %2830 = vmatprep.mubr.f32.mxu0 0.0
        %2831 = vmatmul.mubr.f32.gmra.mrb[0].mxu0 %v2354
        %v2832 = vpop.f32.mrb[0].mxu0
        %v2833 = vadd.f32 0.0, %v2832
        %v2834 = vpop.f32.mrb[0].mxu0
        %2835 = vmatprep.mubr.f32.mxu0 0.0
        %2836 = vmatmul.mubr.f32.gmra.mrb[0].mxu0 %v2356
        %v2837 = vpop.f32.mrb[0].mxu0
        %v2838 = vadd.f32 0.0, %v2837
        %v2839 = vpop.f32.mrb[0].mxu0
        %2840 = vmatprep.mubr.f32.mxu0 0.0
        %2841 = vmatmul.mubr.f32.gmra.mrb[0].mxu0 %v2358
        %v2842 = vpop.f32.mrb[0].mxu0
        %v2843 = vadd.f32 0.0, %v2842
        %v2844 = vpop.f32.mrb[0].mxu0
        %2845 = vmatprep.mubr.f32.mxu0 0.0
        %2846 = vmatmul.mubr.f32.gmra.mrb[0].mxu0 %v2360
        %v2847 = vpop.f32.mrb[0].mxu0
        %v2848 = vadd.f32 0.0, %v2847
        %v2849 = vpop.f32.mrb[0].mxu0
        %2850 = vmatprep.mubr.f32.mxu0 0.0
        %2851 = vmatmul.mubr.f32.gmra.mrb[0].mxu0 %v2362
        %v2852 = vpop.f32.mrb[0].mxu0
        %v2853 = vadd.f32 0.0, %v2852
        %v2854 = vpop.f32.mrb[0].mxu0
        %2855 = vmatprep.mubr.f32.mxu0 0.0
        %2856 = vmatmul.mubr.f32.gmra.mrb[0].mxu0 %v2364
        %v2857 = vpop.f32.mrb[0].mxu0
        %v2858 = vadd.f32 0.0, %v2857
        %v2859 = vpop.f32.mrb[0].mxu0
        %2860 = vmatprep.mubr.f32.mxu0 0.0
        %2861 = vmatmul.mubr.f32.gmra.mrb[0].mxu0 %v2366
        %v2862 = vpop.f32.mrb[0].mxu0
        %v2863 = vadd.f32 0.0, %v2862
        %v2864 = vpop.f32.mrb[0].mxu0
        %2865 = vmatprep.mubr.f32.mxu0 0.0
        %2866 = vmatmul.mubr.f32.gmra.mrb[0].mxu0 %v2368
        %v2867 = vpop.f32.mrb[0].mxu0
        %v2868 = vadd.f32 0.0, %v2867
        %v2869 = vpop.f32.mrb[0].mxu0
        %2870 = vmatprep.mubr.f32.mxu0 0.0
        %2871 = vmatmul.mubr.f32.gmra.mrb[0].mxu0 %v2370
        %v2872 = vpop.f32.mrb[0].mxu0
        %v2873 = vadd.f32 0.0, %v2872
        %v2874 = vpop.f32.mrb[0].mxu0
        %2875 = vmatprep.mubr.f32.mxu0 0.0
        %2876 = vmatmul.mubr.f32.gmra.mrb[0].mxu0 %v2372
        %v2877 = vpop.f32.mrb[0].mxu0
        %v2878 = vadd.f32 0.0, %v2877
        %v2879 = vpop.f32.mrb[0].mxu0
        %2880 = vmatprep.mubr.f32.mxu0 0.0
        %2881 = vmatmul.mubr.f32.gmra.mrb[0].mxu0 %v2374
        %v2882 = vpop.f32.mrb[0].mxu0
        %v2883 = vadd.f32 0.0, %v2882
        %v2884 = vpop.f32.mrb[0].mxu0
        %2885 = vmatprep.mubr.f32.mxu0 0.0
        %2886 = vmatmul.mubr.f32.gmra.mrb[0].mxu0 %v2376
        %v2887 = vpop.f32.mrb[0].mxu0
        %v2888 = vadd.f32 0.0, %v2887
        %v2889 = vpop.f32.mrb[0].mxu0
        %2890 = vmatprep.mubr.f32.mxu0 0.0
        %2891 = vmatmul.mubr.f32.gmra.mrb[0].mxu0 %v2378
        %v2892 = vpop.f32.mrb[0].mxu0
        %v2893 = vadd.f32 0.0, %v2892
        %v2894 = vpop.f32.mrb[0].mxu0
        %2895 = vmatprep.mubr.f32.mxu0 0.0
        %2896 = vmatmul.mubr.f32.gmra.mrb[0].mxu0 %v2380
        %v2897 = vpop.f32.mrb[0].mxu0
        %v2898 = vadd.f32 0.0, %v2897
        %v2899 = vpop.f32.mrb[0].mxu0
        %2900 = vmatprep.mubr.f32.mxu0 0.0
        %2901 = vmatmul.mubr.f32.gmra.mrb[0].mxu0 %v2382
        %v2902 = vpop.f32.mrb[0].mxu0
        %v2903 = vadd.f32 0.0, %v2902
        %v2904 = vpop.f32.mrb[0].mxu0
        %2905 = vmatprep.mubr.f32.mxu0 0.0
        %2906 = vmatmul.mubr.f32.gmra.mrb[0].mxu0 %v2384
        %v2907 = vpop.f32.mrb[0].mxu0
        %v2908 = vadd.f32 0.0, %v2907
        %v2909 = vpop.f32.mrb[0].mxu0
        %2910 = vmatprep.mubr.f32.mxu0 0.0
        %2911 = vmatmul.mubr.f32.gmra.mrb[0].mxu0 %v2386
        %v2912 = vpop.f32.mrb[0].mxu0
        %v2913 = vadd.f32 0.0, %v2912
        %v2914 = vpop.f32.mrb[0].mxu0
        %2915 = vmatprep.mubr.f32.mxu0 0.0
        %2916 = vmatmul.mubr.f32.gmra.mrb[0].mxu0 %v2388
        %v2917 = vpop.f32.mrb[0].mxu0
        %v2918 = vadd.f32 0.0, %v2917
        %v2919 = vpop.f32.mrb[0].mxu0
        %2920 = vmatprep.mubr.f32.mxu0 0.0
        %2921 = vmatmul.mubr.f32.gmra.mrb[0].mxu0 %v2390
        %v2922 = vpop.f32.mrb[0].mxu0
        %v2923 = vadd.f32 0.0, %v2922
        %v2924 = vpop.f32.mrb[0].mxu0
        %2925 = vmatprep.mubr.f32.mxu0 0.0
        %2926 = vmatmul.mubr.f32.gmra.mrb[0].mxu0 %v2684
        %v2927 = vpop.f32.mrb[0].mxu0
        %v2928 = vadd.f32 0.0, %v2927
        %v2929 = vpop.f32.mrb[0].mxu0
        %2930 = vmatprep.mubr.f32.mxu0 0.0
        %2931 = vmatmul.mubr.f32.gmra.mrb[0].mxu0 %v2686
        %v2932 = vpop.f32.mrb[0].mxu0
        %v2933 = vadd.f32 0.0, %v2932
        %v2934 = vpop.f32.mrb[0].mxu0
        %2935 = vdwg.mxu0
        %v2936 = vadd.f32 %v2640, %v2758
        %v2937 = vadd.f32 %v2641, %v2763
        %v2938 = vadd.f32 %v2642, %v2768
        %v2939 = vadd.f32 %v2643, %v2773
        %v2940 = vadd.f32 %v2644, %v2778
        %v2941 = vadd.f32 %v2645, %v2783
        %v2942 = vadd.f32 %v2646, %v2788
        %v2943 = vadd.f32 %v2647, %v2793
        %v2944 = vadd.f32 %v2648, %v2798
        %v2945 = vadd.f32 %v2649, %v2803
        %v2946 = vadd.f32 %v2650, %v2808
        %v2947 = vadd.f32 %v2651, %v2813
        %v2948 = vadd.f32 %v2652, %v2818
        %v2949 = vadd.f32 %v2653, %v2823
        %v2950 = vadd.f32 %v2654, %v2828
        %v2951 = vadd.f32 %v2655, %v2833
        %v2952 = vadd.f32 %v2656, %v2838
        %v2953 = vadd.f32 %v2657, %v2843
        %v2954 = vadd.f32 %v2658, %v2848
        %v2955 = vadd.f32 %v2659, %v2853
        %v2956 = vadd.f32 %v2660, %v2858
        %v2957 = vadd.f32 %v2661, %v2863
        %v2958 = vadd.f32 %v2662, %v2868
        %v2959 = vadd.f32 %v2663, %v2873
        %v2960 = vadd.f32 %v2664, %v2878
        %v2961 = vadd.f32 %v2665, %v2883
        %v2962 = vadd.f32 %v2666, %v2888
        %v2963 = vadd.f32 %v2667, %v2893
        %v2964 = vadd.f32 %v2668, %v2898
        %v2965 = vadd.f32 %v2669, %v2903
        %v2966 = vadd.f32 %v2670, %v2908
        %v2967 = vadd.f32 %v2671, %v2913
        %v2968 = vadd.f32 %v2672, %v2918
        %v2969 = vadd.f32 %v2673, %v2923
        %v2970 = vadd.f32 %v2674, %v2928
        %v2971 = vadd.f32 %v2675, %v2933
        %s2972 = scalar_lea.vmem %s1, 28
        %v2973 = vld [vmem:[%s2972] sm:$0xf]
        %vm2974 = vcmask 1042432
        %v2975 = vrot.slane %v294, 5
        %v2976 = vrot.slane %v295, 5
        %v2977 = vsel %vm2974, %v2975, %v2976
        %v2978 = vrot.slane %v296, 5
        %v2979 = vsel %vm2974, %v2976, %v2978
        %v2980 = vrot.slane %v297, 5
        %v2981 = vsel %vm2974, %v2978, %v2980
        %v2982 = vrot.slane %v298, 5
        %v2983 = vsel %vm2974, %v2980, %v2982
        %v2984 = vrot.slane %v299, 5
        %v2985 = vsel %vm2974, %v2982, %v2984
        %v2986 = vrot.slane %v300, 5
        %v2987 = vsel %vm2974, %v2984, %v2986
        %v2988 = vrot.slane %v301, 5
        %v2989 = vsel %vm2974, %v2986, %v2988
        %v2990 = vrot.slane %v302, 5
        %v2991 = vsel %vm2974, %v2988, %v2990
        %v2992 = vrot.slane %v303, 5
        %v2993 = vsel %vm2974, %v2990, %v2992
        %v2994 = vrot.slane %v304, 5
        %v2995 = vsel %vm2974, %v2992, %v2994
        %v2996 = vrot.slane %v305, 5
        %v2997 = vsel %vm2974, %v2994, %v2996
        %v2998 = vrot.slane %v306, 5
        %v2999 = vsel %vm2974, %v2996, %v2998
        %v3000 = vrot.slane %v307, 5
        %v3001 = vsel %vm2974, %v2998, %v3000
        %v3002 = vrot.slane %v308, 5
        %v3003 = vsel %vm2974, %v3000, %v3002
        %v3004 = vrot.slane %v309, 5
        %v3005 = vsel %vm2974, %v3002, %v3004
        %v3006 = vrot.slane %v310, 5
        %v3007 = vsel %vm2974, %v3004, %v3006
        %v3008 = vrot.slane %v311, 5
        %v3009 = vsel %vm2974, %v3006, %v3008
        %v3010 = vrot.slane %v312, 5
        %v3011 = vsel %vm2974, %v3008, %v3010
        %v3012 = vrot.slane %v313, 5
        %v3013 = vsel %vm2974, %v3010, %v3012
        %v3014 = vrot.slane %v314, 5
        %v3015 = vsel %vm2974, %v3012, %v3014
        %v3016 = vrot.slane %v315, 5
        %v3017 = vsel %vm2974, %v3014, %v3016
        %v3018 = vrot.slane %v316, 5
        %v3019 = vsel %vm2974, %v3016, %v3018
        %v3020 = vrot.slane %v317, 5
        %v3021 = vsel %vm2974, %v3018, %v3020
        %v3022 = vrot.slane %v318, 5
        %v3023 = vsel %vm2974, %v3020, %v3022
        %v3024 = vrot.slane %v319, 5
        %v3025 = vsel %vm2974, %v3022, %v3024
        %v3026 = vrot.slane %v320, 5
        %v3027 = vsel %vm2974, %v3024, %v3026
        %v3028 = vrot.slane %v321, 5
        %v3029 = vsel %vm2974, %v3026, %v3028
        %v3030 = vrot.slane %v322, 5
        %v3031 = vsel %vm2974, %v3028, %v3030
        %v3032 = vrot.slane %v323, 5
        %v3033 = vsel %vm2974, %v3030, %v3032
        %v3034 = vrot.slane %v324, 5
        %v3035 = vsel %vm2974, %v3032, %v3034
        %v3036 = vrot.slane %v325, 5
        %v3037 = vsel %vm2974, %v3034, %v3036
        %v3038 = vrot.slane %v326, 5
        %v3039 = vsel %vm2974, %v3036, %v3038
        %v3040 = vrot.slane %v327, 5
        %v3041 = vsel %vm2974, %v3038, %v3040
        %v3042 = vrot.slane %v328, 5
        %v3043 = vsel %vm2974, %v3040, %v3042
        %v3044 = vrot.slane %v329, 5
        %v3045 = vsel %vm2974, %v3042, %v3044
        %v3046 = vrot.slane %v330, 5
        %v3047 = vsel %vm2974, %v3044, %v3046
        %v3048 = vsel %vm442, %v2977, 0
        %v3050 = vsel %vm442, %v2979, 0
        %v3052 = vsel %vm442, %v2981, 0
        %v3054 = vsel %vm442, %v2983, 0
        %v3056 = vsel %vm442, %v2985, 0
        %v3058 = vsel %vm442, %v2987, 0
        %v3060 = vsel %vm442, %v2989, 0
        %v3062 = vsel %vm442, %v2991, 0
        %v3064 = vsel %vm442, %v2993, 0
        %v3066 = vsel %vm442, %v2995, 0
        %v3068 = vsel %vm442, %v2997, 0
        %v3070 = vsel %vm442, %v2999, 0
        %v3072 = vsel %vm442, %v3001, 0
        %v3074 = vsel %vm442, %v3003, 0
        %v3076 = vsel %vm442, %v3005, 0
        %v3078 = vsel %vm442, %v3007, 0
        %v3080 = vsel %vm442, %v3009, 0
        %v3082 = vsel %vm442, %v3011, 0
        %v3084 = vsel %vm442, %v3013, 0
        %v3086 = vsel %vm442, %v3015, 0
        %v3088 = vsel %vm442, %v3017, 0
        %v3090 = vsel %vm442, %v3019, 0
        %v3092 = vsel %vm442, %v3021, 0
        %v3094 = vsel %vm442, %v3023, 0
        %v3096 = vsel %vm442, %v3025, 0
        %v3098 = vsel %vm442, %v3027, 0
        %v3100 = vsel %vm442, %v3029, 0
        %v3102 = vsel %vm442, %v3031, 0
        %v3104 = vsel %vm442, %v3033, 0
        %v3106 = vsel %vm442, %v3035, 0
        %v3108 = vsel %vm442, %v3037, 0
        %v3110 = vsel %vm442, %v3039, 0
        %v3112 = vsel %vm442, %v3041, 0
        %v3114 = vsel %vm442, %v3043, 0
        %v3116 = vsel %vm442, %v3045, 0
        %v3118 = vsel %vm442, %v3047, 0
        %v3121 = vsel %vm515, %v2973, 0
        %3123 = vmatprep.subr.mxu0 0.0
        %3124 = vmatpush1.msra.mxu0 %v3121
        %3125 = vmatprep.subr.mxu0 0.0
        %3126 = vmatpush1.msra.mxu0 0.0
        %3127 = vmatprep.subr.mxu0 0.0
        %3128 = vmatpush1.msra.mxu0 0.0
        %3129 = vmatprep.subr.mxu0 0.0
        %3130 = vmatpush1.msra.mxu0 0.0
        %3131 = vmatprep.subr.mxu0 0.0
        %3132 = vmatpush1.msra.mxu0 0.0
        %3133 = vmatprep.subr.mxu0 0.0
        %3134 = vmatpush1.msra.mxu0 0.0
        %3135 = vmatprep.subr.mxu0 0.0
        %3136 = vmatpush1.msra.mxu0 0.0
        %3137 = vmatprep.subr.mxu0 0.0
        %3138 = vmatpush1.msra.mxu0 0.0
        %3139 = vmatprep.subr.mxu0 0.0
        %3140 = vmatpush1.msra.mxu0 0.0
        %3141 = vmatprep.subr.mxu0 0.0
        %3142 = vmatpush1.msra.mxu0 0.0
        %3143 = vmatprep.subr.mxu0 0.0
        %3144 = vmatpush1.msra.mxu0 0.0
        %3145 = vmatprep.subr.mxu0 0.0
        %3146 = vmatpush1.msra.mxu0 0.0
        %3147 = vmatprep.subr.mxu0 0.0
        %3148 = vmatpush1.msra.mxu0 0.0
        %3149 = vmatprep.subr.mxu0 0.0
        %3150 = vmatpush1.msra.mxu0 0.0
        %3151 = vmatprep.subr.mxu0 0.0
        %3152 = vmatpush1.msra.mxu0 0.0
        %3153 = vmatprep.subr.mxu0 0.0
        %3154 = vmatpush1.msra.mxu0 0.0
        %3155 = vmatprep.subr.mxu0 0.0
        %3156 = vmatpush1.msra.mxu0 0.0
        %3157 = vmatprep.subr.mxu0 0.0
        %3158 = vmatpush1.msra.mxu0 0.0
        %3159 = vmatprep.subr.mxu0 0.0
        %3160 = vmatpush1.msra.mxu0 0.0
        %3161 = vmatprep.subr.mxu0 0.0
        %3162 = vmatpush1.msra.mxu0 0.0
        %3163 = vmatprep.subr.mxu0 0.0
        %3164 = vmatpush1.msra.mxu0 0.0
        %3165 = vmatprep.subr.mxu0 0.0
        %3166 = vmatpush1.msra.mxu0 0.0
        %3167 = vmatprep.subr.mxu0 0.0
        %3168 = vmatpush1.msra.mxu0 0.0
        %3169 = vmatprep.subr.mxu0 0.0
        %3170 = vmatpush1.msra.mxu0 0.0
        %3171 = vmatprep.subr.mxu0 0.0
        %3172 = vmatpush1.msra.mxu0 0.0
        %3173 = vmatprep.subr.mxu0 0.0
        %3174 = vmatpush1.msra.mxu0 0.0
        %3175 = vmatprep.subr.mxu0 0.0
        %3176 = vmatpush1.msra.mxu0 0.0
        %3177 = vmatprep.subr.mxu0 0.0
        %3178 = vmatpush1.msra.mxu0 0.0
        %3179 = vmatprep.subr.mxu0 0.0
        %3180 = vmatpush1.msra.mxu0 0.0
        %3181 = vmatprep.subr.mxu0 0.0
        %3182 = vmatpush1.msra.mxu0 0.0
        %3183 = vmatprep.subr.mxu0 0.0
        %3184 = vmatpush1.msra.mxu0 0.0
        %3185 = vmatprep.subr.mxu0 0.0
        %3186 = vmatpush1.msra.mxu0 0.0
        %3187 = vmatprep.mubr.f32.mxu0 0.0
        %3188 = vmatmul.mubr.f32.gmra.mrb[0].mxu0 %v3048
        %v3189 = vpop.f32.mrb[0].mxu0
        %v3190 = vadd.f32 0.0, %v3189
        %v3191 = vpop.f32.mrb[0].mxu0
        %3192 = vmatprep.mubr.f32.mxu0 0.0
        %3193 = vmatmul.mubr.f32.gmra.mrb[0].mxu0 %v3050
        %v3194 = vpop.f32.mrb[0].mxu0
        %v3195 = vadd.f32 0.0, %v3194
        %v3196 = vpop.f32.mrb[0].mxu0
        %3197 = vmatprep.mubr.f32.mxu0 0.0
        %3198 = vmatmul.mubr.f32.gmra.mrb[0].mxu0 %v3052
        %v3199 = vpop.f32.mrb[0].mxu0
        %v3200 = vadd.f32 0.0, %v3199
        %v3201 = vpop.f32.mrb[0].mxu0
        %3202 = vmatprep.mubr.f32.mxu0 0.0
        %3203 = vmatmul.mubr.f32.gmra.mrb[0].mxu0 %v3054
        %v3204 = vpop.f32.mrb[0].mxu0
        %v3205 = vadd.f32 0.0, %v3204
        %v3206 = vpop.f32.mrb[0].mxu0
        %3207 = vmatprep.mubr.f32.mxu0 0.0
        %3208 = vmatmul.mubr.f32.gmra.mrb[0].mxu0 %v3056
        %v3209 = vpop.f32.mrb[0].mxu0
        %v3210 = vadd.f32 0.0, %v3209
        %v3211 = vpop.f32.mrb[0].mxu0
        %3212 = vmatprep.mubr.f32.mxu0 0.0
        %3213 = vmatmul.mubr.f32.gmra.mrb[0].mxu0 %v3058
        %v3214 = vpop.f32.mrb[0].mxu0
        %v3215 = vadd.f32 0.0, %v3214
        %v3216 = vpop.f32.mrb[0].mxu0
        %3217 = vmatprep.mubr.f32.mxu0 0.0
        %3218 = vmatmul.mubr.f32.gmra.mrb[0].mxu0 %v3060
        %v3219 = vpop.f32.mrb[0].mxu0
        %v3220 = vadd.f32 0.0, %v3219
        %v3221 = vpop.f32.mrb[0].mxu0
        %3222 = vmatprep.mubr.f32.mxu0 0.0
        %3223 = vmatmul.mubr.f32.gmra.mrb[0].mxu0 %v3062
        %v3224 = vpop.f32.mrb[0].mxu0
        %v3225 = vadd.f32 0.0, %v3224
        %v3226 = vpop.f32.mrb[0].mxu0
        %3227 = vmatprep.mubr.f32.mxu0 0.0
        %3228 = vmatmul.mubr.f32.gmra.mrb[0].mxu0 %v3064
        %v3229 = vpop.f32.mrb[0].mxu0
        %v3230 = vadd.f32 0.0, %v3229
        %v3231 = vpop.f32.mrb[0].mxu0
        %3232 = vmatprep.mubr.f32.mxu0 0.0
        %3233 = vmatmul.mubr.f32.gmra.mrb[0].mxu0 %v3066
        %v3234 = vpop.f32.mrb[0].mxu0
        %v3235 = vadd.f32 0.0, %v3234
        %v3236 = vpop.f32.mrb[0].mxu0
        %3237 = vmatprep.mubr.f32.mxu0 0.0
        %3238 = vmatmul.mubr.f32.gmra.mrb[0].mxu0 %v3068
        %v3239 = vpop.f32.mrb[0].mxu0
        %v3240 = vadd.f32 0.0, %v3239
        %v3241 = vpop.f32.mrb[0].mxu0
        %3242 = vmatprep.mubr.f32.mxu0 0.0
        %3243 = vmatmul.mubr.f32.gmra.mrb[0].mxu0 %v3070
        %v3244 = vpop.f32.mrb[0].mxu0
        %v3245 = vadd.f32 0.0, %v3244
        %v3246 = vpop.f32.mrb[0].mxu0
        %3247 = vmatprep.mubr.f32.mxu0 0.0
        %3248 = vmatmul.mubr.f32.gmra.mrb[0].mxu0 %v3072
        %v3249 = vpop.f32.mrb[0].mxu0
        %v3250 = vadd.f32 0.0, %v3249
        %v3251 = vpop.f32.mrb[0].mxu0
        %3252 = vmatprep.mubr.f32.mxu0 0.0
        %3253 = vmatmul.mubr.f32.gmra.mrb[0].mxu0 %v3074
        %v3254 = vpop.f32.mrb[0].mxu0
        %v3255 = vadd.f32 0.0, %v3254
        %v3256 = vpop.f32.mrb[0].mxu0
        %3257 = vmatprep.mubr.f32.mxu0 0.0
        %3258 = vmatmul.mubr.f32.gmra.mrb[0].mxu0 %v3076
        %v3259 = vpop.f32.mrb[0].mxu0
        %v3260 = vadd.f32 0.0, %v3259
        %v3261 = vpop.f32.mrb[0].mxu0
        %3262 = vmatprep.mubr.f32.mxu0 0.0
        %3263 = vmatmul.mubr.f32.gmra.mrb[0].mxu0 %v3078
        %v3264 = vpop.f32.mrb[0].mxu0
        %v3265 = vadd.f32 0.0, %v3264
        %v3266 = vpop.f32.mrb[0].mxu0
        %3267 = vmatprep.mubr.f32.mxu0 0.0
        %3268 = vmatmul.mubr.f32.gmra.mrb[0].mxu0 %v3080
        %v3269 = vpop.f32.mrb[0].mxu0
        %v3270 = vadd.f32 0.0, %v3269
        %v3271 = vpop.f32.mrb[0].mxu0
        %3272 = vmatprep.mubr.f32.mxu0 0.0
        %3273 = vmatmul.mubr.f32.gmra.mrb[0].mxu0 %v3082
        %v3274 = vpop.f32.mrb[0].mxu0
        %v3275 = vadd.f32 0.0, %v3274
        %v3276 = vpop.f32.mrb[0].mxu0
        %3277 = vmatprep.mubr.f32.mxu0 0.0
        %3278 = vmatmul.mubr.f32.gmra.mrb[0].mxu0 %v3084
        %v3279 = vpop.f32.mrb[0].mxu0
        %v3280 = vadd.f32 0.0, %v3279
        %v3281 = vpop.f32.mrb[0].mxu0
        %3282 = vmatprep.mubr.f32.mxu0 0.0
        %3283 = vmatmul.mubr.f32.gmra.mrb[0].mxu0 %v3086
        %v3284 = vpop.f32.mrb[0].mxu0
        %v3285 = vadd.f32 0.0, %v3284
        %v3286 = vpop.f32.mrb[0].mxu0
        %3287 = vmatprep.mubr.f32.mxu0 0.0
        %3288 = vmatmul.mubr.f32.gmra.mrb[0].mxu0 %v3088
        %v3289 = vpop.f32.mrb[0].mxu0
        %v3290 = vadd.f32 0.0, %v3289
        %v3291 = vpop.f32.mrb[0].mxu0
        %3292 = vmatprep.mubr.f32.mxu0 0.0
        %3293 = vmatmul.mubr.f32.gmra.mrb[0].mxu0 %v3090
        %v3294 = vpop.f32.mrb[0].mxu0
        %v3295 = vadd.f32 0.0, %v3294
        %v3296 = vpop.f32.mrb[0].mxu0
        %3297 = vmatprep.mubr.f32.mxu0 0.0
        %3298 = vmatmul.mubr.f32.gmra.mrb[0].mxu0 %v3092
        %v3299 = vpop.f32.mrb[0].mxu0
        %v3300 = vadd.f32 0.0, %v3299
        %v3301 = vpop.f32.mrb[0].mxu0
        %3302 = vmatprep.mubr.f32.mxu0 0.0
        %3303 = vmatmul.mubr.f32.gmra.mrb[0].mxu0 %v3094
        %v3304 = vpop.f32.mrb[0].mxu0
        %v3305 = vadd.f32 0.0, %v3304
        %v3306 = vpop.f32.mrb[0].mxu0
        %3307 = vmatprep.mubr.f32.mxu0 0.0
        %3308 = vmatmul.mubr.f32.gmra.mrb[0].mxu0 %v3096
        %v3309 = vpop.f32.mrb[0].mxu0
        %v3310 = vadd.f32 0.0, %v3309
        %v3311 = vpop.f32.mrb[0].mxu0
        %3312 = vmatprep.mubr.f32.mxu0 0.0
        %3313 = vmatmul.mubr.f32.gmra.mrb[0].mxu0 %v3098
        %v3314 = vpop.f32.mrb[0].mxu0
        %v3315 = vadd.f32 0.0, %v3314
        %v3316 = vpop.f32.mrb[0].mxu0
        %3317 = vmatprep.mubr.f32.mxu0 0.0
        %3318 = vmatmul.mubr.f32.gmra.mrb[0].mxu0 %v3100
        %v3319 = vpop.f32.mrb[0].mxu0
        %v3320 = vadd.f32 0.0, %v3319
        %v3321 = vpop.f32.mrb[0].mxu0
        %3322 = vmatprep.mubr.f32.mxu0 0.0
        %3323 = vmatmul.mubr.f32.gmra.mrb[0].mxu0 %v3102
        %v3324 = vpop.f32.mrb[0].mxu0
        %v3325 = vadd.f32 0.0, %v3324
        %v3326 = vpop.f32.mrb[0].mxu0
        %3327 = vmatprep.mubr.f32.mxu0 0.0
        %3328 = vmatmul.mubr.f32.gmra.mrb[0].mxu0 %v3104
        %v3329 = vpop.f32.mrb[0].mxu0
        %v3330 = vadd.f32 0.0, %v3329
        %v3331 = vpop.f32.mrb[0].mxu0
        %3332 = vmatprep.mubr.f32.mxu0 0.0
        %3333 = vmatmul.mubr.f32.gmra.mrb[0].mxu0 %v3106
        %v3334 = vpop.f32.mrb[0].mxu0
        %v3335 = vadd.f32 0.0, %v3334
        %v3336 = vpop.f32.mrb[0].mxu0
        %3337 = vmatprep.mubr.f32.mxu0 0.0
        %3338 = vmatmul.mubr.f32.gmra.mrb[0].mxu0 %v3108
        %v3339 = vpop.f32.mrb[0].mxu0
        %v3340 = vadd.f32 0.0, %v3339
        %v3341 = vpop.f32.mrb[0].mxu0
        %3342 = vmatprep.mubr.f32.mxu0 0.0
        %3343 = vmatmul.mubr.f32.gmra.mrb[0].mxu0 %v3110
        %v3344 = vpop.f32.mrb[0].mxu0
        %v3345 = vadd.f32 0.0, %v3344
        %v3346 = vpop.f32.mrb[0].mxu0
        %3347 = vmatprep.mubr.f32.mxu0 0.0
        %3348 = vmatmul.mubr.f32.gmra.mrb[0].mxu0 %v3112
        %v3349 = vpop.f32.mrb[0].mxu0
        %v3350 = vadd.f32 0.0, %v3349
        %v3351 = vpop.f32.mrb[0].mxu0
        %3352 = vmatprep.mubr.f32.mxu0 0.0
        %3353 = vmatmul.mubr.f32.gmra.mrb[0].mxu0 %v3114
        %v3354 = vpop.f32.mrb[0].mxu0
        %v3355 = vadd.f32 0.0, %v3354
        %v3356 = vpop.f32.mrb[0].mxu0
        %3357 = vmatprep.mubr.f32.mxu0 0.0
        %3358 = vmatmul.mubr.f32.gmra.mrb[0].mxu0 %v3116
        %v3359 = vpop.f32.mrb[0].mxu0
        %v3360 = vadd.f32 0.0, %v3359
        %v3361 = vpop.f32.mrb[0].mxu0
        %3362 = vmatprep.mubr.f32.mxu0 0.0
        %3363 = vmatmul.mubr.f32.gmra.mrb[0].mxu0 %v3118
        %v3364 = vpop.f32.mrb[0].mxu0
        %v3365 = vadd.f32 0.0, %v3364
        %v3366 = vpop.f32.mrb[0].mxu0
        %3367 = vdwg.mxu0
        %v3368 = vadd.f32 %v2936, %v3190
        %v3369 = vadd.f32 %v2937, %v3195
        %v3370 = vadd.f32 %v2938, %v3200
        %v3371 = vadd.f32 %v2939, %v3205
        %v3372 = vadd.f32 %v2940, %v3210
        %v3373 = vadd.f32 %v2941, %v3215
        %v3374 = vadd.f32 %v2942, %v3220
        %v3375 = vadd.f32 %v2943, %v3225
        %v3376 = vadd.f32 %v2944, %v3230
        %v3377 = vadd.f32 %v2945, %v3235
        %v3378 = vadd.f32 %v2946, %v3240
        %v3379 = vadd.f32 %v2947, %v3245
        %v3380 = vadd.f32 %v2948, %v3250
        %v3381 = vadd.f32 %v2949, %v3255
        %v3382 = vadd.f32 %v2950, %v3260
        %v3383 = vadd.f32 %v2951, %v3265
        %v3384 = vadd.f32 %v2952, %v3270
        %v3385 = vadd.f32 %v2953, %v3275
        %v3386 = vadd.f32 %v2954, %v3280
        %v3387 = vadd.f32 %v2955, %v3285
        %v3388 = vadd.f32 %v2956, %v3290
        %v3389 = vadd.f32 %v2957, %v3295
        %v3390 = vadd.f32 %v2958, %v3300
        %v3391 = vadd.f32 %v2959, %v3305
        %v3392 = vadd.f32 %v2960, %v3310
        %v3393 = vadd.f32 %v2961, %v3315
        %v3394 = vadd.f32 %v2962, %v3320
        %v3395 = vadd.f32 %v2963, %v3325
        %v3396 = vadd.f32 %v2964, %v3330
        %v3397 = vadd.f32 %v2965, %v3335
        %v3398 = vadd.f32 %v2966, %v3340
        %v3399 = vadd.f32 %v2967, %v3345
        %v3400 = vadd.f32 %v2968, %v3350
        %v3401 = vadd.f32 %v2969, %v3355
        %v3402 = vadd.f32 %v2970, %v3360
        %v3403 = vadd.f32 %v2971, %v3365
        %s3404 = scalar_lea.vmem %s1, 32
        %v3405 = vld [vmem:[%s3404] sm:$0xf]
        %vm3406 = vcmask 1041408
        %v3407 = vrot.slane %v294, 6
        %v3408 = vrot.slane %v295, 6
        %v3409 = vsel %vm3406, %v3407, %v3408
        %v3410 = vrot.slane %v296, 6
        %v3411 = vsel %vm3406, %v3408, %v3410
        %v3412 = vrot.slane %v297, 6
        %v3413 = vsel %vm3406, %v3410, %v3412
        %v3414 = vrot.slane %v298, 6
        %v3415 = vsel %vm3406, %v3412, %v3414
        %v3416 = vrot.slane %v299, 6
        %v3417 = vsel %vm3406, %v3414, %v3416
        %v3418 = vrot.slane %v300, 6
        %v3419 = vsel %vm3406, %v3416, %v3418
        %v3420 = vrot.slane %v301, 6
        %v3421 = vsel %vm3406, %v3418, %v3420
        %v3422 = vrot.slane %v302, 6
        %v3423 = vsel %vm3406, %v3420, %v3422
        %v3424 = vrot.slane %v303, 6
        %v3425 = vsel %vm3406, %v3422, %v3424
        %v3426 = vrot.slane %v304, 6
        %v3427 = vsel %vm3406, %v3424, %v3426
        %v3428 = vrot.slane %v305, 6
        %v3429 = vsel %vm3406, %v3426, %v3428
        %v3430 = vrot.slane %v306, 6
        %v3431 = vsel %vm3406, %v3428, %v3430
        %v3432 = vrot.slane %v307, 6
        %v3433 = vsel %vm3406, %v3430, %v3432
        %v3434 = vrot.slane %v308, 6
        %v3435 = vsel %vm3406, %v3432, %v3434
        %v3436 = vrot.slane %v309, 6
        %v3437 = vsel %vm3406, %v3434, %v3436
        %v3438 = vrot.slane %v310, 6
        %v3439 = vsel %vm3406, %v3436, %v3438
        %v3440 = vrot.slane %v311, 6
        %v3441 = vsel %vm3406, %v3438, %v3440
        %v3442 = vrot.slane %v312, 6
        %v3443 = vsel %vm3406, %v3440, %v3442
        %v3444 = vrot.slane %v313, 6
        %v3445 = vsel %vm3406, %v3442, %v3444
        %v3446 = vrot.slane %v314, 6
        %v3447 = vsel %vm3406, %v3444, %v3446
        %v3448 = vrot.slane %v315, 6
        %v3449 = vsel %vm3406, %v3446, %v3448
        %v3450 = vrot.slane %v316, 6
        %v3451 = vsel %vm3406, %v3448, %v3450
        %v3452 = vrot.slane %v317, 6
        %v3453 = vsel %vm3406, %v3450, %v3452
        %v3454 = vrot.slane %v318, 6
        %v3455 = vsel %vm3406, %v3452, %v3454
        %v3456 = vrot.slane %v319, 6
        %v3457 = vsel %vm3406, %v3454, %v3456
        %v3458 = vrot.slane %v320, 6
        %v3459 = vsel %vm3406, %v3456, %v3458
        %v3460 = vrot.slane %v321, 6
        %v3461 = vsel %vm3406, %v3458, %v3460
        %v3462 = vrot.slane %v322, 6
        %v3463 = vsel %vm3406, %v3460, %v3462
        %v3464 = vrot.slane %v323, 6
        %v3465 = vsel %vm3406, %v3462, %v3464
        %v3466 = vrot.slane %v324, 6
        %v3467 = vsel %vm3406, %v3464, %v3466
        %v3468 = vrot.slane %v325, 6
        %v3469 = vsel %vm3406, %v3466, %v3468
        %v3470 = vrot.slane %v326, 6
        %v3471 = vsel %vm3406, %v3468, %v3470
        %v3472 = vrot.slane %v327, 6
        %v3473 = vsel %vm3406, %v3470, %v3472
        %v3474 = vrot.slane %v328, 6
        %v3475 = vsel %vm3406, %v3472, %v3474
        %v3476 = vrot.slane %v329, 6
        %v3477 = vsel %vm3406, %v3474, %v3476
        %v3478 = vrot.slane %v330, 6
        %v3479 = vsel %vm3406, %v3476, %v3478
        %v3480 = vsel %vm442, %v3409, 0
        %v3482 = vsel %vm442, %v3411, 0
        %v3484 = vsel %vm442, %v3413, 0
        %v3486 = vsel %vm442, %v3415, 0
        %v3488 = vsel %vm442, %v3417, 0
        %v3490 = vsel %vm442, %v3419, 0
        %v3492 = vsel %vm442, %v3421, 0
        %v3494 = vsel %vm442, %v3423, 0
        %v3496 = vsel %vm442, %v3425, 0
        %v3498 = vsel %vm442, %v3427, 0
        %v3500 = vsel %vm442, %v3429, 0
        %v3502 = vsel %vm442, %v3431, 0
        %v3504 = vsel %vm442, %v3433, 0
        %v3506 = vsel %vm442, %v3435, 0
        %v3508 = vsel %vm442, %v3437, 0
        %v3510 = vsel %vm442, %v3439, 0
        %v3512 = vsel %vm442, %v3441, 0
        %v3514 = vsel %vm442, %v3443, 0
        %v3516 = vsel %vm442, %v3445, 0
        %v3518 = vsel %vm442, %v3447, 0
        %v3520 = vsel %vm442, %v3449, 0
        %v3522 = vsel %vm442, %v3451, 0
        %v3524 = vsel %vm442, %v3453, 0
        %v3526 = vsel %vm442, %v3455, 0
        %v3528 = vsel %vm442, %v3457, 0
        %v3530 = vsel %vm442, %v3459, 0
        %v3532 = vsel %vm442, %v3461, 0
        %v3534 = vsel %vm442, %v3463, 0
        %v3536 = vsel %vm442, %v3465, 0
        %v3538 = vsel %vm442, %v3467, 0
        %v3540 = vsel %vm442, %v3469, 0
        %v3542 = vsel %vm442, %v3471, 0
        %v3544 = vsel %vm442, %v3473, 0
        %v3546 = vsel %vm442, %v3475, 0
        %v3548 = vsel %vm442, %v3477, 0
        %v3550 = vsel %vm442, %v3479, 0
        %v3553 = vsel %vm515, %v3405, 0
        %3555 = vmatprep.subr.mxu0 0.0
        %3556 = vmatpush1.msra.mxu0 %v3553
        %3557 = vmatprep.subr.mxu0 0.0
        %3558 = vmatpush1.msra.mxu0 0.0
        %3559 = vmatprep.subr.mxu0 0.0
        %3560 = vmatpush1.msra.mxu0 0.0
        %3561 = vmatprep.subr.mxu0 0.0
        %3562 = vmatpush1.msra.mxu0 0.0
        %3563 = vmatprep.subr.mxu0 0.0
        %3564 = vmatpush1.msra.mxu0 0.0
        %3565 = vmatprep.subr.mxu0 0.0
        %3566 = vmatpush1.msra.mxu0 0.0
        %3567 = vmatprep.subr.mxu0 0.0
        %3568 = vmatpush1.msra.mxu0 0.0
        %3569 = vmatprep.subr.mxu0 0.0
        %3570 = vmatpush1.msra.mxu0 0.0
        %3571 = vmatprep.subr.mxu0 0.0
        %3572 = vmatpush1.msra.mxu0 0.0
        %3573 = vmatprep.subr.mxu0 0.0
        %3574 = vmatpush1.msra.mxu0 0.0
        %3575 = vmatprep.subr.mxu0 0.0
        %3576 = vmatpush1.msra.mxu0 0.0
        %3577 = vmatprep.subr.mxu0 0.0
        %3578 = vmatpush1.msra.mxu0 0.0
        %3579 = vmatprep.subr.mxu0 0.0
        %3580 = vmatpush1.msra.mxu0 0.0
        %3581 = vmatprep.subr.mxu0 0.0
        %3582 = vmatpush1.msra.mxu0 0.0
        %3583 = vmatprep.subr.mxu0 0.0
        %3584 = vmatpush1.msra.mxu0 0.0
        %3585 = vmatprep.subr.mxu0 0.0
        %3586 = vmatpush1.msra.mxu0 0.0
        %3587 = vmatprep.subr.mxu0 0.0
        %3588 = vmatpush1.msra.mxu0 0.0
        %3589 = vmatprep.subr.mxu0 0.0
        %3590 = vmatpush1.msra.mxu0 0.0
        %3591 = vmatprep.subr.mxu0 0.0
        %3592 = vmatpush1.msra.mxu0 0.0
        %3593 = vmatprep.subr.mxu0 0.0
        %3594 = vmatpush1.msra.mxu0 0.0
        %3595 = vmatprep.subr.mxu0 0.0
        %3596 = vmatpush1.msra.mxu0 0.0
        %3597 = vmatprep.subr.mxu0 0.0
        %3598 = vmatpush1.msra.mxu0 0.0
        %3599 = vmatprep.subr.mxu0 0.0
        %3600 = vmatpush1.msra.mxu0 0.0
        %3601 = vmatprep.subr.mxu0 0.0
        %3602 = vmatpush1.msra.mxu0 0.0
        %3603 = vmatprep.subr.mxu0 0.0
        %3604 = vmatpush1.msra.mxu0 0.0
        %3605 = vmatprep.subr.mxu0 0.0
        %3606 = vmatpush1.msra.mxu0 0.0
        %3607 = vmatprep.subr.mxu0 0.0
        %3608 = vmatpush1.msra.mxu0 0.0
        %3609 = vmatprep.subr.mxu0 0.0
        %3610 = vmatpush1.msra.mxu0 0.0
        %3611 = vmatprep.subr.mxu0 0.0
        %3612 = vmatpush1.msra.mxu0 0.0
        %3613 = vmatprep.subr.mxu0 0.0
        %3614 = vmatpush1.msra.mxu0 0.0
        %3615 = vmatprep.subr.mxu0 0.0
        %3616 = vmatpush1.msra.mxu0 0.0
        %3617 = vmatprep.subr.mxu0 0.0
        %3618 = vmatpush1.msra.mxu0 0.0
        %3619 = vmatprep.mubr.f32.mxu0 0.0
        %3620 = vmatmul.mubr.f32.gmra.mrb[0].mxu0 %v3480
        %v3621 = vpop.f32.mrb[0].mxu0
        %v3622 = vadd.f32 0.0, %v3621
        %v3623 = vpop.f32.mrb[0].mxu0
        %3624 = vmatprep.mubr.f32.mxu0 0.0
        %3625 = vmatmul.mubr.f32.gmra.mrb[0].mxu0 %v3482
        %v3626 = vpop.f32.mrb[0].mxu0
        %v3627 = vadd.f32 0.0, %v3626
        %v3628 = vpop.f32.mrb[0].mxu0
        %3629 = vmatprep.mubr.f32.mxu0 0.0
        %3630 = vmatmul.mubr.f32.gmra.mrb[0].mxu0 %v3484
        %v3631 = vpop.f32.mrb[0].mxu0
        %v3632 = vadd.f32 0.0, %v3631
        %v3633 = vpop.f32.mrb[0].mxu0
        %3634 = vmatprep.mubr.f32.mxu0 0.0
        %3635 = vmatmul.mubr.f32.gmra.mrb[0].mxu0 %v3486
        %v3636 = vpop.f32.mrb[0].mxu0
        %v3637 = vadd.f32 0.0, %v3636
        %v3638 = vpop.f32.mrb[0].mxu0
        %3639 = vmatprep.mubr.f32.mxu0 0.0
        %3640 = vmatmul.mubr.f32.gmra.mrb[0].mxu0 %v3488
        %v3641 = vpop.f32.mrb[0].mxu0
        %v3642 = vadd.f32 0.0, %v3641
        %v3643 = vpop.f32.mrb[0].mxu0
        %3644 = vmatprep.mubr.f32.mxu0 0.0
        %3645 = vmatmul.mubr.f32.gmra.mrb[0].mxu0 %v3490
        %v3646 = vpop.f32.mrb[0].mxu0
        %v3647 = vadd.f32 0.0, %v3646
        %v3648 = vpop.f32.mrb[0].mxu0
        %3649 = vmatprep.mubr.f32.mxu0 0.0
        %3650 = vmatmul.mubr.f32.gmra.mrb[0].mxu0 %v3492
        %v3651 = vpop.f32.mrb[0].mxu0
        %v3652 = vadd.f32 0.0, %v3651
        %v3653 = vpop.f32.mrb[0].mxu0
        %3654 = vmatprep.mubr.f32.mxu0 0.0
        %3655 = vmatmul.mubr.f32.gmra.mrb[0].mxu0 %v3494
        %v3656 = vpop.f32.mrb[0].mxu0
        %v3657 = vadd.f32 0.0, %v3656
        %v3658 = vpop.f32.mrb[0].mxu0
        %3659 = vmatprep.mubr.f32.mxu0 0.0
        %3660 = vmatmul.mubr.f32.gmra.mrb[0].mxu0 %v3496
        %v3661 = vpop.f32.mrb[0].mxu0
        %v3662 = vadd.f32 0.0, %v3661
        %v3663 = vpop.f32.mrb[0].mxu0
        %3664 = vmatprep.mubr.f32.mxu0 0.0
        %3665 = vmatmul.mubr.f32.gmra.mrb[0].mxu0 %v3498
        %v3666 = vpop.f32.mrb[0].mxu0
        %v3667 = vadd.f32 0.0, %v3666
        %v3668 = vpop.f32.mrb[0].mxu0
        %3669 = vmatprep.mubr.f32.mxu0 0.0
        %3670 = vmatmul.mubr.f32.gmra.mrb[0].mxu0 %v3500
        %v3671 = vpop.f32.mrb[0].mxu0
        %v3672 = vadd.f32 0.0, %v3671
        %v3673 = vpop.f32.mrb[0].mxu0
        %3674 = vmatprep.mubr.f32.mxu0 0.0
        %3675 = vmatmul.mubr.f32.gmra.mrb[0].mxu0 %v3502
        %v3676 = vpop.f32.mrb[0].mxu0
        %v3677 = vadd.f32 0.0, %v3676
        %v3678 = vpop.f32.mrb[0].mxu0
        %3679 = vmatprep.mubr.f32.mxu0 0.0
        %3680 = vmatmul.mubr.f32.gmra.mrb[0].mxu0 %v3504
        %v3681 = vpop.f32.mrb[0].mxu0
        %v3682 = vadd.f32 0.0, %v3681
        %v3683 = vpop.f32.mrb[0].mxu0
        %3684 = vmatprep.mubr.f32.mxu0 0.0
        %3685 = vmatmul.mubr.f32.gmra.mrb[0].mxu0 %v3506
        %v3686 = vpop.f32.mrb[0].mxu0
        %v3687 = vadd.f32 0.0, %v3686
        %v3688 = vpop.f32.mrb[0].mxu0
        %3689 = vmatprep.mubr.f32.mxu0 0.0
        %3690 = vmatmul.mubr.f32.gmra.mrb[0].mxu0 %v3508
        %v3691 = vpop.f32.mrb[0].mxu0
        %v3692 = vadd.f32 0.0, %v3691
        %v3693 = vpop.f32.mrb[0].mxu0
        %3694 = vmatprep.mubr.f32.mxu0 0.0
        %3695 = vmatmul.mubr.f32.gmra.mrb[0].mxu0 %v3510
        %v3696 = vpop.f32.mrb[0].mxu0
        %v3697 = vadd.f32 0.0, %v3696
        %v3698 = vpop.f32.mrb[0].mxu0
        %3699 = vmatprep.mubr.f32.mxu0 0.0
        %3700 = vmatmul.mubr.f32.gmra.mrb[0].mxu0 %v3512
        %v3701 = vpop.f32.mrb[0].mxu0
        %v3702 = vadd.f32 0.0, %v3701
        %v3703 = vpop.f32.mrb[0].mxu0
        %3704 = vmatprep.mubr.f32.mxu0 0.0
        %3705 = vmatmul.mubr.f32.gmra.mrb[0].mxu0 %v3514
        %v3706 = vpop.f32.mrb[0].mxu0
        %v3707 = vadd.f32 0.0, %v3706
        %v3708 = vpop.f32.mrb[0].mxu0
        %3709 = vmatprep.mubr.f32.mxu0 0.0
        %3710 = vmatmul.mubr.f32.gmra.mrb[0].mxu0 %v3516
        %v3711 = vpop.f32.mrb[0].mxu0
        %v3712 = vadd.f32 0.0, %v3711
        %v3713 = vpop.f32.mrb[0].mxu0
        %3714 = vmatprep.mubr.f32.mxu0 0.0
        %3715 = vmatmul.mubr.f32.gmra.mrb[0].mxu0 %v3518
        %v3716 = vpop.f32.mrb[0].mxu0
        %v3717 = vadd.f32 0.0, %v3716
        %v3718 = vpop.f32.mrb[0].mxu0
        %3719 = vmatprep.mubr.f32.mxu0 0.0
        %3720 = vmatmul.mubr.f32.gmra.mrb[0].mxu0 %v3520
        %v3721 = vpop.f32.mrb[0].mxu0
        %v3722 = vadd.f32 0.0, %v3721
        %v3723 = vpop.f32.mrb[0].mxu0
        %3724 = vmatprep.mubr.f32.mxu0 0.0
        %3725 = vmatmul.mubr.f32.gmra.mrb[0].mxu0 %v3522
        %v3726 = vpop.f32.mrb[0].mxu0
        %v3727 = vadd.f32 0.0, %v3726
        %v3728 = vpop.f32.mrb[0].mxu0
        %3729 = vmatprep.mubr.f32.mxu0 0.0
        %3730 = vmatmul.mubr.f32.gmra.mrb[0].mxu0 %v3524
        %v3731 = vpop.f32.mrb[0].mxu0
        %v3732 = vadd.f32 0.0, %v3731
        %v3733 = vpop.f32.mrb[0].mxu0
        %3734 = vmatprep.mubr.f32.mxu0 0.0
        %3735 = vmatmul.mubr.f32.gmra.mrb[0].mxu0 %v3526
        %v3736 = vpop.f32.mrb[0].mxu0
        %v3737 = vadd.f32 0.0, %v3736
        %v3738 = vpop.f32.mrb[0].mxu0
        %3739 = vmatprep.mubr.f32.mxu0 0.0
        %3740 = vmatmul.mubr.f32.gmra.mrb[0].mxu0 %v3528
        %v3741 = vpop.f32.mrb[0].mxu0
        %v3742 = vadd.f32 0.0, %v3741
        %v3743 = vpop.f32.mrb[0].mxu0
        %3744 = vmatprep.mubr.f32.mxu0 0.0
        %3745 = vmatmul.mubr.f32.gmra.mrb[0].mxu0 %v3530
        %v3746 = vpop.f32.mrb[0].mxu0
        %v3747 = vadd.f32 0.0, %v3746
        %v3748 = vpop.f32.mrb[0].mxu0
        %3749 = vmatprep.mubr.f32.mxu0 0.0
        %3750 = vmatmul.mubr.f32.gmra.mrb[0].mxu0 %v3532
        %v3751 = vpop.f32.mrb[0].mxu0
        %v3752 = vadd.f32 0.0, %v3751
        %v3753 = vpop.f32.mrb[0].mxu0
        %3754 = vmatprep.mubr.f32.mxu0 0.0
        %3755 = vmatmul.mubr.f32.gmra.mrb[0].mxu0 %v3534
        %v3756 = vpop.f32.mrb[0].mxu0
        %v3757 = vadd.f32 0.0, %v3756
        %v3758 = vpop.f32.mrb[0].mxu0
        %3759 = vmatprep.mubr.f32.mxu0 0.0
        %3760 = vmatmul.mubr.f32.gmra.mrb[0].mxu0 %v3536
        %v3761 = vpop.f32.mrb[0].mxu0
        %v3762 = vadd.f32 0.0, %v3761
        %v3763 = vpop.f32.mrb[0].mxu0
        %3764 = vmatprep.mubr.f32.mxu0 0.0
        %3765 = vmatmul.mubr.f32.gmra.mrb[0].mxu0 %v3538
        %v3766 = vpop.f32.mrb[0].mxu0
        %v3767 = vadd.f32 0.0, %v3766
        %v3768 = vpop.f32.mrb[0].mxu0
        %3769 = vmatprep.mubr.f32.mxu0 0.0
        %3770 = vmatmul.mubr.f32.gmra.mrb[0].mxu0 %v3540
        %v3771 = vpop.f32.mrb[0].mxu0
        %v3772 = vadd.f32 0.0, %v3771
        %v3773 = vpop.f32.mrb[0].mxu0
        %3774 = vmatprep.mubr.f32.mxu0 0.0
        %3775 = vmatmul.mubr.f32.gmra.mrb[0].mxu0 %v3542
        %v3776 = vpop.f32.mrb[0].mxu0
        %v3777 = vadd.f32 0.0, %v3776
        %v3778 = vpop.f32.mrb[0].mxu0
        %3779 = vmatprep.mubr.f32.mxu0 0.0
        %3780 = vmatmul.mubr.f32.gmra.mrb[0].mxu0 %v3544
        %v3781 = vpop.f32.mrb[0].mxu0
        %v3782 = vadd.f32 0.0, %v3781
        %v3783 = vpop.f32.mrb[0].mxu0
        %3784 = vmatprep.mubr.f32.mxu0 0.0
        %3785 = vmatmul.mubr.f32.gmra.mrb[0].mxu0 %v3546
        %v3786 = vpop.f32.mrb[0].mxu0
        %v3787 = vadd.f32 0.0, %v3786
        %v3788 = vpop.f32.mrb[0].mxu0
        %3789 = vmatprep.mubr.f32.mxu0 0.0
        %3790 = vmatmul.mubr.f32.gmra.mrb[0].mxu0 %v3548
        %v3791 = vpop.f32.mrb[0].mxu0
        %v3792 = vadd.f32 0.0, %v3791
        %v3793 = vpop.f32.mrb[0].mxu0
        %3794 = vmatprep.mubr.f32.mxu0 0.0
        %3795 = vmatmul.mubr.f32.gmra.mrb[0].mxu0 %v3550
        %v3796 = vpop.f32.mrb[0].mxu0
        %v3797 = vadd.f32 0.0, %v3796
        %v3798 = vpop.f32.mrb[0].mxu0
        %3799 = vdwg.mxu0
        %v3800 = vadd.f32 %v3368, %v3622
        %v3801 = vadd.f32 %v3369, %v3627
        %v3802 = vadd.f32 %v3370, %v3632
        %v3803 = vadd.f32 %v3371, %v3637
        %v3804 = vadd.f32 %v3372, %v3642
        %v3805 = vadd.f32 %v3373, %v3647
        %v3806 = vadd.f32 %v3374, %v3652
        %v3807 = vadd.f32 %v3375, %v3657
        %v3808 = vadd.f32 %v3376, %v3662
        %v3809 = vadd.f32 %v3377, %v3667
        %v3810 = vadd.f32 %v3378, %v3672
        %v3811 = vadd.f32 %v3379, %v3677
        %v3812 = vadd.f32 %v3380, %v3682
        %v3813 = vadd.f32 %v3381, %v3687
        %v3814 = vadd.f32 %v3382, %v3692
        %v3815 = vadd.f32 %v3383, %v3697
        %v3816 = vadd.f32 %v3384, %v3702
        %v3817 = vadd.f32 %v3385, %v3707
        %v3818 = vadd.f32 %v3386, %v3712
        %v3819 = vadd.f32 %v3387, %v3717
        %v3820 = vadd.f32 %v3388, %v3722
        %v3821 = vadd.f32 %v3389, %v3727
        %v3822 = vadd.f32 %v3390, %v3732
        %v3823 = vadd.f32 %v3391, %v3737
        %v3824 = vadd.f32 %v3392, %v3742
        %v3825 = vadd.f32 %v3393, %v3747
        %v3826 = vadd.f32 %v3394, %v3752
        %v3827 = vadd.f32 %v3395, %v3757
        %v3828 = vadd.f32 %v3396, %v3762
        %v3829 = vadd.f32 %v3397, %v3767
        %v3830 = vadd.f32 %v3398, %v3772
        %v3831 = vadd.f32 %v3399, %v3777
        %v3832 = vadd.f32 %v3400, %v3782
        %v3833 = vadd.f32 %v3401, %v3787
        %v3834 = vadd.f32 %v3402, %v3792
        %v3835 = vadd.f32 %v3403, %v3797
        %v3836 = vld [vmem:[%s2] sm:$0x1]
        %v3838 = vlaneseq
        %v3839 = vshrl.u32 %v3838, 7
        %v3840 = vsub.s32 0, %v3839
        %v3841 = vrot.slane %v3836, %v3840
        %v3843 = vadd.f32 %v3800, %v3841
        %v3844 = vadd.f32 %v3801, %v3841
        %v3845 = vadd.f32 %v3802, %v3841
        %v3846 = vadd.f32 %v3803, %v3841
        %v3847 = vadd.f32 %v3804, %v3841
        %v3848 = vadd.f32 %v3805, %v3841
        %v3849 = vadd.f32 %v3806, %v3841
        %v3850 = vadd.f32 %v3807, %v3841
        %v3851 = vadd.f32 %v3808, %v3841
        %v3852 = vadd.f32 %v3809, %v3841
        %v3853 = vadd.f32 %v3810, %v3841
        %v3854 = vadd.f32 %v3811, %v3841
        %v3855 = vadd.f32 %v3812, %v3841
        %v3856 = vadd.f32 %v3813, %v3841
        %v3857 = vadd.f32 %v3814, %v3841
        %v3858 = vadd.f32 %v3815, %v3841
        %v3859 = vadd.f32 %v3816, %v3841
        %v3860 = vadd.f32 %v3817, %v3841
        %v3861 = vadd.f32 %v3818, %v3841
        %v3862 = vadd.f32 %v3819, %v3841
        %v3863 = vadd.f32 %v3820, %v3841
        %v3864 = vadd.f32 %v3821, %v3841
        %v3865 = vadd.f32 %v3822, %v3841
        %v3866 = vadd.f32 %v3823, %v3841
        %v3867 = vadd.f32 %v3824, %v3841
        %v3868 = vadd.f32 %v3825, %v3841
        %v3869 = vadd.f32 %v3826, %v3841
        %v3870 = vadd.f32 %v3827, %v3841
        %v3871 = vadd.f32 %v3828, %v3841
        %v3872 = vadd.f32 %v3829, %v3841
        %v3873 = vadd.f32 %v3830, %v3841
        %v3874 = vadd.f32 %v3831, %v3841
        %v3875 = vadd.f32 %v3832, %v3841
        %v3876 = vadd.f32 %v3833, %v3841
        %v3877 = vadd.f32 %v3834, %v3841
        %v3878 = vadd.f32 %v3835, %v3841
        %v3879 = vmax.f32 %v3843, 0.0
        %v3880 = vmax.f32 %v3844, 0.0
        %v3881 = vmax.f32 %v3845, 0.0
        %v3882 = vmax.f32 %v3846, 0.0
        %v3883 = vmax.f32 %v3847, 0.0
        %v3884 = vmax.f32 %v3848, 0.0
        %v3885 = vmax.f32 %v3849, 0.0
        %v3886 = vmax.f32 %v3850, 0.0
        %v3887 = vmax.f32 %v3851, 0.0
        %v3888 = vmax.f32 %v3852, 0.0
        %v3889 = vmax.f32 %v3853, 0.0
        %v3890 = vmax.f32 %v3854, 0.0
        %v3891 = vmax.f32 %v3855, 0.0
        %v3892 = vmax.f32 %v3856, 0.0
        %v3893 = vmax.f32 %v3857, 0.0
        %v3894 = vmax.f32 %v3858, 0.0
        %v3895 = vmax.f32 %v3859, 0.0
        %v3896 = vmax.f32 %v3860, 0.0
        %v3897 = vmax.f32 %v3861, 0.0
        %v3898 = vmax.f32 %v3862, 0.0
        %v3899 = vmax.f32 %v3863, 0.0
        %v3900 = vmax.f32 %v3864, 0.0
        %v3901 = vmax.f32 %v3865, 0.0
        %v3902 = vmax.f32 %v3866, 0.0
        %v3903 = vmax.f32 %v3867, 0.0
        %v3904 = vmax.f32 %v3868, 0.0
        %v3905 = vmax.f32 %v3869, 0.0
        %v3906 = vmax.f32 %v3870, 0.0
        %v3907 = vmax.f32 %v3871, 0.0
        %v3908 = vmax.f32 %v3872, 0.0
        %v3909 = vmax.f32 %v3873, 0.0
        %v3910 = vmax.f32 %v3874, 0.0
        %v3911 = vmax.f32 %v3875, 0.0
        %v3912 = vmax.f32 %v3876, 0.0
        %v3913 = vmax.f32 %v3877, 0.0
        %v3914 = vmax.f32 %v3878, 0.0
        %v3915 = vld [vmem:[%s3] sm:$0x7]
        %v3917 = vlaneseq
        %v3918 = vshrl.u32 %v3917, 7
        %v3919 = vsub.s32 0, %v3918
        %v3920 = vrot.slane %v3915, %v3919
        %v3921 = vlaneseq
        %v3922 = vshrl.u32 %v3921, 7
        %v3923 = vsub.s32 1, %v3922
        %v3924 = vrot.slane %v3915, %v3923
        %v3925 = vlaneseq
        %v3926 = vshrl.u32 %v3925, 7
        %v3927 = vsub.s32 2, %v3926
        %v3928 = vrot.slane %v3915, %v3927
        %vm3931 = vcmask 244736
        %v3932 = vsel %vm3931, %v3928, 0
        %v3935 = vsel %vm1086, %v3914, 0
        %3937 = vmatprep.subr.mxu0 0.0
        %3938 = vmatpush1.msra.mxu0 %v3879
        %3939 = vmatprep.subr.mxu0 0.0
        %3940 = vmatpush1.msra.mxu0 %v3880
        %3941 = vmatprep.subr.mxu0 0.0
        %3942 = vmatpush1.msra.mxu0 %v3881
        %3943 = vmatprep.subr.mxu0 0.0
        %3944 = vmatpush1.msra.mxu0 %v3882
        %3945 = vmatprep.subr.mxu0 0.0
        %3946 = vmatpush1.msra.mxu0 %v3883
        %3947 = vmatprep.subr.mxu0 0.0
        %3948 = vmatpush1.msra.mxu0 %v3884
        %3949 = vmatprep.subr.mxu0 0.0
        %3950 = vmatpush1.msra.mxu0 %v3885
        %3951 = vmatprep.subr.mxu0 0.0
        %3952 = vmatpush1.msra.mxu0 %v3886
        %3953 = vmatprep.subr.mxu0 0.0
        %3954 = vmatpush1.msra.mxu0 %v3887
        %3955 = vmatprep.subr.mxu0 0.0
        %3956 = vmatpush1.msra.mxu0 %v3888
        %3957 = vmatprep.subr.mxu0 0.0
        %3958 = vmatpush1.msra.mxu0 %v3889
        %3959 = vmatprep.subr.mxu0 0.0
        %3960 = vmatpush1.msra.mxu0 %v3890
        %3961 = vmatprep.subr.mxu0 0.0
        %3962 = vmatpush1.msra.mxu0 %v3891
        %3963 = vmatprep.subr.mxu0 0.0
        %3964 = vmatpush1.msra.mxu0 %v3892
        %3965 = vmatprep.subr.mxu0 0.0
        %3966 = vmatpush1.msra.mxu0 %v3893
        %3967 = vmatprep.subr.mxu0 0.0
        %3968 = vmatpush1.msra.mxu0 %v3894
        %3969 = vmatprep.subr.mxu0 0.0
        %3970 = vmatpush1.msra.mxu0 %v3895
        %3971 = vmatprep.subr.mxu0 0.0
        %3972 = vmatpush1.msra.mxu0 %v3896
        %3973 = vmatprep.subr.mxu0 0.0
        %3974 = vmatpush1.msra.mxu0 %v3897
        %3975 = vmatprep.subr.mxu0 0.0
        %3976 = vmatpush1.msra.mxu0 %v3898
        %3977 = vmatprep.subr.mxu0 0.0
        %3978 = vmatpush1.msra.mxu0 %v3899
        %3979 = vmatprep.subr.mxu0 0.0
        %3980 = vmatpush1.msra.mxu0 %v3900
        %3981 = vmatprep.subr.mxu0 0.0
        %3982 = vmatpush1.msra.mxu0 %v3901
        %3983 = vmatprep.subr.mxu0 0.0
        %3984 = vmatpush1.msra.mxu0 %v3902
        %3985 = vmatprep.subr.mxu0 0.0
        %3986 = vmatpush1.msra.mxu0 %v3903
        %3987 = vmatprep.subr.mxu0 0.0
        %3988 = vmatpush1.msra.mxu0 %v3904
        %3989 = vmatprep.subr.mxu0 0.0
        %3990 = vmatpush1.msra.mxu0 %v3905
        %3991 = vmatprep.subr.mxu0 0.0
        %3992 = vmatpush1.msra.mxu0 %v3906
        %3993 = vmatprep.subr.mxu0 0.0
        %3994 = vmatpush1.msra.mxu0 %v3907
        %3995 = vmatprep.subr.mxu0 0.0
        %3996 = vmatpush1.msra.mxu0 %v3908
        %3997 = vmatprep.subr.mxu0 0.0
        %3998 = vmatpush1.msra.mxu0 %v3909
        %3999 = vmatprep.subr.mxu0 0.0
        %4000 = vmatpush1.msra.mxu0 %v3910
        %4001 = vmatprep.mubr.f32.mxu0 %v3924
        %4002 = vmatmul.mubr.f32.gmra.mrb[0].mxu0 %v3920
        %v4003 = vpop.f32.mrb[0].mxu0
        %v4004 = vadd.f32 0.0, %v4003
        %v4005 = vpop.f32.mrb[0].mxu0
        %4006 = vdwg.mxu0
        %4007 = vmatprep.subr.mxu0 0.0
        %4008 = vmatpush1.msra.mxu0 %v3911
        %4009 = vmatprep.subr.mxu0 0.0
        %4010 = vmatpush1.msra.mxu0 %v3912
        %4011 = vmatprep.subr.mxu0 0.0
        %4012 = vmatpush1.msra.mxu0 %v3913
        %4013 = vmatprep.subr.mxu0 0.0
        %4014 = vmatpush1.msra.mxu0 %v3935
        %4015 = vmatprep.subr.mxu0 0.0
        %4016 = vmatpush1.msra.mxu0 0.0
        %4017 = vmatprep.subr.mxu0 0.0
        %4018 = vmatpush1.msra.mxu0 0.0
        %4019 = vmatprep.subr.mxu0 0.0
        %4020 = vmatpush1.msra.mxu0 0.0
        %4021 = vmatprep.subr.mxu0 0.0
        %4022 = vmatpush1.msra.mxu0 0.0
        %4023 = vmatprep.subr.mxu0 0.0
        %4024 = vmatpush1.msra.mxu0 0.0
        %4025 = vmatprep.subr.mxu0 0.0
        %4026 = vmatpush1.msra.mxu0 0.0
        %4027 = vmatprep.subr.mxu0 0.0
        %4028 = vmatpush1.msra.mxu0 0.0
        %4029 = vmatprep.subr.mxu0 0.0
        %4030 = vmatpush1.msra.mxu0 0.0
        %4031 = vmatprep.subr.mxu0 0.0
        %4032 = vmatpush1.msra.mxu0 0.0
        %4033 = vmatprep.subr.mxu0 0.0
        %4034 = vmatpush1.msra.mxu0 0.0
        %4035 = vmatprep.subr.mxu0 0.0
        %4036 = vmatpush1.msra.mxu0 0.0
        %4037 = vmatprep.subr.mxu0 0.0
        %4038 = vmatpush1.msra.mxu0 0.0
        %4039 = vmatprep.subr.mxu0 0.0
        %4040 = vmatpush1.msra.mxu0 0.0
        %4041 = vmatprep.subr.mxu0 0.0
        %4042 = vmatpush1.msra.mxu0 0.0
        %4043 = vmatprep.subr.mxu0 0.0
        %4044 = vmatpush1.msra.mxu0 0.0
        %4045 = vmatprep.subr.mxu0 0.0
        %4046 = vmatpush1.msra.mxu0 0.0
        %4047 = vmatprep.subr.mxu0 0.0
        %4048 = vmatpush1.msra.mxu0 0.0
        %4049 = vmatprep.subr.mxu0 0.0
        %4050 = vmatpush1.msra.mxu0 0.0
        %4051 = vmatprep.subr.mxu0 0.0
        %4052 = vmatpush1.msra.mxu0 0.0
        %4053 = vmatprep.subr.mxu0 0.0
        %4054 = vmatpush1.msra.mxu0 0.0
        %4055 = vmatprep.subr.mxu0 0.0
        %4056 = vmatpush1.msra.mxu0 0.0
        %4057 = vmatprep.subr.mxu0 0.0
        %4058 = vmatpush1.msra.mxu0 0.0
        %4059 = vmatprep.subr.mxu0 0.0
        %4060 = vmatpush1.msra.mxu0 0.0
        %4061 = vmatprep.subr.mxu0 0.0
        %4062 = vmatpush1.msra.mxu0 0.0
        %4063 = vmatprep.subr.mxu0 0.0
        %4064 = vmatpush1.msra.mxu0 0.0
        %4065 = vmatprep.subr.mxu0 0.0
        %4066 = vmatpush1.msra.mxu0 0.0
        %4067 = vmatprep.subr.mxu0 0.0
        %4068 = vmatpush1.msra.mxu0 0.0
        %4069 = vmatprep.subr.mxu0 0.0
        %4070 = vmatpush1.msra.mxu0 0.0
        %4071 = vmatprep.mubr.f32.mxu0 0.0
        %4072 = vmatmul.mubr.f32.gmra.mrb[0].mxu0 %v3932
        %v4073 = vpop.f32.mrb[0].mxu0
        %v4074 = vadd.f32 %v4004, %v4073
        %v4075 = vpop.f32.mrb[0].mxu0
        %4076 = vdwg.mxu0
        %v4077 = vld [vmem:[%s4] sm:$0xff]
        %v4078 = vld [vmem:[%s4 + $0x8] sm:$0xff]
        %v4079 = vld [vmem:[%s4 + $0x10] sm:$0xff]
        %v4080 = vld [vmem:[%s4 + $0x18] sm:$0xff]
        %v4081 = vld [vmem:[%s4 + $0x20] sm:$0xff]
        %v4082 = vld [vmem:[%s4 + $0x28] sm:$0xff]
        %v4083 = vld [vmem:[%s4 + $0x30] sm:$0xff]
        %v4084 = vld [vmem:[%s4 + $0x38] sm:$0xff]
        %v4085 = vld [vmem:[%s4 + $0x40] sm:$0xff]
        %v4086 = vld [vmem:[%s4 + $0x48] sm:$0xff]
        %v4087 = vld [vmem:[%s4 + $0x50] sm:$0xff]
        %v4088 = vld [vmem:[%s4 + $0x58] sm:$0xff]
        %v4089 = vld [vmem:[%s4 + $0x60] sm:$0xff]
        %v4090 = vld [vmem:[%s4 + $0x68] sm:$0xff]
        %v4091 = vld [vmem:[%s4 + $0x70] sm:$0xff]
        %v4092 = vld [vmem:[%s4 + $0x78] sm:$0xff]
        %v4093 = vld [vmem:[%s5] sm:$0x1]
        %4094 = vmatprep.subr.mxu0 0.0
        %4095 = vmatpush1.msra.mxu0 %v4077
        %4096 = vmatprep.subr.mxu0 0.0
        %4097 = vmatpush1.msra.mxu0 %v4078
        %4098 = vmatprep.subr.mxu0 0.0
        %4099 = vmatpush1.msra.mxu0 %v4079
        %4100 = vmatprep.subr.mxu0 0.0
        %4101 = vmatpush1.msra.mxu0 %v4080
        %4102 = vmatprep.subr.mxu0 0.0
        %4103 = vmatpush1.msra.mxu0 %v4081
        %4104 = vmatprep.subr.mxu0 0.0
        %4105 = vmatpush1.msra.mxu0 %v4082
        %4106 = vmatprep.subr.mxu0 0.0
        %4107 = vmatpush1.msra.mxu0 %v4083
        %4108 = vmatprep.subr.mxu0 0.0
        %4109 = vmatpush1.msra.mxu0 %v4084
        %4110 = vmatprep.subr.mxu0 0.0
        %4111 = vmatpush1.msra.mxu0 %v4085
        %4112 = vmatprep.subr.mxu0 0.0
        %4113 = vmatpush1.msra.mxu0 %v4086
        %4114 = vmatprep.subr.mxu0 0.0
        %4115 = vmatpush1.msra.mxu0 %v4087
        %4116 = vmatprep.subr.mxu0 0.0
        %4117 = vmatpush1.msra.mxu0 %v4088
        %4118 = vmatprep.subr.mxu0 0.0
        %4119 = vmatpush1.msra.mxu0 %v4089
        %4120 = vmatprep.subr.mxu0 0.0
        %4121 = vmatpush1.msra.mxu0 %v4090
        %4122 = vmatprep.subr.mxu0 0.0
        %4123 = vmatpush1.msra.mxu0 %v4091
        %4124 = vmatprep.subr.mxu0 0.0
        %4125 = vmatpush1.msra.mxu0 %v4092
        %4126 = vmatprep.subr.mxu0 0.0
        %4127 = vmatpush1.msra.mxu0 0.0
        %4128 = vmatprep.subr.mxu0 0.0
        %4129 = vmatpush1.msra.mxu0 0.0
        %4130 = vmatprep.subr.mxu0 0.0
        %4131 = vmatpush1.msra.mxu0 0.0
        %4132 = vmatprep.subr.mxu0 0.0
        %4133 = vmatpush1.msra.mxu0 0.0
        %4134 = vmatprep.subr.mxu0 0.0
        %4135 = vmatpush1.msra.mxu0 0.0
        %4136 = vmatprep.subr.mxu0 0.0
        %4137 = vmatpush1.msra.mxu0 0.0
        %4138 = vmatprep.subr.mxu0 0.0
        %4139 = vmatpush1.msra.mxu0 0.0
        %4140 = vmatprep.subr.mxu0 0.0
        %4141 = vmatpush1.msra.mxu0 0.0
        %4142 = vmatprep.subr.mxu0 0.0
        %4143 = vmatpush1.msra.mxu0 0.0
        %4144 = vmatprep.subr.mxu0 0.0
        %4145 = vmatpush1.msra.mxu0 0.0
        %4146 = vmatprep.subr.mxu0 0.0
        %4147 = vmatpush1.msra.mxu0 0.0
        %4148 = vmatprep.subr.mxu0 0.0
        %4149 = vmatpush1.msra.mxu0 0.0
        %4150 = vmatprep.subr.mxu0 0.0
        %4151 = vmatpush1.msra.mxu0 0.0
        %4152 = vmatprep.subr.mxu0 0.0
        %4153 = vmatpush1.msra.mxu0 0.0
        %4154 = vmatprep.subr.mxu0 0.0
        %4155 = vmatpush1.msra.mxu0 0.0
        %4156 = vmatprep.subr.mxu0 0.0
        %4157 = vmatpush1.msra.mxu0 0.0
        %4158 = vmatprep.mubr.f32.mxu0 0.0
        %4159 = vmatmul.mubr.f32.gmra.mrb[0].mxu0 %v4074
        %v4160 = vpop.f32.mrb[0].mxu0
        %v4161 = vadd.f32 %v4093, %v4160
        %v4162 = vpop.f32.mrb[0].mxu0
        %4163 = vdwg.mxu0
        %4164 = vst [vmem:[%s243] sm:$0x1] %v4161
        %s4165 = sand.u32 %s159, 1
        %s4166 = scalar_lea.sflag [#allocation3], %s4165
        %s4167 = sand.u32 %s159, 1
        %s4168 = scalar_lea.vmem [#allocation2], %s4167
        // Predicated region
        $region45: #{timm_base_forward.1} parent=43 // pred_check
          %p4169 = pneg %p169
        $region46: #{timm_base_forward.1} parent=43 // pred_check_branch
          %4171 = sbr.rel (%p4169) target = $region48
        $region47: #{timm_base_forward.1} parent=43 // pred_region
          %s4173 = ssub.s32 16, 16
          %4174 = vsyncadd %s4166, %s4173
          %s4175 = smul.addr %s20, 16
          %s4176 = scalar_lea.hbm %s6, %s4175
          %s4178 = sshll.u32 %s4168, 4
          %s4179 = int_to_ptr.vmem [resolvable:$true] %s4178
          %4181 = dma.vmem_to_hbm [thread:$0]  %s4179, 16, %s4176, %s4166
        $region48: #{timm_base_forward.1} parent=43 // pred_fallthru
          _
      $region44: #{timm_base_forward.1} parent=5 // pred_fallthru
        _
      %p4182 = scmp.le.s32.totalorder 2, %s15
      // Predicated region
      $region49: #{timm_base_forward.1} parent=5 // pred_check
        %p4183 = pneg %p4182
      $region50: #{timm_base_forward.1} parent=5 // pred_check_branch
        %4185 = sbr.rel (%p4183) target = $region52
      $region51: #{timm_base_forward.1} parent=5 // pred_region
        %s4186 = ssub.s32 %s15, 2
        // Predicated region
        $region53: #{timm_base_forward.1} parent=51 // pred_check
          %p4187 = pneg %p175
        $region54: #{timm_base_forward.1} parent=51 // pred_check_branch
          %4189 = sbr.rel (%p4187) target = $region56
        $region55: #{timm_base_forward.1} parent=51 // pred_region
          %s4190 = sand.u32 %s160, 1
          %s4191 = scalar_lea.sflag [#allocation3], %s4190
          %s4192 = sand.u32 %s160, 1
          %s4193 = scalar_lea.vmem [#allocation2], %s4192
          %4194 = dma.done %s4191, 16
        $region56: #{timm_base_forward.1} parent=51 // pred_fallthru
          _
      $region52: #{timm_base_forward.1} parent=5 // pred_fallthru
        _
    $region6: #{timm_base_forward.1} parent=1 // loop_footer
      %s19 = sadd.s32 1, %s15
    $region7: #{timm_base_forward.1} parent=1 // loop_footer_branch
      %14 = sbr.rel target = $region3
    $region8: #{timm_base_forward.1} parent=1 // loop_exit
      _
    %4195 = vsyncpa [#allocation3], 1
    %s4196 = scalar_lea.sflag [#allocation3], 1
    %4197 = vsyncpa %s4196, 1

</llo_original>
